<compile_context>
chip_gen: v7x
topology: tpu7x:2x2x1
jax: 0.10.0
libtpu: 0.0.40
codegen_flags: <defaults>
</compile_context>

<pallas_src>
import functools

import jax
import jax.numpy as jnp
from jax.experimental import pallas as pl
from jax.experimental.pallas import tpu as pltpu

BN_EPS = 1e-5

# MXU operand dtype. bf16 is MXU-native on v5e/v6e/v7x (f32 operands run at a
# fraction of peak) and halves weight VMEM + shifted-activation vreg footprint.
# Accumulation (preferred_element_type) and all BatchNorm math remain float32.
MATMUL_DTYPE = jnp.bfloat16


def _shifted(x, dy, dx, cin, valid_up, valid_dn):
    """Spatially shifted view of the lane-folded activation.

    x has layout x[n*H + i, j*cin + c]; returns the padding=1 neighbor view
    xs[n*H + i, j*cin + c] = x[n, i+dy, j+dx, c] (zero outside the image).
    dy, dx are static Python ints in {-1, 0, 1}.
    """
    R, Lc = x.shape
    # Lane shift (dx): zero fill along W is exactly the padding=1 columns.
    if dx > 0:
        x = jnp.concatenate(
            [x[:, dx * cin:], jnp.zeros((R, dx * cin), x.dtype)], axis=1)
    elif dx < 0:
        x = jnp.concatenate(
            [jnp.zeros((R, -dx * cin), x.dtype), x[:, :dx * cin]], axis=1)
    # Sublane shift (dy): rows of different images are stacked, so zero rows
    # whose i+dy crossed an image boundary (masks hoisted by the caller).
    if dy > 0:
        x = jnp.concatenate([x[dy:, :], jnp.zeros((dy, Lc), x.dtype)], axis=0)
        x = jnp.where(valid_dn, x, jnp.zeros_like(x))
    elif dy < 0:
        x = jnp.concatenate([jnp.zeros((-dy, Lc), x.dtype), x[:dy, :]], axis=0)
        x = jnp.where(valid_up, x, jnp.zeros_like(x))
    return x


def _conv3x3(x_f32, w_ref, cin, valid_up, valid_dn):
    """3x3 / stride 1 / padding 1 conv as ONE MXU matmul with K = 9*W*cin.

    x_f32 : (N*H, W*cin) f32 activation
    w_ref : (9*W*cin, W*cout) bf16 block-diagonal kron(I_W, W_tap) weights,
            taps concatenated along K in (ky, kx) order.
    """
    x = x_f32.astype(MATMUL_DTYPE)              # one cast per layer, not per tap
    taps = [_shifted(x, dy, dx, cin, valid_up, valid_dn)
            for dy in (-1, 0, 1) for dx in (-1, 0, 1)]   # t = (dy+1)*3 + (dx+1)
    xk = jnp.concatenate(taps, axis=1)          # (N*H, 9*W*cin)
    return jnp.dot(xk, w_ref[...], preferred_element_type=jnp.float32)


def _bias_relu_bn(y, sb, inv_m, c_out, ggt_ref, use_roll, *, relu, add_bias):
    """(optional bias) -> (optional ReLU) -> training-mode BatchNorm2d.

    y  : (N*H, W*C) f32
    sb : (3, W*C) = [conv bias, bn gamma, bn beta], each tiled to lane width.
    """
    L = y.shape[1]
    if add_bias:
        y = y + sb[0:1, :]
    if relu:
        y = jnp.maximum(y, 0.0)

    # One-pass stats: per-lane sum / sum-of-squares over the N*H rows ...
    s_sum = jnp.sum(y, axis=0, keepdims=True)
    s_sq = jnp.sum(y * y, axis=0, keepdims=True)

    # ... then an all-reduce over the W lane-groups of each channel (which also
    # re-broadcasts the per-channel result to every lane group).
    if use_roll:
        # log2(W)-step XLU butterfly (XLU slot is otherwise idle here); padded
        # to 8 sublanes so the rotate works on a full native vreg tile.
        stats = jnp.concatenate(
            [s_sum, s_sq, jnp.zeros((6, L), jnp.float32)], axis=0)
        shift = c_out
        while shift < L:
            stats = stats + pltpu.roll(stats, shift=shift, axis=1)
            shift *= 2
    else:
        # Non power-of-two W fallback: tiny matmul vs a precomputed 0/1 matrix.
        stats = jnp.concatenate([s_sum, s_sq], axis=0)
        stats = jnp.dot(stats, ggt_ref[...], preferred_element_type=jnp.float32)

    mean = stats[0:1, :] * inv_m
    var = stats[1:2, :] * inv_m - mean * mean       # biased (training-mode) var
    scale = sb[1:2, :] * jax.lax.rsqrt(var + BN_EPS)
    offset = sb[2:3, :] - mean * scale
    return y * scale + offset                       # single fused FMA pass


def _mynet_kernel(*refs, n_conv, n_batch, H, W, c_in, c_out, use_roll):
    """Whole MyNet forward on one VMEM-resident lane-folded activation."""
    x_ref = refs[0]
    w1_ref = refs[1]
    w2_refs = refs[2:2 + (n_conv - 1)]
    w3_ref = refs[n_conv + 1]
    sb_ref = refs[n_conv + 2]
    nxt = n_conv + 3
    ggt_ref = None
    if not use_roll:
        ggt_ref = refs[nxt]
        nxt += 1
    o_ref = refs[nxt]

    R = n_batch * H
    inv_m = 1.0 / float(n_batch * H * W)

    # dy = +-1 image-boundary masks: built ONCE per lane width and reused by
    # every tap of every layer (JAX does not CSE these across unrolled loops).
    def masks(width):
        i = jax.lax.broadcasted_iota(jnp.int32, (R, width), 0) % H
        return i >= 1, i < (H - 1)      # valid_up (dy=-1), valid_dn (dy=+1)

    up_in, dn_in = masks(W * c_in)
    up, dn = (up_in, dn_in) if c_in == c_out else masks(W * c_out)

    # conv1 (3x3) -> relu -> bn1
    x = _conv3x3(x_ref[...], w1_ref, c_in, up_in, dn_in)
    x = _bias_relu_bn(x, sb_ref[0], inv_m, c_out, ggt_ref, use_roll,
                      relu=True, add_bias=True)

    # conv2[i] (3x3) -> relu -> bn2[i]
    for i in range(n_conv - 1):
        x = _conv3x3(x, w2_refs[i], c_out, up, dn)
        x = _bias_relu_bn(x, sb_ref[1 + i], inv_m, c_out, ggt_ref, use_roll,
                          relu=True, add_bias=True)

    # conv3 (1x1) -> bn3 (no ReLU).  The conv bias is skipped: with no ReLU in
    # between, training-mode BN subtracts the per-channel mean so the bias
    # cancels (mathematically exact; last-ulp fp rounding may differ).
    y = jnp.dot(x.astype(MATMUL_DTYPE), w3_ref[...],
                preferred_element_type=jnp.float32)
    y = _bias_relu_bn(y, sb_ref[n_conv], inv_m, c_out, ggt_ref, use_roll,
                      relu=False, add_bias=False)

    o_ref[...] = y.astype(o_ref.dtype)


def _expand_conv_weights(w, W):
    """(Cout, Cin, kh, kw) -> (kh*kw, W*Cin, W*Cout) block-diag kron(I_W, W_tap)."""
    # TODO(synk): kron(I_W, W_tap) bytes grow as W^2 and (W-1)/W of the MXU MACs
    # multiply structural zeros; for large W/C switch to an in-VMEM im2col
    # (rows, 9*Cin) x (9*Cin, Cout) layout instead of expanding.
    cout, cin, kh, kw = w.shape
    taps = jnp.transpose(w, (2, 3, 1, 0)).reshape(kh * kw, cin, cout)
    eye = jnp.eye(W, dtype=w.dtype)
    blk = jnp.einsum('jk,tab->tjakb', eye, taps)
    return blk.reshape(kh * kw, W * cin, W * cout)


def _pack_affine(bias, gamma, beta, W):
    """Pack (C,) conv bias / BN gamma / BN beta, tiled to lane width W*C."""
    return jnp.stack(
        [jnp.tile(bias, W), jnp.tile(gamma, W), jnp.tile(beta, W)], axis=0)


def init_params(key, input_dim, n_channel, n_conv):
    """Deterministic parameter init (shapes mirror the PyTorch module)."""
    params = {}
    keys = jax.random.split(key, 2 * (n_conv + 1))

    def conv_init(k, cout, cin, ksize):
        fan_in = cin * ksize * ksize
        scale = 1.0 / jnp.sqrt(fan_in)
        kw, kb = jax.random.split(k)
        w = jax.random.uniform(kw, (cout, cin, ksize, ksize), jnp.float32,
                               -scale, scale)
        b = jax.random.uniform(kb, (cout,), jnp.float32, -scale, scale)
        return w, b

    params["conv1_w"], params["conv1_b"] = conv_init(keys[0], n_channel,
                                                     input_dim, 3)
    params["bn1_g"] = jnp.ones((n_channel,), jnp.float32)
    params["bn1_b"] = jnp.zeros((n_channel,), jnp.float32)

    params["conv2_w"], params["conv2_b"] = [], []
    params["bn2_g"], params["bn2_b"] = [], []
    for i in range(n_conv - 1):
        w, b = conv_init(keys[1 + i], n_channel, n_channel, 3)
        params["conv2_w"].append(w)
        params["conv2_b"].append(b)
        params["bn2_g"].append(jnp.ones((n_channel,), jnp.float32))
        params["bn2_b"].append(jnp.zeros((n_channel,), jnp.float32))

    params["conv3_w"], params["conv3_b"] = conv_init(keys[n_conv], n_channel,
                                                     n_channel, 1)
    params["bn3_g"] = jnp.ones((n_channel,), jnp.float32)
    params["bn3_b"] = jnp.zeros((n_channel,), jnp.float32)
    return params


def mynet_forward(params, x_nchw, n_conv):
    """Forward pass matching MyNet.forward (training-mode BN). NCHW f32 I/O."""
    N, c_in, H, W = x_nchw.shape
    C = params["conv1_w"].shape[0]
    L = W * C
    use_roll = (W & (W - 1)) == 0        # lane-group reduce via XLU roll tree

    # Fold (W, C) into the lane dimension: (N, C, H, W) -> (N*H, W*C).
    # TODO(synk): accept/return NHWC to drop these two whole-activation
    # transposes if the surrounding model tolerates it.
    x2 = jnp.transpose(x_nchw, (0, 2, 3, 1)).astype(jnp.float32)
    x2 = x2.reshape(N * H, W * c_in)

    # Conv weights: expanded, taps K-concatenated, pre-cast to the MXU dtype
    # so the kernel does no per-tap casts at all.
    w1 = _expand_conv_weights(params["conv1_w"], W)
    w1 = w1.reshape(9 * W * c_in, L).astype(MATMUL_DTYPE)
    w2 = [_expand_conv_weights(params["conv2_w"][i], W)
          .reshape(9 * L, L).astype(MATMUL_DTYPE)
          for i in range(n_conv - 1)]
    w3 = _expand_conv_weights(params["conv3_w"], W)[0].astype(MATMUL_DTYPE)

    sb = jnp.stack(
        [_pack_affine(params["conv1_b"], params["bn1_g"], params["bn1_b"], W)]
        + [_pack_affine(params["conv2_b"][i], params["bn2_g"][i],
                        params["bn2_b"][i], W) for i in range(n_conv - 1)]
        + [_pack_affine(params["conv3_b"], params["bn3_g"], params["bn3_b"], W)],
        axis=0).astype(jnp.float32)

    inputs = [x2, w1] + w2 + [w3, sb]
    if not use_roll:
        ia = jnp.arange(L)[:, None] % C
        ib = jnp.arange(L)[None, :] % C
        inputs.append((ia == ib).astype(jnp.float32))   # ggt fallback operand

    # --- VMEM budget (single block, no grid => nothing is double-buffered) ---
    in_bytes = sum(int(a.size) * a.dtype.itemsize for a in inputs)
    out_bytes = N * H * L * 4
    itemsize = jnp.dtype(MATMUL_DTYPE).itemsize
    tmp_bytes = (N * H * 9 * max(W * c_in, L) * itemsize    # K-concat taps
                 + 4 * N * H * max(W * c_in, L) * 4)        # live f32 activations
    vmem_bytes = in_bytes + out_bytes + tmp_bytes
    try:
        vmem_cap = int(pltpu.get_tpu_info().vmem_capacity_bytes)
    except Exception:
        vmem_cap = 64 * 1024 * 1024       # v7x per-TensorCore VMEM (smallest)
    assert vmem_bytes < vmem_cap // 2, (
        f"single-block VMEM estimate {vmem_bytes} B exceeds half of {vmem_cap} "
        "B; tile the N*H axis with a 'parallel' grid for shapes this big")
    vmem_limit = int(min(max(2 * vmem_bytes + (8 << 20), 32 << 20), vmem_cap))

    kernel = functools.partial(_mynet_kernel, n_conv=n_conv, n_batch=N,
                               H=H, W=W, c_in=c_in, c_out=C, use_roll=use_roll)
    out2 = pl.pallas_call(
        kernel,
        out_shape=jax.ShapeDtypeStruct((N * H, L), jnp.float32),
        in_specs=[pl.BlockSpec(memory_space=pltpu.VMEM)] * len(inputs),
        out_specs=pl.BlockSpec(memory_space=pltpu.VMEM),
        compiler_params=pltpu.CompilerParams(vmem_limit_bytes=vmem_limit),
    )(*inputs)

    out = out2.reshape(N, H, W, C)
    return jnp.transpose(out, (0, 3, 1, 2))  # back to NCHW


def _reference_forward(params, x, n_conv):
    """Pure-JAX f32 reference (training-mode BatchNorm) for a tolerance check."""
    def conv(x, w, b, pad):
        y = jax.lax.conv_general_dilated(
            x, w, window_strides=(1, 1), padding=[(pad, pad), (pad, pad)],
            dimension_numbers=("NCHW", "OIHW", "NCHW"))
        return y + b[None, :, None, None]

    def bn(x, g, b):
        mean = jnp.mean(x, axis=(0, 2, 3), keepdims=True)
        var = jnp.mean(jnp.square(x - mean), axis=(0, 2, 3), keepdims=True)
        return ((x - mean) * jax.lax.rsqrt(var + BN_EPS)
                * g[None, :, None, None] + b[None, :, None, None])

    y = bn(jax.nn.relu(conv(x, params["conv1_w"], params["conv1_b"], 1)),
           params["bn1_g"], params["bn1_b"])
    for i in range(n_conv - 1):
        y = bn(jax.nn.relu(conv(y, params["conv2_w"][i],
                                params["conv2_b"][i], 1)),
               params["bn2_g"][i], params["bn2_b"][i])
    y = bn(conv(y, params["conv3_w"], params["conv3_b"], 0),
           params["bn3_g"], params["bn3_b"])
    return y


if __name__ == "__main__":
    # Small shapes: batch=2, input_dim=4, spatial=16x16, n_channel=8, n_conv=3
    key = jax.random.PRNGKey(0)
    k_x, k_p = jax.random.split(key)

    N, INPUT_DIM, H, W = 2, 4, 16, 16
    N_CHANNEL, N_CONV = 8, 3

    x = jax.random.normal(k_x, (N, INPUT_DIM, H, W), jnp.float32)
    params = init_params(k_p, INPUT_DIM, N_CHANNEL, N_CONV)

    fwd = jax.jit(functools.partial(mynet_forward, n_conv=N_CONV))
    out = jax.block_until_ready(fwd(params, x))

    assert out.shape == (N, N_CHANNEL, H, W), out.shape
    assert jnp.all(jnp.isfinite(out))

    # bf16-MXU kernel vs f32 reference: loose tolerance for the bf16 operands.
    ref = _reference_forward(params, x, N_CONV)
    assert jnp.allclose(out, ref, atol=1e-1, rtol=1e-1), (
        float(jnp.max(jnp.abs(out - ref))))
    print("KERNEL_OK")
</pallas_src>

<mosaic_0001>
module attributes {stable_mosaic.version = 11 : i64} {
  func.func @_mynet_kernel(%arg0: memref<32x64xf32, #tpu.memory_space<vmem>>, %arg1: memref<576x128xbf16, #tpu.memory_space<vmem>>, %arg2: memref<1152x128xbf16, #tpu.memory_space<vmem>>, %arg3: memref<1152x128xbf16, #tpu.memory_space<vmem>>, %arg4: memref<128x128xbf16, #tpu.memory_space<vmem>>, %arg5: memref<4x3x128xf32, #tpu.memory_space<vmem>>, %arg6: memref<32x128xf32, #tpu.memory_space<vmem>>) attributes {dimension_semantics = [], scalar_prefetch = 0 : i64, scratch_operands = 0 : i64, tpu.core_type = #tpu.core_type<tc>} {
    %0 = tpu.iota {dimensions = array<i32: 0>} : vector<32x64xi32>
    %c16_i32 = arith.constant 16 : i32
    %c0_i32 = arith.constant 0 : i32
    %1 = arith.cmpi eq, %c16_i32, %c0_i32 : i32
    %c1_i32 = arith.constant 1 : i32
    %2 = arith.select %1, %c1_i32, %c16_i32 : i32
    %3 = vector.broadcast %2 : i32 to vector<32x64xi32>
    %4 = arith.remsi %0, %3 : vector<32x64xi32>
    %c0_i32_0 = arith.constant 0 : i32
    %5 = vector.broadcast %c0_i32_0 : i32 to vector<32x64xi32>
    %6 = arith.cmpi ne, %4, %5 : vector<32x64xi32>
    %c0_i32_1 = arith.constant 0 : i32
    %7 = vector.broadcast %c0_i32_1 : i32 to vector<32x64xi32>
    %8 = arith.cmpi slt, %4, %7 : vector<32x64xi32>
    %c0_i32_2 = arith.constant 0 : i32
    %9 = arith.cmpi slt, %2, %c0_i32_2 : i32
    %10 = vector.broadcast %9 : i1 to vector<32x64xi1>
    %11 = vector.broadcast %10 : vector<32x64xi1> to vector<32x64xi1>
    %12 = arith.xori %8, %11 : vector<32x64xi1>
    %13 = arith.andi %12, %6 : vector<32x64xi1>
    %14 = vector.broadcast %2 : i32 to vector<32x64xi32>
    %15 = arith.addi %4, %14 : vector<32x64xi32>
    %16 = arith.select %13, %15, %4 : vector<32x64xi1>, vector<32x64xi32>
    %c1_i32_3 = arith.constant 1 : i32
    %17 = vector.broadcast %c1_i32_3 : i32 to vector<32x64xi32>
    %18 = arith.cmpi sge, %16, %17 : vector<32x64xi32>
    %c15_i32 = arith.constant 15 : i32
    %19 = vector.broadcast %c15_i32 : i32 to vector<32x64xi32>
    %20 = arith.cmpi slt, %16, %19 : vector<32x64xi32>
    %21 = tpu.iota {dimensions = array<i32: 0>} : vector<32x128xi32>
    %c16_i32_4 = arith.constant 16 : i32
    %c0_i32_5 = arith.constant 0 : i32
    %22 = arith.cmpi eq, %c16_i32_4, %c0_i32_5 : i32
    %c1_i32_6 = arith.constant 1 : i32
    %23 = arith.select %22, %c1_i32_6, %c16_i32_4 : i32
    %24 = vector.broadcast %23 : i32 to vector<32x128xi32>
    %25 = arith.remsi %21, %24 : vector<32x128xi32>
    %c0_i32_7 = arith.constant 0 : i32
    %26 = vector.broadcast %c0_i32_7 : i32 to vector<32x128xi32>
    %27 = arith.cmpi ne, %25, %26 : vector<32x128xi32>
    %c0_i32_8 = arith.constant 0 : i32
    %28 = vector.broadcast %c0_i32_8 : i32 to vector<32x128xi32>
    %29 = arith.cmpi slt, %25, %28 : vector<32x128xi32>
    %c0_i32_9 = arith.constant 0 : i32
    %30 = arith.cmpi slt, %23, %c0_i32_9 : i32
    %31 = vector.broadcast %30 : i1 to vector<32x128xi1>
    %32 = vector.broadcast %31 : vector<32x128xi1> to vector<32x128xi1>
    %33 = arith.xori %29, %32 : vector<32x128xi1>
    %34 = arith.andi %33, %27 : vector<32x128xi1>
    %35 = vector.broadcast %23 : i32 to vector<32x128xi32>
    %36 = arith.addi %25, %35 : vector<32x128xi32>
    %37 = arith.select %34, %36, %25 : vector<32x128xi1>, vector<32x128xi32>
    %c1_i32_10 = arith.constant 1 : i32
    %38 = vector.broadcast %c1_i32_10 : i32 to vector<32x128xi32>
    %39 = arith.cmpi sge, %37, %38 : vector<32x128xi32>
    %c15_i32_11 = arith.constant 15 : i32
    %40 = vector.broadcast %c15_i32_11 : i32 to vector<32x128xi32>
    %41 = arith.cmpi slt, %37, %40 : vector<32x128xi32>
    %c0 = arith.constant 0 : index
    %c0_12 = arith.constant 0 : index
    %42 = vector.load %arg0[%c0, %c0_12] : memref<32x64xf32, #tpu.memory_space<vmem>>, vector<32x64xf32>
    %43 = arith.truncf %42 : vector<32x64xf32> to vector<32x64xbf16>
    %cst = arith.constant 0.000000e+00 : bf16
    %44 = vector.broadcast %cst : bf16 to vector<32x4xbf16>
    %45 = vector.extract_strided_slice %43 {offsets = [0, 0], sizes = [32, 60], strides = [1, 1]} : vector<32x64xbf16> to vector<32x60xbf16>
    %46 = tpu.concatenate %44, %45 in 1 : vector<32x4xbf16>, vector<32x60xbf16> -> vector<32x64xbf16>
    %cst_13 = arith.constant 0.000000e+00 : bf16
    %47 = vector.broadcast %cst_13 : bf16 to vector<1x64xbf16>
    %48 = vector.extract_strided_slice %46 {offsets = [0, 0], sizes = [31, 64], strides = [1, 1]} : vector<32x64xbf16> to vector<31x64xbf16>
    %49 = tpu.concatenate %47, %48 in 0 : vector<1x64xbf16>, vector<31x64xbf16> -> vector<32x64xbf16>
    %cst_14 = arith.constant 0.000000e+00 : bf16
    %50 = vector.broadcast %cst_14 : bf16 to vector<32x64xbf16>
    %51 = arith.select %18, %49, %50 : vector<32x64xi1>, vector<32x64xbf16>
    %cst_15 = arith.constant 0.000000e+00 : bf16
    %52 = vector.broadcast %cst_15 : bf16 to vector<1x64xbf16>
    %53 = vector.extract_strided_slice %43 {offsets = [0, 0], sizes = [31, 64], strides = [1, 1]} : vector<32x64xbf16> to vector<31x64xbf16>
    %54 = tpu.concatenate %52, %53 in 0 : vector<1x64xbf16>, vector<31x64xbf16> -> vector<32x64xbf16>
    %cst_16 = arith.constant 0.000000e+00 : bf16
    %55 = vector.broadcast %cst_16 : bf16 to vector<32x64xbf16>
    %56 = arith.select %18, %54, %55 : vector<32x64xi1>, vector<32x64xbf16>
    %57 = vector.extract_strided_slice %43 {offsets = [0, 4], sizes = [32, 60], strides = [1, 1]} : vector<32x64xbf16> to vector<32x60xbf16>
    %cst_17 = arith.constant 0.000000e+00 : bf16
    %58 = vector.broadcast %cst_17 : bf16 to vector<32x4xbf16>
    %59 = tpu.concatenate %57, %58 in 1 : vector<32x60xbf16>, vector<32x4xbf16> -> vector<32x64xbf16>
    %cst_18 = arith.constant 0.000000e+00 : bf16
    %60 = vector.broadcast %cst_18 : bf16 to vector<1x64xbf16>
    %61 = vector.extract_strided_slice %59 {offsets = [0, 0], sizes = [31, 64], strides = [1, 1]} : vector<32x64xbf16> to vector<31x64xbf16>
    %62 = tpu.concatenate %60, %61 in 0 : vector<1x64xbf16>, vector<31x64xbf16> -> vector<32x64xbf16>
    %cst_19 = arith.constant 0.000000e+00 : bf16
    %63 = vector.broadcast %cst_19 : bf16 to vector<32x64xbf16>
    %64 = arith.select %18, %62, %63 : vector<32x64xi1>, vector<32x64xbf16>
    %cst_20 = arith.constant 0.000000e+00 : bf16
    %65 = vector.broadcast %cst_20 : bf16 to vector<32x4xbf16>
    %66 = vector.extract_strided_slice %43 {offsets = [0, 0], sizes = [32, 60], strides = [1, 1]} : vector<32x64xbf16> to vector<32x60xbf16>
    %67 = tpu.concatenate %65, %66 in 1 : vector<32x4xbf16>, vector<32x60xbf16> -> vector<32x64xbf16>
    %68 = vector.extract_strided_slice %43 {offsets = [0, 4], sizes = [32, 60], strides = [1, 1]} : vector<32x64xbf16> to vector<32x60xbf16>
    %cst_21 = arith.constant 0.000000e+00 : bf16
    %69 = vector.broadcast %cst_21 : bf16 to vector<32x4xbf16>
    %70 = tpu.concatenate %68, %69 in 1 : vector<32x60xbf16>, vector<32x4xbf16> -> vector<32x64xbf16>
    %cst_22 = arith.constant 0.000000e+00 : bf16
    %71 = vector.broadcast %cst_22 : bf16 to vector<32x4xbf16>
    %72 = vector.extract_strided_slice %43 {offsets = [0, 0], sizes = [32, 60], strides = [1, 1]} : vector<32x64xbf16> to vector<32x60xbf16>
    %73 = tpu.concatenate %71, %72 in 1 : vector<32x4xbf16>, vector<32x60xbf16> -> vector<32x64xbf16>
    %74 = vector.extract_strided_slice %73 {offsets = [1, 0], sizes = [31, 64], strides = [1, 1]} : vector<32x64xbf16> to vector<31x64xbf16>
    %cst_23 = arith.constant 0.000000e+00 : bf16
    %75 = vector.broadcast %cst_23 : bf16 to vector<1x64xbf16>
    %76 = tpu.concatenate %74, %75 in 0 : vector<31x64xbf16>, vector<1x64xbf16> -> vector<32x64xbf16>
    %cst_24 = arith.constant 0.000000e+00 : bf16
    %77 = vector.broadcast %cst_24 : bf16 to vector<32x64xbf16>
    %78 = arith.select %20, %76, %77 : vector<32x64xi1>, vector<32x64xbf16>
    %79 = vector.extract_strided_slice %43 {offsets = [1, 0], sizes = [31, 64], strides = [1, 1]} : vector<32x64xbf16> to vector<31x64xbf16>
    %cst_25 = arith.constant 0.000000e+00 : bf16
    %80 = vector.broadcast %cst_25 : bf16 to vector<1x64xbf16>
    %81 = tpu.concatenate %79, %80 in 0 : vector<31x64xbf16>, vector<1x64xbf16> -> vector<32x64xbf16>
    %cst_26 = arith.constant 0.000000e+00 : bf16
    %82 = vector.broadcast %cst_26 : bf16 to vector<32x64xbf16>
    %83 = arith.select %20, %81, %82 : vector<32x64xi1>, vector<32x64xbf16>
    %84 = vector.extract_strided_slice %43 {offsets = [0, 4], sizes = [32, 60], strides = [1, 1]} : vector<32x64xbf16> to vector<32x60xbf16>
    %cst_27 = arith.constant 0.000000e+00 : bf16
    %85 = vector.broadcast %cst_27 : bf16 to vector<32x4xbf16>
    %86 = tpu.concatenate %84, %85 in 1 : vector<32x60xbf16>, vector<32x4xbf16> -> vector<32x64xbf16>
    %87 = vector.extract_strided_slice %86 {offsets = [1, 0], sizes = [31, 64], strides = [1, 1]} : vector<32x64xbf16> to vector<31x64xbf16>
    %cst_28 = arith.constant 0.000000e+00 : bf16
    %88 = vector.broadcast %cst_28 : bf16 to vector<1x64xbf16>
    %89 = tpu.concatenate %87, %88 in 0 : vector<31x64xbf16>, vector<1x64xbf16> -> vector<32x64xbf16>
    %cst_29 = arith.constant 0.000000e+00 : bf16
    %90 = vector.broadcast %cst_29 : bf16 to vector<32x64xbf16>
    %91 = arith.select %20, %89, %90 : vector<32x64xi1>, vector<32x64xbf16>
    %92 = tpu.concatenate %51, %56, %64, %67, %43, %70, %78, %83, %91 in 1 : vector<32x64xbf16>, vector<32x64xbf16>, vector<32x64xbf16>, vector<32x64xbf16>, vector<32x64xbf16>, vector<32x64xbf16>, vector<32x64xbf16>, vector<32x64xbf16>, vector<32x64xbf16> -> vector<32x576xbf16>
    %c0_30 = arith.constant 0 : index
    %c0_31 = arith.constant 0 : index
    %93 = vector.load %arg1[%c0_30, %c0_31] : memref<576x128xbf16, #tpu.memory_space<vmem>>, vector<576x128xbf16>
    %cst_32 = arith.constant dense<0.000000e+00> : vector<32x128xf32>
    %94 = tpu.matmul %92, %93, %cst_32 {dimension_numbers = #tpu.dot_dimension_numbers<[1], [0], [0], [1], [0, 0, 1, 1], [], []>} : vector<32x576xbf16>, vector<576x128xbf16>, vector<32x128xf32> -> vector<32x128xf32>
    %c0_33 = arith.constant 0 : index
    %c0_34 = arith.constant 0 : index
    %c0_35 = arith.constant 0 : index
    %95 = vector.load %arg5[%c0_33, %c0_34, %c0_35] : memref<4x3x128xf32, #tpu.memory_space<vmem>>, vector<1x3x128xf32>
    %96 = vector.shape_cast %95 : vector<1x3x128xf32> to vector<3x128xf32>
    %97 = vector.extract_strided_slice %96 {offsets = [0, 0], sizes = [1, 128], strides = [1, 1]} : vector<3x128xf32> to vector<1x128xf32>
    %98 = vector.broadcast %97 : vector<1x128xf32> to vector<32x128xf32>
    %99 = arith.addf %94, %98 : vector<32x128xf32>
    %cst_36 = arith.constant 0.000000e+00 : f32
    %100 = vector.broadcast %cst_36 : f32 to vector<32x128xf32>
    %101 = arith.maximumf %99, %100 : vector<32x128xf32>
    %cst_37 = arith.constant dense<0.000000e+00> : vector<128xf32>
    %102 = vector.multi_reduction <add>, %101, %cst_37 [0] : vector<32x128xf32> to vector<128xf32>
    %103 = vector.shape_cast %102 : vector<128xf32> to vector<1x128xf32>
    %104 = arith.mulf %101, %101 : vector<32x128xf32>
    %cst_38 = arith.constant dense<0.000000e+00> : vector<128xf32>
    %105 = vector.multi_reduction <add>, %104, %cst_38 [0] : vector<32x128xf32> to vector<128xf32>
    %106 = vector.shape_cast %105 : vector<128xf32> to vector<1x128xf32>
    %cst_39 = arith.constant 0.000000e+00 : f32
    %107 = vector.broadcast %cst_39 : f32 to vector<6x128xf32>
    %108 = tpu.concatenate %103, %106, %107 in 0 : vector<1x128xf32>, vector<1x128xf32>, vector<6x128xf32> -> vector<8x128xf32>
    %c8_i32 = arith.constant 8 : i32
    %109 = tpu.dynamic_rotate %108 by %c8_i32 dim 1 : vector<8x128xf32>, i32 -> vector<8x128xf32>
    %110 = arith.addf %108, %109 : vector<8x128xf32>
    %c16_i32_40 = arith.constant 16 : i32
    %111 = tpu.dynamic_rotate %110 by %c16_i32_40 dim 1 : vector<8x128xf32>, i32 -> vector<8x128xf32>
    %112 = arith.addf %110, %111 : vector<8x128xf32>
    %c32_i32 = arith.constant 32 : i32
    %113 = tpu.dynamic_rotate %112 by %c32_i32 dim 1 : vector<8x128xf32>, i32 -> vector<8x128xf32>
    %114 = arith.addf %112, %113 : vector<8x128xf32>
    %c64_i32 = arith.constant 64 : i32
    %115 = tpu.dynamic_rotate %114 by %c64_i32 dim 1 : vector<8x128xf32>, i32 -> vector<8x128xf32>
    %116 = arith.addf %114, %115 : vector<8x128xf32>
    %117 = vector.extract_strided_slice %116 {offsets = [0, 0], sizes = [1, 128], strides = [1, 1]} : vector<8x128xf32> to vector<1x128xf32>
    %cst_41 = arith.constant 0.001953125 : f32
    %118 = vector.broadcast %cst_41 : f32 to vector<1x128xf32>
    %119 = arith.mulf %117, %118 : vector<1x128xf32>
    %120 = vector.extract_strided_slice %116 {offsets = [1, 0], sizes = [1, 128], strides = [1, 1]} : vector<8x128xf32> to vector<1x128xf32>
    %cst_42 = arith.constant 0.001953125 : f32
    %121 = vector.broadcast %cst_42 : f32 to vector<1x128xf32>
    %122 = arith.mulf %120, %121 : vector<1x128xf32>
    %123 = arith.mulf %119, %119 : vector<1x128xf32>
    %124 = arith.subf %122, %123 : vector<1x128xf32>
    %125 = vector.extract_strided_slice %96 {offsets = [1, 0], sizes = [1, 128], strides = [1, 1]} : vector<3x128xf32> to vector<1x128xf32>
    %cst_43 = arith.constant 9.99999974E-6 : f32
    %126 = vector.broadcast %cst_43 : f32 to vector<1x128xf32>
    %127 = arith.addf %124, %126 : vector<1x128xf32>
    %128 = math.rsqrt %127 : vector<1x128xf32>
    %129 = arith.mulf %125, %128 : vector<1x128xf32>
    %130 = vector.extract_strided_slice %96 {offsets = [2, 0], sizes = [1, 128], strides = [1, 1]} : vector<3x128xf32> to vector<1x128xf32>
    %131 = arith.mulf %119, %129 : vector<1x128xf32>
    %132 = arith.subf %130, %131 : vector<1x128xf32>
    %133 = vector.broadcast %129 : vector<1x128xf32> to vector<32x128xf32>
    %134 = arith.mulf %101, %133 : vector<32x128xf32>
    %135 = vector.broadcast %132 : vector<1x128xf32> to vector<32x128xf32>
    %136 = arith.addf %134, %135 : vector<32x128xf32>
    %137 = arith.truncf %136 : vector<32x128xf32> to vector<32x128xbf16>
    %cst_44 = arith.constant 0.000000e+00 : bf16
    %138 = vector.broadcast %cst_44 : bf16 to vector<32x8xbf16>
    %139 = vector.extract_strided_slice %137 {offsets = [0, 0], sizes = [32, 120], strides = [1, 1]} : vector<32x128xbf16> to vector<32x120xbf16>
    %140 = tpu.concatenate %138, %139 in 1 : vector<32x8xbf16>, vector<32x120xbf16> -> vector<32x128xbf16>
    %cst_45 = arith.constant 0.000000e+00 : bf16
    %141 = vector.broadcast %cst_45 : bf16 to vector<1x128xbf16>
    %142 = vector.extract_strided_slice %140 {offsets = [0, 0], sizes = [31, 128], strides = [1, 1]} : vector<32x128xbf16> to vector<31x128xbf16>
    %143 = tpu.concatenate %141, %142 in 0 : vector<1x128xbf16>, vector<31x128xbf16> -> vector<32x128xbf16>
    %cst_46 = arith.constant 0.000000e+00 : bf16
    %144 = vector.broadcast %cst_46 : bf16 to vector<32x128xbf16>
    %145 = arith.select %39, %143, %144 : vector<32x128xi1>, vector<32x128xbf16>
    %cst_47 = arith.constant 0.000000e+00 : bf16
    %146 = vector.broadcast %cst_47 : bf16 to vector<1x128xbf16>
    %147 = vector.extract_strided_slice %137 {offsets = [0, 0], sizes = [31, 128], strides = [1, 1]} : vector<32x128xbf16> to vector<31x128xbf16>
    %148 = tpu.concatenate %146, %147 in 0 : vector<1x128xbf16>, vector<31x128xbf16> -> vector<32x128xbf16>
    %cst_48 = arith.constant 0.000000e+00 : bf16
    %149 = vector.broadcast %cst_48 : bf16 to vector<32x128xbf16>
    %150 = arith.select %39, %148, %149 : vector<32x128xi1>, vector<32x128xbf16>
    %151 = vector.extract_strided_slice %137 {offsets = [0, 8], sizes = [32, 120], strides = [1, 1]} : vector<32x128xbf16> to vector<32x120xbf16>
    %cst_49 = arith.constant 0.000000e+00 : bf16
    %152 = vector.broadcast %cst_49 : bf16 to vector<32x8xbf16>
    %153 = tpu.concatenate %151, %152 in 1 : vector<32x120xbf16>, vector<32x8xbf16> -> vector<32x128xbf16>
    %cst_50 = arith.constant 0.000000e+00 : bf16
    %154 = vector.broadcast %cst_50 : bf16 to vector<1x128xbf16>
    %155 = vector.extract_strided_slice %153 {offsets = [0, 0], sizes = [31, 128], strides = [1, 1]} : vector<32x128xbf16> to vector<31x128xbf16>
    %156 = tpu.concatenate %154, %155 in 0 : vector<1x128xbf16>, vector<31x128xbf16> -> vector<32x128xbf16>
    %cst_51 = arith.constant 0.000000e+00 : bf16
    %157 = vector.broadcast %cst_51 : bf16 to vector<32x128xbf16>
    %158 = arith.select %39, %156, %157 : vector<32x128xi1>, vector<32x128xbf16>
    %cst_52 = arith.constant 0.000000e+00 : bf16
    %159 = vector.broadcast %cst_52 : bf16 to vector<32x8xbf16>
    %160 = vector.extract_strided_slice %137 {offsets = [0, 0], sizes = [32, 120], strides = [1, 1]} : vector<32x128xbf16> to vector<32x120xbf16>
    %161 = tpu.concatenate %159, %160 in 1 : vector<32x8xbf16>, vector<32x120xbf16> -> vector<32x128xbf16>
    %162 = vector.extract_strided_slice %137 {offsets = [0, 8], sizes = [32, 120], strides = [1, 1]} : vector<32x128xbf16> to vector<32x120xbf16>
    %cst_53 = arith.constant 0.000000e+00 : bf16
    %163 = vector.broadcast %cst_53 : bf16 to vector<32x8xbf16>
    %164 = tpu.concatenate %162, %163 in 1 : vector<32x120xbf16>, vector<32x8xbf16> -> vector<32x128xbf16>
    %cst_54 = arith.constant 0.000000e+00 : bf16
    %165 = vector.broadcast %cst_54 : bf16 to vector<32x8xbf16>
    %166 = vector.extract_strided_slice %137 {offsets = [0, 0], sizes = [32, 120], strides = [1, 1]} : vector<32x128xbf16> to vector<32x120xbf16>
    %167 = tpu.concatenate %165, %166 in 1 : vector<32x8xbf16>, vector<32x120xbf16> -> vector<32x128xbf16>
    %168 = vector.extract_strided_slice %167 {offsets = [1, 0], sizes = [31, 128], strides = [1, 1]} : vector<32x128xbf16> to vector<31x128xbf16>
    %cst_55 = arith.constant 0.000000e+00 : bf16
    %169 = vector.broadcast %cst_55 : bf16 to vector<1x128xbf16>
    %170 = tpu.concatenate %168, %169 in 0 : vector<31x128xbf16>, vector<1x128xbf16> -> vector<32x128xbf16>
    %cst_56 = arith.constant 0.000000e+00 : bf16
    %171 = vector.broadcast %cst_56 : bf16 to vector<32x128xbf16>
    %172 = arith.select %41, %170, %171 : vector<32x128xi1>, vector<32x128xbf16>
    %173 = vector.extract_strided_slice %137 {offsets = [1, 0], sizes = [31, 128], strides = [1, 1]} : vector<32x128xbf16> to vector<31x128xbf16>
    %cst_57 = arith.constant 0.000000e+00 : bf16
    %174 = vector.broadcast %cst_57 : bf16 to vector<1x128xbf16>
    %175 = tpu.concatenate %173, %174 in 0 : vector<31x128xbf16>, vector<1x128xbf16> -> vector<32x128xbf16>
    %cst_58 = arith.constant 0.000000e+00 : bf16
    %176 = vector.broadcast %cst_58 : bf16 to vector<32x128xbf16>
    %177 = arith.select %41, %175, %176 : vector<32x128xi1>, vector<32x128xbf16>
    %178 = vector.extract_strided_slice %137 {offsets = [0, 8], sizes = [32, 120], strides = [1, 1]} : vector<32x128xbf16> to vector<32x120xbf16>
    %cst_59 = arith.constant 0.000000e+00 : bf16
    %179 = vector.broadcast %cst_59 : bf16 to vector<32x8xbf16>
    %180 = tpu.concatenate %178, %179 in 1 : vector<32x120xbf16>, vector<32x8xbf16> -> vector<32x128xbf16>
    %181 = vector.extract_strided_slice %180 {offsets = [1, 0], sizes = [31, 128], strides = [1, 1]} : vector<32x128xbf16> to vector<31x128xbf16>
    %cst_60 = arith.constant 0.000000e+00 : bf16
    %182 = vector.broadcast %cst_60 : bf16 to vector<1x128xbf16>
    %183 = tpu.concatenate %181, %182 in 0 : vector<31x128xbf16>, vector<1x128xbf16> -> vector<32x128xbf16>
    %cst_61 = arith.constant 0.000000e+00 : bf16
    %184 = vector.broadcast %cst_61 : bf16 to vector<32x128xbf16>
    %185 = arith.select %41, %183, %184 : vector<32x128xi1>, vector<32x128xbf16>
    %186 = tpu.concatenate %145, %150, %158, %161, %137, %164, %172, %177, %185 in 1 : vector<32x128xbf16>, vector<32x128xbf16>, vector<32x128xbf16>, vector<32x128xbf16>, vector<32x128xbf16>, vector<32x128xbf16>, vector<32x128xbf16>, vector<32x128xbf16>, vector<32x128xbf16> -> vector<32x1152xbf16>
    %c0_62 = arith.constant 0 : index
    %c0_63 = arith.constant 0 : index
    %187 = vector.load %arg2[%c0_62, %c0_63] : memref<1152x128xbf16, #tpu.memory_space<vmem>>, vector<1152x128xbf16>
    %cst_64 = arith.constant dense<0.000000e+00> : vector<32x128xf32>
    %188 = tpu.matmul %186, %187, %cst_64 {dimension_numbers = #tpu.dot_dimension_numbers<[1], [0], [0], [1], [0, 0, 1, 1], [], []>} : vector<32x1152xbf16>, vector<1152x128xbf16>, vector<32x128xf32> -> vector<32x128xf32>
    %c1 = arith.constant 1 : index
    %c0_65 = arith.constant 0 : index
    %c0_66 = arith.constant 0 : index
    %189 = vector.load %arg5[%c1, %c0_65, %c0_66] : memref<4x3x128xf32, #tpu.memory_space<vmem>>, vector<1x3x128xf32>
    %190 = vector.shape_cast %189 : vector<1x3x128xf32> to vector<3x128xf32>
    %191 = vector.extract_strided_slice %190 {offsets = [0, 0], sizes = [1, 128], strides = [1, 1]} : vector<3x128xf32> to vector<1x128xf32>
    %192 = vector.broadcast %191 : vector<1x128xf32> to vector<32x128xf32>
    %193 = arith.addf %188, %192 : vector<32x128xf32>
    %cst_67 = arith.constant 0.000000e+00 : f32
    %194 = vector.broadcast %cst_67 : f32 to vector<32x128xf32>
    %195 = arith.maximumf %193, %194 : vector<32x128xf32>
    %cst_68 = arith.constant dense<0.000000e+00> : vector<128xf32>
    %196 = vector.multi_reduction <add>, %195, %cst_68 [0] : vector<32x128xf32> to vector<128xf32>
    %197 = vector.shape_cast %196 : vector<128xf32> to vector<1x128xf32>
    %198 = arith.mulf %195, %195 : vector<32x128xf32>
    %cst_69 = arith.constant dense<0.000000e+00> : vector<128xf32>
    %199 = vector.multi_reduction <add>, %198, %cst_69 [0] : vector<32x128xf32> to vector<128xf32>
    %200 = vector.shape_cast %199 : vector<128xf32> to vector<1x128xf32>
    %cst_70 = arith.constant 0.000000e+00 : f32
    %201 = vector.broadcast %cst_70 : f32 to vector<6x128xf32>
    %202 = tpu.concatenate %197, %200, %201 in 0 : vector<1x128xf32>, vector<1x128xf32>, vector<6x128xf32> -> vector<8x128xf32>
    %c8_i32_71 = arith.constant 8 : i32
    %203 = tpu.dynamic_rotate %202 by %c8_i32_71 dim 1 : vector<8x128xf32>, i32 -> vector<8x128xf32>
    %204 = arith.addf %202, %203 : vector<8x128xf32>
    %c16_i32_72 = arith.constant 16 : i32
    %205 = tpu.dynamic_rotate %204 by %c16_i32_72 dim 1 : vector<8x128xf32>, i32 -> vector<8x128xf32>
    %206 = arith.addf %204, %205 : vector<8x128xf32>
    %c32_i32_73 = arith.constant 32 : i32
    %207 = tpu.dynamic_rotate %206 by %c32_i32_73 dim 1 : vector<8x128xf32>, i32 -> vector<8x128xf32>
    %208 = arith.addf %206, %207 : vector<8x128xf32>
    %c64_i32_74 = arith.constant 64 : i32
    %209 = tpu.dynamic_rotate %208 by %c64_i32_74 dim 1 : vector<8x128xf32>, i32 -> vector<8x128xf32>
    %210 = arith.addf %208, %209 : vector<8x128xf32>
    %211 = vector.extract_strided_slice %210 {offsets = [0, 0], sizes = [1, 128], strides = [1, 1]} : vector<8x128xf32> to vector<1x128xf32>
    %cst_75 = arith.constant 0.001953125 : f32
    %212 = vector.broadcast %cst_75 : f32 to vector<1x128xf32>
    %213 = arith.mulf %211, %212 : vector<1x128xf32>
    %214 = vector.extract_strided_slice %210 {offsets = [1, 0], sizes = [1, 128], strides = [1, 1]} : vector<8x128xf32> to vector<1x128xf32>
    %cst_76 = arith.constant 0.001953125 : f32
    %215 = vector.broadcast %cst_76 : f32 to vector<1x128xf32>
    %216 = arith.mulf %214, %215 : vector<1x128xf32>
    %217 = arith.mulf %213, %213 : vector<1x128xf32>
    %218 = arith.subf %216, %217 : vector<1x128xf32>
    %219 = vector.extract_strided_slice %190 {offsets = [1, 0], sizes = [1, 128], strides = [1, 1]} : vector<3x128xf32> to vector<1x128xf32>
    %cst_77 = arith.constant 9.99999974E-6 : f32
    %220 = vector.broadcast %cst_77 : f32 to vector<1x128xf32>
    %221 = arith.addf %218, %220 : vector<1x128xf32>
    %222 = math.rsqrt %221 : vector<1x128xf32>
    %223 = arith.mulf %219, %222 : vector<1x128xf32>
    %224 = vector.extract_strided_slice %190 {offsets = [2, 0], sizes = [1, 128], strides = [1, 1]} : vector<3x128xf32> to vector<1x128xf32>
    %225 = arith.mulf %213, %223 : vector<1x128xf32>
    %226 = arith.subf %224, %225 : vector<1x128xf32>
    %227 = vector.broadcast %223 : vector<1x128xf32> to vector<32x128xf32>
    %228 = arith.mulf %195, %227 : vector<32x128xf32>
    %229 = vector.broadcast %226 : vector<1x128xf32> to vector<32x128xf32>
    %230 = arith.addf %228, %229 : vector<32x128xf32>
    %231 = arith.truncf %230 : vector<32x128xf32> to vector<32x128xbf16>
    %cst_78 = arith.constant 0.000000e+00 : bf16
    %232 = vector.broadcast %cst_78 : bf16 to vector<32x8xbf16>
    %233 = vector.extract_strided_slice %231 {offsets = [0, 0], sizes = [32, 120], strides = [1, 1]} : vector<32x128xbf16> to vector<32x120xbf16>
    %234 = tpu.concatenate %232, %233 in 1 : vector<32x8xbf16>, vector<32x120xbf16> -> vector<32x128xbf16>
    %cst_79 = arith.constant 0.000000e+00 : bf16
    %235 = vector.broadcast %cst_79 : bf16 to vector<1x128xbf16>
    %236 = vector.extract_strided_slice %234 {offsets = [0, 0], sizes = [31, 128], strides = [1, 1]} : vector<32x128xbf16> to vector<31x128xbf16>
    %237 = tpu.concatenate %235, %236 in 0 : vector<1x128xbf16>, vector<31x128xbf16> -> vector<32x128xbf16>
    %cst_80 = arith.constant 0.000000e+00 : bf16
    %238 = vector.broadcast %cst_80 : bf16 to vector<32x128xbf16>
    %239 = arith.select %39, %237, %238 : vector<32x128xi1>, vector<32x128xbf16>
    %cst_81 = arith.constant 0.000000e+00 : bf16
    %240 = vector.broadcast %cst_81 : bf16 to vector<1x128xbf16>
    %241 = vector.extract_strided_slice %231 {offsets = [0, 0], sizes = [31, 128], strides = [1, 1]} : vector<32x128xbf16> to vector<31x128xbf16>
    %242 = tpu.concatenate %240, %241 in 0 : vector<1x128xbf16>, vector<31x128xbf16> -> vector<32x128xbf16>
    %cst_82 = arith.constant 0.000000e+00 : bf16
    %243 = vector.broadcast %cst_82 : bf16 to vector<32x128xbf16>
    %244 = arith.select %39, %242, %243 : vector<32x128xi1>, vector<32x128xbf16>
    %245 = vector.extract_strided_slice %231 {offsets = [0, 8], sizes = [32, 120], strides = [1, 1]} : vector<32x128xbf16> to vector<32x120xbf16>
    %cst_83 = arith.constant 0.000000e+00 : bf16
    %246 = vector.broadcast %cst_83 : bf16 to vector<32x8xbf16>
    %247 = tpu.concatenate %245, %246 in 1 : vector<32x120xbf16>, vector<32x8xbf16> -> vector<32x128xbf16>
    %cst_84 = arith.constant 0.000000e+00 : bf16
    %248 = vector.broadcast %cst_84 : bf16 to vector<1x128xbf16>
    %249 = vector.extract_strided_slice %247 {offsets = [0, 0], sizes = [31, 128], strides = [1, 1]} : vector<32x128xbf16> to vector<31x128xbf16>
    %250 = tpu.concatenate %248, %249 in 0 : vector<1x128xbf16>, vector<31x128xbf16> -> vector<32x128xbf16>
    %cst_85 = arith.constant 0.000000e+00 : bf16
    %251 = vector.broadcast %cst_85 : bf16 to vector<32x128xbf16>
    %252 = arith.select %39, %250, %251 : vector<32x128xi1>, vector<32x128xbf16>
    %cst_86 = arith.constant 0.000000e+00 : bf16
    %253 = vector.broadcast %cst_86 : bf16 to vector<32x8xbf16>
    %254 = vector.extract_strided_slice %231 {offsets = [0, 0], sizes = [32, 120], strides = [1, 1]} : vector<32x128xbf16> to vector<32x120xbf16>
    %255 = tpu.concatenate %253, %254 in 1 : vector<32x8xbf16>, vector<32x120xbf16> -> vector<32x128xbf16>
    %256 = vector.extract_strided_slice %231 {offsets = [0, 8], sizes = [32, 120], strides = [1, 1]} : vector<32x128xbf16> to vector<32x120xbf16>
    %cst_87 = arith.constant 0.000000e+00 : bf16
    %257 = vector.broadcast %cst_87 : bf16 to vector<32x8xbf16>
    %258 = tpu.concatenate %256, %257 in 1 : vector<32x120xbf16>, vector<32x8xbf16> -> vector<32x128xbf16>
    %cst_88 = arith.constant 0.000000e+00 : bf16
    %259 = vector.broadcast %cst_88 : bf16 to vector<32x8xbf16>
    %260 = vector.extract_strided_slice %231 {offsets = [0, 0], sizes = [32, 120], strides = [1, 1]} : vector<32x128xbf16> to vector<32x120xbf16>
    %261 = tpu.concatenate %259, %260 in 1 : vector<32x8xbf16>, vector<32x120xbf16> -> vector<32x128xbf16>
    %262 = vector.extract_strided_slice %261 {offsets = [1, 0], sizes = [31, 128], strides = [1, 1]} : vector<32x128xbf16> to vector<31x128xbf16>
    %cst_89 = arith.constant 0.000000e+00 : bf16
    %263 = vector.broadcast %cst_89 : bf16 to vector<1x128xbf16>
    %264 = tpu.concatenate %262, %263 in 0 : vector<31x128xbf16>, vector<1x128xbf16> -> vector<32x128xbf16>
    %cst_90 = arith.constant 0.000000e+00 : bf16
    %265 = vector.broadcast %cst_90 : bf16 to vector<32x128xbf16>
    %266 = arith.select %41, %264, %265 : vector<32x128xi1>, vector<32x128xbf16>
    %267 = vector.extract_strided_slice %231 {offsets = [1, 0], sizes = [31, 128], strides = [1, 1]} : vector<32x128xbf16> to vector<31x128xbf16>
    %cst_91 = arith.constant 0.000000e+00 : bf16
    %268 = vector.broadcast %cst_91 : bf16 to vector<1x128xbf16>
    %269 = tpu.concatenate %267, %268 in 0 : vector<31x128xbf16>, vector<1x128xbf16> -> vector<32x128xbf16>
    %cst_92 = arith.constant 0.000000e+00 : bf16
    %270 = vector.broadcast %cst_92 : bf16 to vector<32x128xbf16>
    %271 = arith.select %41, %269, %270 : vector<32x128xi1>, vector<32x128xbf16>
    %272 = vector.extract_strided_slice %231 {offsets = [0, 8], sizes = [32, 120], strides = [1, 1]} : vector<32x128xbf16> to vector<32x120xbf16>
    %cst_93 = arith.constant 0.000000e+00 : bf16
    %273 = vector.broadcast %cst_93 : bf16 to vector<32x8xbf16>
    %274 = tpu.concatenate %272, %273 in 1 : vector<32x120xbf16>, vector<32x8xbf16> -> vector<32x128xbf16>
    %275 = vector.extract_strided_slice %274 {offsets = [1, 0], sizes = [31, 128], strides = [1, 1]} : vector<32x128xbf16> to vector<31x128xbf16>
    %cst_94 = arith.constant 0.000000e+00 : bf16
    %276 = vector.broadcast %cst_94 : bf16 to vector<1x128xbf16>
    %277 = tpu.concatenate %275, %276 in 0 : vector<31x128xbf16>, vector<1x128xbf16> -> vector<32x128xbf16>
    %cst_95 = arith.constant 0.000000e+00 : bf16
    %278 = vector.broadcast %cst_95 : bf16 to vector<32x128xbf16>
    %279 = arith.select %41, %277, %278 : vector<32x128xi1>, vector<32x128xbf16>
    %280 = tpu.concatenate %239, %244, %252, %255, %231, %258, %266, %271, %279 in 1 : vector<32x128xbf16>, vector<32x128xbf16>, vector<32x128xbf16>, vector<32x128xbf16>, vector<32x128xbf16>, vector<32x128xbf16>, vector<32x128xbf16>, vector<32x128xbf16>, vector<32x128xbf16> -> vector<32x1152xbf16>
    %c0_96 = arith.constant 0 : index
    %c0_97 = arith.constant 0 : index
    %281 = vector.load %arg3[%c0_96, %c0_97] : memref<1152x128xbf16, #tpu.memory_space<vmem>>, vector<1152x128xbf16>
    %cst_98 = arith.constant dense<0.000000e+00> : vector<32x128xf32>
    %282 = tpu.matmul %280, %281, %cst_98 {dimension_numbers = #tpu.dot_dimension_numbers<[1], [0], [0], [1], [0, 0, 1, 1], [], []>} : vector<32x1152xbf16>, vector<1152x128xbf16>, vector<32x128xf32> -> vector<32x128xf32>
    %c2 = arith.constant 2 : index
    %c0_99 = arith.constant 0 : index
    %c0_100 = arith.constant 0 : index
    %283 = vector.load %arg5[%c2, %c0_99, %c0_100] : memref<4x3x128xf32, #tpu.memory_space<vmem>>, vector<1x3x128xf32>
    %284 = vector.shape_cast %283 : vector<1x3x128xf32> to vector<3x128xf32>
    %285 = vector.extract_strided_slice %284 {offsets = [0, 0], sizes = [1, 128], strides = [1, 1]} : vector<3x128xf32> to vector<1x128xf32>
    %286 = vector.broadcast %285 : vector<1x128xf32> to vector<32x128xf32>
    %287 = arith.addf %282, %286 : vector<32x128xf32>
    %cst_101 = arith.constant 0.000000e+00 : f32
    %288 = vector.broadcast %cst_101 : f32 to vector<32x128xf32>
    %289 = arith.maximumf %287, %288 : vector<32x128xf32>
    %cst_102 = arith.constant dense<0.000000e+00> : vector<128xf32>
    %290 = vector.multi_reduction <add>, %289, %cst_102 [0] : vector<32x128xf32> to vector<128xf32>
    %291 = vector.shape_cast %290 : vector<128xf32> to vector<1x128xf32>
    %292 = arith.mulf %289, %289 : vector<32x128xf32>
    %cst_103 = arith.constant dense<0.000000e+00> : vector<128xf32>
    %293 = vector.multi_reduction <add>, %292, %cst_103 [0] : vector<32x128xf32> to vector<128xf32>
    %294 = vector.shape_cast %293 : vector<128xf32> to vector<1x128xf32>
    %cst_104 = arith.constant 0.000000e+00 : f32
    %295 = vector.broadcast %cst_104 : f32 to vector<6x128xf32>
    %296 = tpu.concatenate %291, %294, %295 in 0 : vector<1x128xf32>, vector<1x128xf32>, vector<6x128xf32> -> vector<8x128xf32>
    %c8_i32_105 = arith.constant 8 : i32
    %297 = tpu.dynamic_rotate %296 by %c8_i32_105 dim 1 : vector<8x128xf32>, i32 -> vector<8x128xf32>
    %298 = arith.addf %296, %297 : vector<8x128xf32>
    %c16_i32_106 = arith.constant 16 : i32
    %299 = tpu.dynamic_rotate %298 by %c16_i32_106 dim 1 : vector<8x128xf32>, i32 -> vector<8x128xf32>
    %300 = arith.addf %298, %299 : vector<8x128xf32>
    %c32_i32_107 = arith.constant 32 : i32
    %301 = tpu.dynamic_rotate %300 by %c32_i32_107 dim 1 : vector<8x128xf32>, i32 -> vector<8x128xf32>
    %302 = arith.addf %300, %301 : vector<8x128xf32>
    %c64_i32_108 = arith.constant 64 : i32
    %303 = tpu.dynamic_rotate %302 by %c64_i32_108 dim 1 : vector<8x128xf32>, i32 -> vector<8x128xf32>
    %304 = arith.addf %302, %303 : vector<8x128xf32>
    %305 = vector.extract_strided_slice %304 {offsets = [0, 0], sizes = [1, 128], strides = [1, 1]} : vector<8x128xf32> to vector<1x128xf32>
    %cst_109 = arith.constant 0.001953125 : f32
    %306 = vector.broadcast %cst_109 : f32 to vector<1x128xf32>
    %307 = arith.mulf %305, %306 : vector<1x128xf32>
    %308 = vector.extract_strided_slice %304 {offsets = [1, 0], sizes = [1, 128], strides = [1, 1]} : vector<8x128xf32> to vector<1x128xf32>
    %cst_110 = arith.constant 0.001953125 : f32
    %309 = vector.broadcast %cst_110 : f32 to vector<1x128xf32>
    %310 = arith.mulf %308, %309 : vector<1x128xf32>
    %311 = arith.mulf %307, %307 : vector<1x128xf32>
    %312 = arith.subf %310, %311 : vector<1x128xf32>
    %313 = vector.extract_strided_slice %284 {offsets = [1, 0], sizes = [1, 128], strides = [1, 1]} : vector<3x128xf32> to vector<1x128xf32>
    %cst_111 = arith.constant 9.99999974E-6 : f32
    %314 = vector.broadcast %cst_111 : f32 to vector<1x128xf32>
    %315 = arith.addf %312, %314 : vector<1x128xf32>
    %316 = math.rsqrt %315 : vector<1x128xf32>
    %317 = arith.mulf %313, %316 : vector<1x128xf32>
    %318 = vector.extract_strided_slice %284 {offsets = [2, 0], sizes = [1, 128], strides = [1, 1]} : vector<3x128xf32> to vector<1x128xf32>
    %319 = arith.mulf %307, %317 : vector<1x128xf32>
    %320 = arith.subf %318, %319 : vector<1x128xf32>
    %321 = vector.broadcast %317 : vector<1x128xf32> to vector<32x128xf32>
    %322 = arith.mulf %289, %321 : vector<32x128xf32>
    %323 = vector.broadcast %320 : vector<1x128xf32> to vector<32x128xf32>
    %324 = arith.addf %322, %323 : vector<32x128xf32>
    %325 = arith.truncf %324 : vector<32x128xf32> to vector<32x128xbf16>
    %c0_112 = arith.constant 0 : index
    %c0_113 = arith.constant 0 : index
    %326 = vector.load %arg4[%c0_112, %c0_113] : memref<128x128xbf16, #tpu.memory_space<vmem>>, vector<128x128xbf16>
    %cst_114 = arith.constant dense<0.000000e+00> : vector<32x128xf32>
    %327 = tpu.matmul %325, %326, %cst_114 {dimension_numbers = #tpu.dot_dimension_numbers<[1], [0], [0], [1], [0, 0, 1, 1], [], []>} : vector<32x128xbf16>, vector<128x128xbf16>, vector<32x128xf32> -> vector<32x128xf32>
    %c3 = arith.constant 3 : index
    %c0_115 = arith.constant 0 : index
    %c0_116 = arith.constant 0 : index
    %328 = vector.load %arg5[%c3, %c0_115, %c0_116] : memref<4x3x128xf32, #tpu.memory_space<vmem>>, vector<1x3x128xf32>
    %329 = vector.shape_cast %328 : vector<1x3x128xf32> to vector<3x128xf32>
    %cst_117 = arith.constant dense<0.000000e+00> : vector<128xf32>
    %330 = vector.multi_reduction <add>, %327, %cst_117 [0] : vector<32x128xf32> to vector<128xf32>
    %331 = vector.shape_cast %330 : vector<128xf32> to vector<1x128xf32>
    %332 = arith.mulf %327, %327 : vector<32x128xf32>
    %cst_118 = arith.constant dense<0.000000e+00> : vector<128xf32>
    %333 = vector.multi_reduction <add>, %332, %cst_118 [0] : vector<32x128xf32> to vector<128xf32>
    %334 = vector.shape_cast %333 : vector<128xf32> to vector<1x128xf32>
    %cst_119 = arith.constant 0.000000e+00 : f32
    %335 = vector.broadcast %cst_119 : f32 to vector<6x128xf32>
    %336 = tpu.concatenate %331, %334, %335 in 0 : vector<1x128xf32>, vector<1x128xf32>, vector<6x128xf32> -> vector<8x128xf32>
    %c8_i32_120 = arith.constant 8 : i32
    %337 = tpu.dynamic_rotate %336 by %c8_i32_120 dim 1 : vector<8x128xf32>, i32 -> vector<8x128xf32>
    %338 = arith.addf %336, %337 : vector<8x128xf32>
    %c16_i32_121 = arith.constant 16 : i32
    %339 = tpu.dynamic_rotate %338 by %c16_i32_121 dim 1 : vector<8x128xf32>, i32 -> vector<8x128xf32>
    %340 = arith.addf %338, %339 : vector<8x128xf32>
    %c32_i32_122 = arith.constant 32 : i32
    %341 = tpu.dynamic_rotate %340 by %c32_i32_122 dim 1 : vector<8x128xf32>, i32 -> vector<8x128xf32>
    %342 = arith.addf %340, %341 : vector<8x128xf32>
    %c64_i32_123 = arith.constant 64 : i32
    %343 = tpu.dynamic_rotate %342 by %c64_i32_123 dim 1 : vector<8x128xf32>, i32 -> vector<8x128xf32>
    %344 = arith.addf %342, %343 : vector<8x128xf32>
    %345 = vector.extract_strided_slice %344 {offsets = [0, 0], sizes = [1, 128], strides = [1, 1]} : vector<8x128xf32> to vector<1x128xf32>
    %cst_124 = arith.constant 0.001953125 : f32
    %346 = vector.broadcast %cst_124 : f32 to vector<1x128xf32>
    %347 = arith.mulf %345, %346 : vector<1x128xf32>
    %348 = vector.extract_strided_slice %344 {offsets = [1, 0], sizes = [1, 128], strides = [1, 1]} : vector<8x128xf32> to vector<1x128xf32>
    %cst_125 = arith.constant 0.001953125 : f32
    %349 = vector.broadcast %cst_125 : f32 to vector<1x128xf32>
    %350 = arith.mulf %348, %349 : vector<1x128xf32>
    %351 = arith.mulf %347, %347 : vector<1x128xf32>
    %352 = arith.subf %350, %351 : vector<1x128xf32>
    %353 = vector.extract_strided_slice %329 {offsets = [1, 0], sizes = [1, 128], strides = [1, 1]} : vector<3x128xf32> to vector<1x128xf32>
    %cst_126 = arith.constant 9.99999974E-6 : f32
    %354 = vector.broadcast %cst_126 : f32 to vector<1x128xf32>
    %355 = arith.addf %352, %354 : vector<1x128xf32>
    %356 = math.rsqrt %355 : vector<1x128xf32>
    %357 = arith.mulf %353, %356 : vector<1x128xf32>
    %358 = vector.extract_strided_slice %329 {offsets = [2, 0], sizes = [1, 128], strides = [1, 1]} : vector<3x128xf32> to vector<1x128xf32>
    %359 = arith.mulf %347, %357 : vector<1x128xf32>
    %360 = arith.subf %358, %359 : vector<1x128xf32>
    %361 = vector.broadcast %357 : vector<1x128xf32> to vector<32x128xf32>
    %362 = arith.mulf %327, %361 : vector<32x128xf32>
    %363 = vector.broadcast %360 : vector<1x128xf32> to vector<32x128xf32>
    %364 = arith.addf %362, %363 : vector<32x128xf32>
    %c0_127 = arith.constant 0 : index
    %c0_128 = arith.constant 0 : index
    %365 = vector.load %arg6[%c0_127, %c0_128] : memref<32x128xf32, #tpu.memory_space<vmem>>, vector<32x128xf32>
    tpu.vector_store %arg6[%c0_127, %c0_128], %364 {strides = array<i32>} : memref<32x128xf32, #tpu.memory_space<vmem>>, vector<32x128xf32>,
    return
  }
}

</mosaic_0001>

<llo_original>
// kernel: tile.63
$region0: #{tile.63}
  #allocation2 [shape = 's32[1]{0}', space=sflag, size = 0x4, scoped, tag = 'scoped memory for tile.63']
  %s0 = inlined_call_operand.hbm [shape: f32[8], index: 0, kind: input, shape index: {}]
  %s1 = inlined_call_operand.vmem [shape: f32[16,8], index: 1, kind: output, shape index: {}]
  $region1: #{tile.63} parent=0
    #allocation0 [shape = 'u8[512]{0}', space=vmem, size = 0x400, scoped, tag = 'operand span for operand 0']
    #allocation1 [shape = 's32[1]{0}', space=sflag, size = 0x4, scoped, tag = 'scoped memory for tile.63']
    %2 = vsyncpa [#allocation1], 0
    // Predicated region
    $region2: #{tile.63} parent=1 // pred_check
      _
    $region3: #{tile.63} parent=1 // pred_check_branch
      %4 = sbr.rel (0) target = $region5
    $region4: #{tile.63} parent=1 // pred_region
      %s6 = ssub.s32 16, 16
      %7 = vsyncadd [#allocation1], %s6
      %s9 = sshll.u32 [#allocation0], 4
      %s10 = int_to_ptr.vmem [resolvable:$true] %s9
      %12 = dma.hbm_to_vmem [thread:$0]  %s0, 16, %s10, [#allocation1]
    $region5: #{tile.63} parent=1 // pred_fallthru
      _
    // Predicated region
    $region6: #{tile.63} parent=1 // pred_check
      _
    $region7: #{tile.63} parent=1 // pred_check_branch
      %14 = sbr.rel (0) target = $region9
    $region8: #{tile.63} parent=1 // pred_region
      %15 = dma.done [#allocation1], 16
    $region9: #{tile.63} parent=1 // pred_fallthru
      _
    %v16 = vld [vmem:[#allocation0] ss:$0 sm:$0xff]
    %17 = vst [vmem:[%s1] sm:$0xff] %v16
    %s18 = scalar_lea.vmem %s1, 8
    %19 = vst [vmem:[%s18] sm:$0xff] %v16
    %20 = vsyncpa [#allocation1], 1

// kernel: tile.72
$region0: #{tile.72}
  %s0 = inlined_call_operand.vmem [shape: f32[16,8], index: 0, kind: input, shape index: {}]
  %s1 = inlined_call_operand.vmem [shape: f32[1,128], index: 1, kind: output, shape index: {}]
  $region1: #{tile.72} parent=0
    #allocation0 [shape = 'u8[4096]{0}', space=vmem, size = 0x1000, scoped, tag = 'scoped mem for output reshape']
    %v2 = vld [vmem:[%s0] sm:$0x1]
    %vm3 = vcmask 64512
    %4 = vst.msk [vmem:[#allocation0] sm:$0x1] %vm3, %v2
    %s5 = scalar_lea.vmem %s0, 15
    %v6 = vld [vmem:[%s5] sm:$0x1]
    %7 = vrot.lane.b32.xlu0 %v6, 120
    %v8 = vpop.permute.xlu0 %7
    %vm9 = vcmask 1048512
    %10 = vst.msk [vmem:[#allocation0] sm:$0x1] %vm9, %v8
    %s11 = scalar_lea.vmem %s0, 14
    %v12 = vld [vmem:[%s11] sm:$0x1]
    %13 = vrot.lane.b32.xlu0 %v12, 112
    %v14 = vpop.permute.xlu0 %13
    %vm15 = vcmask 982912
    %16 = vst.msk [vmem:[#allocation0] sm:$0x1] %vm15, %v14
    %s17 = scalar_lea.vmem %s0, 13
    %v18 = vld [vmem:[%s17] sm:$0x1]
    %19 = vrot.lane.b32.xlu0 %v18, 104
    %v20 = vpop.permute.xlu0 %19
    %vm21 = vcmask 917312
    %22 = vst.msk [vmem:[#allocation0] sm:$0x1] %vm21, %v20
    %s23 = scalar_lea.vmem %s0, 12
    %v24 = vld [vmem:[%s23] sm:$0x1]
    %25 = vrot.lane.b32.xlu0 %v24, 96
    %v26 = vpop.permute.xlu0 %25
    %vm27 = vcmask 851712
    %28 = vst.msk [vmem:[#allocation0] sm:$0x1] %vm27, %v26
    %s29 = scalar_lea.vmem %s0, 11
    %v30 = vld [vmem:[%s29] sm:$0x1]
    %31 = vrot.lane.b32.xlu0 %v30, 88
    %v32 = vpop.permute.xlu0 %31
    %vm33 = vcmask 786112
    %34 = vst.msk [vmem:[#allocation0] sm:$0x1] %vm33, %v32
    %s35 = scalar_lea.vmem %s0, 10
    %v36 = vld [vmem:[%s35] sm:$0x1]
    %37 = vrot.lane.b32.xlu0 %v36, 80
    %v38 = vpop.permute.xlu0 %37
    %vm39 = vcmask 720512
    %40 = vst.msk [vmem:[#allocation0] sm:$0x1] %vm39, %v38
    %s41 = scalar_lea.vmem %s0, 9
    %v42 = vld [vmem:[%s41] sm:$0x1]
    %43 = vrot.lane.b32.xlu0 %v42, 72
    %v44 = vpop.permute.xlu0 %43
    %vm45 = vcmask 654912
    %46 = vst.msk [vmem:[#allocation0] sm:$0x1] %vm45, %v44
    %s47 = scalar_lea.vmem %s0, 8
    %v48 = vld [vmem:[%s47] sm:$0x1]
    %49 = vrot.lane.b32.xlu0 %v48, 64
    %v50 = vpop.permute.xlu0 %49
    %vm51 = vcmask 589312
    %52 = vst.msk [vmem:[#allocation0] sm:$0x1] %vm51, %v50
    %s53 = scalar_lea.vmem %s0, 7
    %v54 = vld [vmem:[%s53] sm:$0x1]
    %55 = vrot.lane.b32.xlu0 %v54, 56
    %v56 = vpop.permute.xlu0 %55
    %vm57 = vcmask 523712
    %58 = vst.msk [vmem:[#allocation0] sm:$0x1] %vm57, %v56
    %s59 = scalar_lea.vmem %s0, 6
    %v60 = vld [vmem:[%s59] sm:$0x1]
    %61 = vrot.lane.b32.xlu0 %v60, 48
    %v62 = vpop.permute.xlu0 %61
    %vm63 = vcmask 458112
    %64 = vst.msk [vmem:[#allocation0] sm:$0x1] %vm63, %v62
    %s65 = scalar_lea.vmem %s0, 5
    %v66 = vld [vmem:[%s65] sm:$0x1]
    %67 = vrot.lane.b32.xlu0 %v66, 40
    %v68 = vpop.permute.xlu0 %67
    %vm69 = vcmask 392512
    %70 = vst.msk [vmem:[#allocation0] sm:$0x1] %vm69, %v68
    %s71 = scalar_lea.vmem %s0, 4
    %v72 = vld [vmem:[%s71] sm:$0x1]
    %73 = vrot.lane.b32.xlu0 %v72, 32
    %v74 = vpop.permute.xlu0 %73
    %vm75 = vcmask 326912
    %76 = vst.msk [vmem:[#allocation0] sm:$0x1] %vm75, %v74
    %s77 = scalar_lea.vmem %s0, 3
    %v78 = vld [vmem:[%s77] sm:$0x1]
    %79 = vrot.lane.b32.xlu0 %v78, 24
    %v80 = vpop.permute.xlu0 %79
    %vm81 = vcmask 261312
    %82 = vst.msk [vmem:[#allocation0] sm:$0x1] %vm81, %v80
    %s83 = scalar_lea.vmem %s0, 2
    %v84 = vld [vmem:[%s83] sm:$0x1]
    %85 = vrot.lane.b32.xlu0 %v84, 16
    %v86 = vpop.permute.xlu0 %85
    %vm87 = vcmask 195712
    %88 = vst.msk [vmem:[#allocation0] sm:$0x1] %vm87, %v86
    %s89 = scalar_lea.vmem %s0, 1
    %v90 = vld [vmem:[%s89] sm:$0x1]
    %91 = vrot.lane.b32.xlu0 %v90, 8
    %v92 = vpop.permute.xlu0 %91
    %vm93 = vcmask 130112
    %94 = vst.msk [vmem:[#allocation0] sm:$0x1] %vm93, %v92
    %s96 = sshllo.u32 0, 1
    %v98 = vld [vmem:[#allocation0] sm:%s96]
    %s99 = sshllo.u32 0, 1
    %100 = vst [vmem:[%s1] sm:%s99] %v98

// kernel: mynet_forward.1
$region0: #{mynet_forward.1}
  #allocation0 [shape = 'u32[]', space=smem, size = 0x4, offset = 0x4, fixed_abs, tag = 'smem constant byte address 0x4 - core index']
  #allocation1 [shape = 'u32[144,128]{1,0:T(1,128)}', space=vmem, size = 0x12000, scoped, tag = 'internal scratch']
  %s0 = inlined_call_operand.vmem [shape: f32[32,64], index: 0, kind: input, shape index: {}]
  %s1 = inlined_call_operand.vmem [shape: bf16[576,128], index: 1, kind: input, shape index: {}]
  %s2 = inlined_call_operand.vmem [shape: bf16[1152,128], index: 2, kind: input, shape index: {}]
  %s3 = inlined_call_operand.vmem [shape: bf16[1152,128], index: 3, kind: input, shape index: {}]
  %s4 = inlined_call_operand.vmem [shape: bf16[128,128], index: 4, kind: input, shape index: {}]
  %s5 = inlined_call_operand.vmem [shape: f32[4,3,128], index: 5, kind: input, shape index: {}]
  %s6 = inlined_call_operand.vmem [shape: f32[32,128], index: 6, kind: output, shape index: {}]
  %s7 = sld [smem:[#allocation0]]
  $region34: #{mynet_forward.1} parent=0
    _
  %s9 = ssub.s32 1, %s7
  %s10 = scalar_select 0, %s9, %s7
  // Predicated region
  $region2: #{mynet_forward.1} parent=0 // pred_check
    _
  $region3: #{mynet_forward.1} parent=0 // pred_check_branch
    %12 = sbr.rel (0) target = $region5
  $region4: #{mynet_forward.1} parent=0 // pred_region
    _
  $region5: #{mynet_forward.1} parent=0 // pred_fallthru
    _
  // Predicated region
  $region6: #{mynet_forward.1} parent=0 // pred_check
    _
  $region7: #{mynet_forward.1} parent=0 // pred_check_branch
    %14 = sbr.rel (0) target = $region9
  $region8: #{mynet_forward.1} parent=0 // pred_region
    _
  $region9: #{mynet_forward.1} parent=0 // pred_fallthru
    _
  // Predicated region
  $region10: #{mynet_forward.1} parent=0 // pred_check
    _
  $region11: #{mynet_forward.1} parent=0 // pred_check_branch
    %16 = sbr.rel (0) target = $region13
  $region12: #{mynet_forward.1} parent=0 // pred_region
    _
  $region13: #{mynet_forward.1} parent=0 // pred_fallthru
    _
  // Predicated region
  $region14: #{mynet_forward.1} parent=0 // pred_check
    _
  $region15: #{mynet_forward.1} parent=0 // pred_check_branch
    %18 = sbr.rel (0) target = $region17
  $region16: #{mynet_forward.1} parent=0 // pred_region
    _
  $region17: #{mynet_forward.1} parent=0 // pred_fallthru
    _
  // Predicated region
  $region18: #{mynet_forward.1} parent=0 // pred_check
    _
  $region19: #{mynet_forward.1} parent=0 // pred_check_branch
    %20 = sbr.rel (0) target = $region21
  $region20: #{mynet_forward.1} parent=0 // pred_region
    _
  $region21: #{mynet_forward.1} parent=0 // pred_fallthru
    _
  // Predicated region
  $region22: #{mynet_forward.1} parent=0 // pred_check
    _
  $region23: #{mynet_forward.1} parent=0 // pred_check_branch
    %22 = sbr.rel (0) target = $region25
  $region24: #{mynet_forward.1} parent=0 // pred_region
    _
  $region25: #{mynet_forward.1} parent=0 // pred_fallthru
    _
  %v26 = vlaneseq
  %v27 = vshrl.u32 %v26, 7
  %v28 = vadd.s32 %v27, 8
  %v29 = vadd.s32 %v27, 16
  %v30 = vadd.s32 %v27, 24
  %vm31 = vcmp.lt.s32.totalorder %v27, 0
  %v32 = vsub.s32 0, %v27
  %v33 = vsel %vm31, %v32, %v27
  %v34 = vshrl.u32 %v33, 4
  %v35 = vand.u32 %v33, 15
  %v36 = vsub.s32 0, %v35
  %v37 = vsel %vm31, %v36, %v35
  %vm38 = vcmp.lt.s32.totalorder %v28, 0
  %v39 = vsub.s32 0, %v28
  %v40 = vsel %vm38, %v39, %v28
  %v41 = vshrl.u32 %v40, 4
  %v42 = vand.u32 %v40, 15
  %v43 = vsub.s32 0, %v42
  %v44 = vsel %vm38, %v43, %v42
  %vm45 = vcmp.lt.s32.totalorder %v29, 0
  %v46 = vsub.s32 0, %v29
  %v47 = vsel %vm45, %v46, %v29
  %v48 = vshrl.u32 %v47, 4
  %v49 = vand.u32 %v47, 15
  %v50 = vsub.s32 0, %v49
  %v51 = vsel %vm45, %v50, %v49
  %vm52 = vcmp.lt.s32.totalorder %v30, 0
  %v53 = vsub.s32 0, %v30
  %v54 = vsel %vm52, %v53, %v30
  %v55 = vshrl.u32 %v54, 4
  %v56 = vand.u32 %v54, 15
  %v57 = vsub.s32 0, %v56
  %v58 = vsel %vm52, %v57, %v56
  %vm59 = vcmp.ne.s32.totalorder %v37, 0
  %vm60 = vcmp.ne.s32.totalorder %v44, 0
  %vm61 = vcmp.ne.s32.totalorder %v51, 0
  %vm62 = vcmp.ne.s32.totalorder %v58, 0
  %vm63 = vcmp.lt.s32.totalorder %v37, 0
  %vm64 = vcmp.lt.s32.totalorder %v44, 0
  %vm65 = vcmp.lt.s32.totalorder %v51, 0
  %vm66 = vcmp.lt.s32.totalorder %v58, 0
  %vm67 = vmand %vm63, %vm59
  %vm68 = vmand %vm64, %vm60
  %vm69 = vmand %vm65, %vm61
  %vm70 = vmand %vm66, %vm62
  %v71 = vadd.s32 %v37, 16
  %v72 = vadd.s32 %v44, 16
  %v73 = vadd.s32 %v51, 16
  %v74 = vadd.s32 %v58, 16
  %v75 = vsel %vm67, %v71, %v37
  %v76 = vsel %vm68, %v72, %v44
  %v77 = vsel %vm69, %v73, %v51
  %v78 = vsel %vm70, %v74, %v58
  %vm79 = vcmp.ge.s32.totalorder %v75, 1
  %vm80 = vcmp.ge.s32.totalorder %v76, 1
  %vm81 = vcmp.ge.s32.totalorder %v77, 1
  %vm82 = vcmp.ge.s32.totalorder %v78, 1
  %vm83 = vcmp.lt.s32.totalorder %v75, 15
  %vm84 = vcmp.lt.s32.totalorder %v76, 15
  %vm85 = vcmp.lt.s32.totalorder %v77, 15
  %vm86 = vcmp.lt.s32.totalorder %v78, 15
  %v87 = vld [vmem:[%s0] sm:$0xff]
  %v88 = vld [vmem:[%s0 + $0x8] sm:$0xff]
  %v89 = vld [vmem:[%s0 + $0x10] sm:$0xff]
  %v90 = vld [vmem:[%s0 + $0x18] sm:$0xff]
  %v91 = vpack.c.bf16 %v88, %v87
  %v92 = vpack.c.bf16 %v90, %v89
  %95 = vrot.lane.b32.xlu0 %v91, 4
  %v96 = vpop.permute.xlu0 %95
  %97 = vrot.lane.b32.xlu0 %v92, 4
  %v98 = vpop.permute.xlu0 %97
  %vm99 = vcmask 31744
  %v102 = vsel %vm99, 0, %v96
  %v104 = vsel %vm99, 0, %v98
  %vm105 = vsmask.f32 256
  %v106 = vshrl.u32 %v102, 16
  %v108 = vrot.slane %v106, 7
  %v109 = vshll.u32 %v102, 16
  %v111 = vor.u32 %v108, %v109
  %v112 = vshrl.u32 %v104, 16
  %v114 = vrot.slane %v112, 7
  %v115 = vshll.u32 %v104, 16
  %v117 = vor.u32 %v114, %v115
  %v118 = vsel %vm105, %v108, %v117
  %vm121 = vcmask 1040384
  %vm122 = vmand %vm121, %vm105
  %v123 = vsel %vm122, 0, %v111
  %vm124 = vmpackc.low %vm79, %vm79
  %vm125 = vmpackc.low %vm80, %vm80
  %vm126 = vmpackc.low %vm81, %vm81
  %vm127 = vmpackc.low %vm82, %vm82
  %v128 = vsel %vm124, 65537, 0
  %v129 = vsel %vm125, 65537, 0
  %v130 = vsel %vm126, 65537, 0
  %v131 = vsel %vm127, 65537, 0
  %v132 = vunpack.c.l.b16 %v128
  %v133 = vunpack.c.l.b16 %v129
  %v134 = vunpack.c.l.b16 %v130
  %v135 = vunpack.c.l.b16 %v131
  %v136 = vpack.c.b16 %v133, %v132
  %v137 = vpack.c.b16 %v135, %v134
  %vm138 = vcmp.ne.s16.totalorder %v136, 0
  %vm139 = vcmp.ne.s16.totalorder %v137, 0
  %v140 = vsel %vm138, %v123, 0
  %v141 = vsel %vm139, %v118, 0
  %v143 = vshrl.u32 %v91, 16
  %v145 = vrot.slane %v143, 7
  %v146 = vshll.u32 %v91, 16
  %v148 = vor.u32 %v145, %v146
  %v150 = vshrl.u32 %v92, 16
  %v152 = vrot.slane %v150, 7
  %v153 = vshll.u32 %v92, 16
  %v155 = vor.u32 %v152, %v153
  %v156 = vsel %vm105, %v145, %v155
  %v159 = vsel %vm122, 0, %v148
  %v160 = vsel %vm138, %v159, 0
  %v161 = vsel %vm139, %v156, 0
  %162 = vrot.lane.b32.xlu0 %v91, 124
  %v163 = vpop.permute.xlu0 %162
  %164 = vrot.lane.b32.xlu0 %v92, 124
  %v165 = vpop.permute.xlu0 %164
  %vm166 = vcmask 490496
  %v168 = vsel %vm166, %v163, 0
  %v170 = vsel %vm166, %v165, 0
  %v171 = vshrl.u32 %v168, 16
  %v173 = vrot.slane %v171, 7
  %v174 = vshll.u32 %v168, 16
  %v176 = vor.u32 %v173, %v174
  %v177 = vshrl.u32 %v170, 16
  %v179 = vrot.slane %v177, 7
  %v180 = vshll.u32 %v170, 16
  %v182 = vor.u32 %v179, %v180
  %v183 = vsel %vm105, %v173, %v182
  %v186 = vsel %vm122, 0, %v176
  %v187 = vsel %vm138, %v186, 0
  %v188 = vsel %vm139, %v183, 0
  %vm189 = vsmask.f32 7424
  %v190 = vrot.slane %v109, 1
  %v191 = vor.u32 %v106, %v190
  %v192 = vrot.slane %v115, 1
  %v193 = vsel %vm189, %v191, %v192
  %v194 = vor.u32 %v112, %v192
  %vm197 = vcmask 1047552
  %vm198 = vmand %vm197, %vm189
  %v199 = vsel %vm198, %v194, 0
  %vm200 = vmpackc.low %vm83, %vm83
  %vm201 = vmpackc.low %vm84, %vm84
  %vm202 = vmpackc.low %vm85, %vm85
  %vm203 = vmpackc.low %vm86, %vm86
  %v204 = vsel %vm200, 65537, 0
  %v205 = vsel %vm201, 65537, 0
  %v206 = vsel %vm202, 65537, 0
  %v207 = vsel %vm203, 65537, 0
  %v208 = vunpack.c.l.b16 %v204
  %v209 = vunpack.c.l.b16 %v205
  %v210 = vunpack.c.l.b16 %v206
  %v211 = vunpack.c.l.b16 %v207
  %v212 = vpack.c.b16 %v209, %v208
  %v213 = vpack.c.b16 %v211, %v210
  %vm214 = vcmp.ne.s16.totalorder %v212, 0
  %vm215 = vcmp.ne.s16.totalorder %v213, 0
  %v216 = vsel %vm214, %v193, 0
  %v217 = vsel %vm215, %v199, 0
  %v218 = vrot.slane %v146, 1
  %v219 = vor.u32 %v143, %v218
  %v220 = vrot.slane %v153, 1
  %v221 = vsel %vm189, %v219, %v220
  %v222 = vor.u32 %v150, %v220
  %v225 = vsel %vm198, %v222, 0
  %v226 = vsel %vm214, %v221, 0
  %v227 = vsel %vm215, %v225, 0
  %v228 = vrot.slane %v174, 1
  %v229 = vor.u32 %v171, %v228
  %v230 = vrot.slane %v180, 1
  %v231 = vsel %vm189, %v229, %v230
  %v232 = vor.u32 %v177, %v230
  %v235 = vsel %vm198, %v232, 0
  %v236 = vsel %vm214, %v231, 0
  %v237 = vsel %vm215, %v235, 0
  %240 = vrot.lane.b32.xlu0 %v160, 64
  %v241 = vpop.permute.xlu0 %240
  %242 = vrot.lane.b32.xlu0 %v161, 64
  %v243 = vpop.permute.xlu0 %242
  %246 = vrot.lane.b32.xlu0 %v102, 64
  %v247 = vpop.permute.xlu0 %246
  %248 = vrot.lane.b32.xlu0 %v104, 64
  %v249 = vpop.permute.xlu0 %248
  %252 = vrot.lane.b32.xlu0 %v168, 64
  %v253 = vpop.permute.xlu0 %252
  %254 = vrot.lane.b32.xlu0 %v170, 64
  %v255 = vpop.permute.xlu0 %254
  %258 = vrot.lane.b32.xlu0 %v226, 64
  %v259 = vpop.permute.xlu0 %258
  %260 = vrot.lane.b32.xlu0 %v227, 64
  %v261 = vpop.permute.xlu0 %260
  %vm262 = vcmask 523264
  %v265 = vsel %vm262, %v140, %v241
  %v269 = vsel %vm262, %v141, %v243
  %v273 = vsel %vm262, %v187, %v247
  %v277 = vsel %vm262, %v188, %v249
  %v280 = vsel %vm262, %v91, %v253
  %v283 = vsel %vm262, %v92, %v255
  %v287 = vsel %vm262, %v216, %v259
  %v291 = vsel %vm262, %v217, %v261
  %v293 = vld [vmem:[%s1] sm:$0xf]
  %v294 = vld [vmem:[%s1 + $0x4] sm:$0xf]
  %v295 = vld [vmem:[%s1 + $0x8] sm:$0xf]
  %v296 = vld [vmem:[%s1 + $0xc] sm:$0xf]
  %v297 = vld [vmem:[%s1 + $0x10] sm:$0xf]
  %v298 = vld [vmem:[%s1 + $0x14] sm:$0xf]
  %v299 = vld [vmem:[%s1 + $0x18] sm:$0xf]
  %v300 = vld [vmem:[%s1 + $0x1c] sm:$0xf]
  %v301 = vld [vmem:[%s1 + $0x20] sm:$0xf]
  %v302 = vld [vmem:[%s1 + $0x24] sm:$0xf]
  %v303 = vld [vmem:[%s1 + $0x28] sm:$0xf]
  %v304 = vld [vmem:[%s1 + $0x2c] sm:$0xf]
  %v305 = vld [vmem:[%s1 + $0x30] sm:$0xf]
  %v306 = vld [vmem:[%s1 + $0x34] sm:$0xf]
  %v307 = vld [vmem:[%s1 + $0x38] sm:$0xf]
  %v308 = vld [vmem:[%s1 + $0x3c] sm:$0xf]
  %v309 = vld [vmem:[%s1 + $0x40] sm:$0xf]
  %v310 = vld [vmem:[%s1 + $0x44] sm:$0xf]
  %v311 = vld [vmem:[%s1 + $0x48] sm:$0xf]
  %v312 = vld [vmem:[%s1 + $0x4c] sm:$0xf]
  %v313 = vld [vmem:[%s1 + $0x50] sm:$0xf]
  %v314 = vld [vmem:[%s1 + $0x54] sm:$0xf]
  %v315 = vld [vmem:[%s1 + $0x58] sm:$0xf]
  %v316 = vld [vmem:[%s1 + $0x5c] sm:$0xf]
  %v317 = vld [vmem:[%s1 + $0x60] sm:$0xf]
  %v318 = vld [vmem:[%s1 + $0x64] sm:$0xf]
  %v319 = vld [vmem:[%s1 + $0x68] sm:$0xf]
  %v320 = vld [vmem:[%s1 + $0x6c] sm:$0xf]
  %v321 = vld [vmem:[%s1 + $0x70] sm:$0xf]
  %v322 = vld [vmem:[%s1 + $0x74] sm:$0xf]
  %v323 = vld [vmem:[%s1 + $0x78] sm:$0xf]
  %v324 = vld [vmem:[%s1 + $0x7c] sm:$0xf]
  %v325 = vld [vmem:[%s1 + $0x80] sm:$0xf]
  %v326 = vld [vmem:[%s1 + $0x84] sm:$0xf]
  %v327 = vld [vmem:[%s1 + $0x88] sm:$0xf]
  %v328 = vld [vmem:[%s1 + $0x8c] sm:$0xf]
  %v329 = vld [vmem:[%s1 + $0x90] sm:$0xf]
  %v330 = vld [vmem:[%s1 + $0x94] sm:$0xf]
  %v331 = vld [vmem:[%s1 + $0x98] sm:$0xf]
  %v332 = vld [vmem:[%s1 + $0x9c] sm:$0xf]
  %v333 = vld [vmem:[%s1 + $0xa0] sm:$0xf]
  %v334 = vld [vmem:[%s1 + $0xa4] sm:$0xf]
  %v335 = vld [vmem:[%s1 + $0xa8] sm:$0xf]
  %v336 = vld [vmem:[%s1 + $0xac] sm:$0xf]
  %v337 = vld [vmem:[%s1 + $0xb0] sm:$0xf]
  %v338 = vld [vmem:[%s1 + $0xb4] sm:$0xf]
  %v339 = vld [vmem:[%s1 + $0xb8] sm:$0xf]
  %v340 = vld [vmem:[%s1 + $0xbc] sm:$0xf]
  %v341 = vld [vmem:[%s1 + $0xc0] sm:$0xf]
  %v342 = vld [vmem:[%s1 + $0xc4] sm:$0xf]
  %v343 = vld [vmem:[%s1 + $0xc8] sm:$0xf]
  %v344 = vld [vmem:[%s1 + $0xcc] sm:$0xf]
  %v345 = vld [vmem:[%s1 + $0xd0] sm:$0xf]
  %v346 = vld [vmem:[%s1 + $0xd4] sm:$0xf]
  %v347 = vld [vmem:[%s1 + $0xd8] sm:$0xf]
  %v348 = vld [vmem:[%s1 + $0xdc] sm:$0xf]
  %v349 = vld [vmem:[%s1 + $0xe0] sm:$0xf]
  %v350 = vld [vmem:[%s1 + $0xe4] sm:$0xf]
  %v351 = vld [vmem:[%s1 + $0xe8] sm:$0xf]
  %v352 = vld [vmem:[%s1 + $0xec] sm:$0xf]
  %v353 = vld [vmem:[%s1 + $0xf0] sm:$0xf]
  %v354 = vld [vmem:[%s1 + $0xf4] sm:$0xf]
  %v355 = vld [vmem:[%s1 + $0xf8] sm:$0xf]
  %v356 = vld [vmem:[%s1 + $0xfc] sm:$0xf]
  %v357 = vld [vmem:[%s1 + $0x100] sm:$0xf]
  %v358 = vld [vmem:[%s1 + $0x104] sm:$0xf]
  %v359 = vld [vmem:[%s1 + $0x108] sm:$0xf]
  %v360 = vld [vmem:[%s1 + $0x10c] sm:$0xf]
  %v361 = vld [vmem:[%s1 + $0x110] sm:$0xf]
  %v362 = vld [vmem:[%s1 + $0x114] sm:$0xf]
  %v363 = vld [vmem:[%s1 + $0x118] sm:$0xf]
  %v364 = vld [vmem:[%s1 + $0x11c] sm:$0xf]
  %v365 = vld [vmem:[%s5] sm:$0x7]
  %v366 = vlaneseq
  %v367 = vshrl.u32 %v366, 7
  %v368 = vsub.s32 0, %v367
  %v369 = vrot.slane %v365, %v368
  %v442 = vunpack.c.l.b16 %v293
  %v443 = vunpack.c.l.b16 %v294
  %v444 = vunpack.c.l.b16 %v295
  %v445 = vunpack.c.l.b16 %v296
  %v446 = vunpack.c.l.b16 %v297
  %v447 = vunpack.c.l.b16 %v298
  %v448 = vunpack.c.l.b16 %v299
  %v449 = vunpack.c.l.b16 %v300
  %v450 = vunpack.c.l.b16 %v301
  %v451 = vunpack.c.l.b16 %v302
  %v452 = vunpack.c.l.b16 %v303
  %v453 = vunpack.c.l.b16 %v304
  %v454 = vunpack.c.l.b16 %v305
  %v455 = vunpack.c.l.b16 %v306
  %v456 = vunpack.c.l.b16 %v307
  %v457 = vunpack.c.l.b16 %v308
  %v458 = vunpack.c.l.b16 %v309
  %v459 = vunpack.c.l.b16 %v310
  %v460 = vunpack.c.l.b16 %v311
  %v461 = vunpack.c.l.b16 %v312
  %v462 = vunpack.c.l.b16 %v313
  %v463 = vunpack.c.l.b16 %v314
  %v464 = vunpack.c.l.b16 %v315
  %v465 = vunpack.c.l.b16 %v316
  %v466 = vunpack.c.l.b16 %v317
  %v467 = vunpack.c.l.b16 %v318
  %v468 = vunpack.c.l.b16 %v319
  %v469 = vunpack.c.l.b16 %v320
  %v470 = vunpack.c.l.b16 %v321
  %v471 = vunpack.c.l.b16 %v322
  %v472 = vunpack.c.l.b16 %v323
  %v473 = vunpack.c.l.b16 %v324
  %v474 = vunpack.c.l.b16 %v325
  %v475 = vunpack.c.l.b16 %v326
  %v476 = vunpack.c.l.b16 %v327
  %v477 = vunpack.c.l.b16 %v328
  %v478 = vunpack.c.l.b16 %v329
  %v479 = vunpack.c.l.b16 %v330
  %v480 = vunpack.c.l.b16 %v331
  %v481 = vunpack.c.l.b16 %v332
  %v482 = vunpack.c.l.b16 %v333
  %v483 = vunpack.c.l.b16 %v334
  %v484 = vunpack.c.l.b16 %v335
  %v485 = vunpack.c.l.b16 %v336
  %v486 = vunpack.c.l.b16 %v337
  %v487 = vunpack.c.l.b16 %v338
  %v488 = vunpack.c.l.b16 %v339
  %v489 = vunpack.c.l.b16 %v340
  %v490 = vunpack.c.l.b16 %v341
  %v491 = vunpack.c.l.b16 %v342
  %v492 = vunpack.c.l.b16 %v343
  %v493 = vunpack.c.l.b16 %v344
  %v494 = vunpack.c.l.b16 %v345
  %v495 = vunpack.c.l.b16 %v346
  %v496 = vunpack.c.l.b16 %v347
  %v497 = vunpack.c.l.b16 %v348
  %v498 = vunpack.c.l.b16 %v349
  %v499 = vunpack.c.l.b16 %v350
  %v500 = vunpack.c.l.b16 %v351
  %v501 = vunpack.c.l.b16 %v352
  %v502 = vunpack.c.l.b16 %v353
  %v503 = vunpack.c.l.b16 %v354
  %v504 = vunpack.c.l.b16 %v355
  %v505 = vunpack.c.l.b16 %v356
  %v506 = vunpack.c.l.b16 %v357
  %v507 = vunpack.c.l.b16 %v358
  %v508 = vunpack.c.l.b16 %v359
  %v509 = vunpack.c.l.b16 %v360
  %v510 = vunpack.c.l.b16 %v361
  %v511 = vunpack.c.l.b16 %v362
  %v512 = vunpack.c.l.b16 %v363
  %v513 = vunpack.c.l.b16 %v364
  %v514 = vpack.c.b16 %v443, %v442
  %v515 = vpack.c.b16 %v445, %v444
  %v516 = vpack.c.b16 %v447, %v446
  %v517 = vpack.c.b16 %v449, %v448
  %v518 = vpack.c.b16 %v451, %v450
  %v519 = vpack.c.b16 %v453, %v452
  %v520 = vpack.c.b16 %v455, %v454
  %v521 = vpack.c.b16 %v457, %v456
  %v522 = vpack.c.b16 %v459, %v458
  %v523 = vpack.c.b16 %v461, %v460
  %v524 = vpack.c.b16 %v463, %v462
  %v525 = vpack.c.b16 %v465, %v464
  %v526 = vpack.c.b16 %v467, %v466
  %v527 = vpack.c.b16 %v469, %v468
  %v528 = vpack.c.b16 %v471, %v470
  %v529 = vpack.c.b16 %v473, %v472
  %v530 = vpack.c.b16 %v475, %v474
  %v531 = vpack.c.b16 %v477, %v476
  %v532 = vpack.c.b16 %v479, %v478
  %v533 = vpack.c.b16 %v481, %v480
  %v534 = vpack.c.b16 %v483, %v482
  %v535 = vpack.c.b16 %v485, %v484
  %v536 = vpack.c.b16 %v487, %v486
  %v537 = vpack.c.b16 %v489, %v488
  %v538 = vpack.c.b16 %v491, %v490
  %v539 = vpack.c.b16 %v493, %v492
  %v540 = vpack.c.b16 %v495, %v494
  %v541 = vpack.c.b16 %v497, %v496
  %v542 = vpack.c.b16 %v499, %v498
  %v543 = vpack.c.b16 %v501, %v500
  %v544 = vpack.c.b16 %v503, %v502
  %v545 = vpack.c.b16 %v505, %v504
  %v546 = vpack.c.b16 %v507, %v506
  %v547 = vpack.c.b16 %v509, %v508
  %v548 = vpack.c.b16 %v511, %v510
  %v549 = vpack.c.b16 %v513, %v512
  %v587 = vsel %vm262, %v236, 0
  %v590 = vsel %vm262, %v237, 0
  %592 = vmatprep.subr.bf16.mxu0 0
  %593 = vmatpush1.bf16.msra.mxu0 %v514
  %594 = vmatprep.subr.bf16.mxu0 0
  %595 = vmatpush1.bf16.msra.mxu0 %v515
  %596 = vmatprep.subr.bf16.mxu0 0
  %597 = vmatpush1.bf16.msra.mxu0 %v516
  %598 = vmatprep.subr.bf16.mxu0 0
  %599 = vmatpush1.bf16.msra.mxu0 %v517
  %600 = vmatprep.subr.bf16.mxu0 0
  %601 = vmatpush1.bf16.msra.mxu0 %v518
  %602 = vmatprep.subr.bf16.mxu0 0
  %603 = vmatpush1.bf16.msra.mxu0 %v519
  %604 = vmatprep.subr.bf16.mxu0 0
  %605 = vmatpush1.bf16.msra.mxu0 %v520
  %606 = vmatprep.subr.bf16.mxu0 0
  %607 = vmatpush1.bf16.msra.mxu0 %v521
  %608 = vmatprep.subr.bf16.mxu0 0
  %609 = vmatpush1.bf16.msra.mxu0 %v522
  %610 = vmatprep.subr.bf16.mxu0 0
  %611 = vmatpush1.bf16.msra.mxu0 %v523
  %612 = vmatprep.subr.bf16.mxu0 0
  %613 = vmatpush1.bf16.msra.mxu0 %v524
  %614 = vmatprep.subr.bf16.mxu0 0
  %615 = vmatpush1.bf16.msra.mxu0 %v525
  %616 = vmatprep.subr.bf16.mxu0 0
  %617 = vmatpush1.bf16.msra.mxu0 %v526
  %618 = vmatprep.subr.bf16.mxu0 0
  %619 = vmatpush1.bf16.msra.mxu0 %v527
  %620 = vmatprep.subr.bf16.mxu0 0
  %621 = vmatpush1.bf16.msra.mxu0 %v528
  %622 = vmatprep.subr.bf16.mxu0 0
  %623 = vmatpush1.bf16.msra.mxu0 %v529
  %624 = vmatprep.mubr.bf16.mxu0 %v273
  %625 = vmatmul.mubr.bf16.gmra.mrb[0].mxu0 %v265
  %v626 = vpop.f32.mrb[0].mxu0
  %v627 = vadd.f32 %v369, %v626
  %v628 = vpop.f32.mrb[0].mxu0
  %v629 = vpop.f32.mrb[0].mxu0
  %v630 = vadd.f32 %v369, %v629
  %v631 = vpop.f32.mrb[0].mxu0
  %632 = vmatprep.mubr.bf16.mxu0 %v277
  %633 = vmatmul.mubr.bf16.gmra.mrb[0].mxu0 %v269
  %v634 = vpop.f32.mrb[0].mxu0
  %v635 = vadd.f32 %v369, %v634
  %v636 = vpop.f32.mrb[0].mxu0
  %v637 = vpop.f32.mrb[0].mxu0
  %v638 = vadd.f32 %v369, %v637
  %v639 = vpop.f32.mrb[0].mxu0
  %640 = vdwg.mxu0
  %641 = vmatprep.subr.bf16.mxu0 0
  %642 = vmatpush1.bf16.msra.mxu0 %v530
  %643 = vmatprep.subr.bf16.mxu0 0
  %644 = vmatpush1.bf16.msra.mxu0 %v531
  %645 = vmatprep.subr.bf16.mxu0 0
  %646 = vmatpush1.bf16.msra.mxu0 %v532
  %647 = vmatprep.subr.bf16.mxu0 0
  %648 = vmatpush1.bf16.msra.mxu0 %v533
  %649 = vmatprep.subr.bf16.mxu0 0
  %650 = vmatpush1.bf16.msra.mxu0 %v534
  %651 = vmatprep.subr.bf16.mxu0 0
  %652 = vmatpush1.bf16.msra.mxu0 %v535
  %653 = vmatprep.subr.bf16.mxu0 0
  %654 = vmatpush1.bf16.msra.mxu0 %v536
  %655 = vmatprep.subr.bf16.mxu0 0
  %656 = vmatpush1.bf16.msra.mxu0 %v537
  %657 = vmatprep.subr.bf16.mxu0 0
  %658 = vmatpush1.bf16.msra.mxu0 %v538
  %659 = vmatprep.subr.bf16.mxu0 0
  %660 = vmatpush1.bf16.msra.mxu0 %v539
  %661 = vmatprep.subr.bf16.mxu0 0
  %662 = vmatpush1.bf16.msra.mxu0 %v540
  %663 = vmatprep.subr.bf16.mxu0 0
  %664 = vmatpush1.bf16.msra.mxu0 %v541
  %665 = vmatprep.subr.bf16.mxu0 0
  %666 = vmatpush1.bf16.msra.mxu0 %v542
  %667 = vmatprep.subr.bf16.mxu0 0
  %668 = vmatpush1.bf16.msra.mxu0 %v543
  %669 = vmatprep.subr.bf16.mxu0 0
  %670 = vmatpush1.bf16.msra.mxu0 %v544
  %671 = vmatprep.subr.bf16.mxu0 0
  %672 = vmatpush1.bf16.msra.mxu0 %v545
  %673 = vmatprep.mubr.bf16.mxu0 %v287
  %674 = vmatmul.mubr.bf16.gmra.mrb[0].mxu0 %v280
  %v675 = vpop.f32.mrb[0].mxu0
  %v676 = vadd.f32 %v627, %v675
  %v677 = vpop.f32.mrb[0].mxu0
  %v678 = vpop.f32.mrb[0].mxu0
  %v679 = vadd.f32 %v630, %v678
  %v680 = vpop.f32.mrb[0].mxu0
  %681 = vmatprep.mubr.bf16.mxu0 %v291
  %682 = vmatmul.mubr.bf16.gmra.mrb[0].mxu0 %v283
  %v683 = vpop.f32.mrb[0].mxu0
  %v684 = vadd.f32 %v635, %v683
  %v685 = vpop.f32.mrb[0].mxu0
  %v686 = vpop.f32.mrb[0].mxu0
  %v687 = vadd.f32 %v638, %v686
  %v688 = vpop.f32.mrb[0].mxu0
  %689 = vdwg.mxu0
  %690 = vmatprep.subr.bf16.mxu0 0
  %691 = vmatpush1.bf16.msra.mxu0 %v546
  %692 = vmatprep.subr.bf16.mxu0 0
  %693 = vmatpush1.bf16.msra.mxu0 %v547
  %694 = vmatprep.subr.bf16.mxu0 0
  %695 = vmatpush1.bf16.msra.mxu0 %v548
  %696 = vmatprep.subr.bf16.mxu0 0
  %697 = vmatpush1.bf16.msra.mxu0 %v549
  %698 = vmatprep.subr.bf16.mxu0 0
  %699 = vmatpush1.bf16.msra.mxu0 0
  %700 = vmatprep.subr.bf16.mxu0 0
  %701 = vmatpush1.bf16.msra.mxu0 0
  %702 = vmatprep.subr.bf16.mxu0 0
  %703 = vmatpush1.bf16.msra.mxu0 0
  %704 = vmatprep.subr.bf16.mxu0 0
  %705 = vmatpush1.bf16.msra.mxu0 0
  %706 = vmatprep.subr.bf16.mxu0 0
  %707 = vmatpush1.bf16.msra.mxu0 0
  %708 = vmatprep.subr.bf16.mxu0 0
  %709 = vmatpush1.bf16.msra.mxu0 0
  %710 = vmatprep.subr.bf16.mxu0 0
  %711 = vmatpush1.bf16.msra.mxu0 0
  %712 = vmatprep.subr.bf16.mxu0 0
  %713 = vmatpush1.bf16.msra.mxu0 0
  %714 = vmatprep.subr.bf16.mxu0 0
  %715 = vmatpush1.bf16.msra.mxu0 0
  %716 = vmatprep.subr.bf16.mxu0 0
  %717 = vmatpush1.bf16.msra.mxu0 0
  %718 = vmatprep.subr.bf16.mxu0 0
  %719 = vmatpush1.bf16.msra.mxu0 0
  %720 = vmatprep.subr.bf16.mxu0 0
  %721 = vmatpush1.bf16.msra.mxu0 0
  %722 = vmatprep.mubr.bf16.mxu0 0
  %723 = vmatmul.mubr.bf16.gmra.mrb[0].mxu0 %v587
  %v724 = vpop.f32.mrb[0].mxu0
  %v725 = vadd.f32 %v676, %v724
  %v726 = vpop.f32.mrb[0].mxu0
  %v727 = vpop.f32.mrb[0].mxu0
  %v728 = vadd.f32 %v679, %v727
  %v729 = vpop.f32.mrb[0].mxu0
  %730 = vmatprep.mubr.bf16.mxu0 0
  %731 = vmatmul.mubr.bf16.gmra.mrb[0].mxu0 %v590
  %v732 = vpop.f32.mrb[0].mxu0
  %v733 = vadd.f32 %v684, %v732
  %v734 = vpop.f32.mrb[0].mxu0
  %v735 = vpop.f32.mrb[0].mxu0
  %v736 = vadd.f32 %v687, %v735
  %v737 = vpop.f32.mrb[0].mxu0
  %738 = vdwg.mxu0
  %v739 = vmax.f32 %v725, 0.0
  %v740 = vmax.f32 %v728, 0.0
  %v741 = vmax.f32 %v733, 0.0
  %v742 = vmax.f32 %v736, 0.0
  %v743 = vadd.f32 %v739, %v740
  %v744 = vadd.f32 %v743, %v741
  %v745 = vadd.f32 %v744, %v742
  %v746 = vrot.slane %v745, 4
  %v747 = vadd.f32 %v745, %v746
  %v748 = vrot.slane %v747, 2
  %v749 = vadd.f32 %v747, %v748
  %v750 = vrot.slane %v749, 1
  %v751 = vadd.f32 %v749, %v750
  %v752 = vmul.f32 %v739, %v739
  %v753 = vmul.f32 %v740, %v740
  %v754 = vmul.f32 %v741, %v741
  %v755 = vmul.f32 %v742, %v742
  %v756 = vadd.f32 %v752, %v753
  %v757 = vadd.f32 %v756, %v754
  %v758 = vadd.f32 %v757, %v755
  %v759 = vrot.slane %v758, 4
  %v760 = vadd.f32 %v758, %v759
  %v761 = vrot.slane %v760, 2
  %v762 = vadd.f32 %v760, %v761
  %v763 = vrot.slane %v762, 1
  %v764 = vadd.f32 %v762, %v763
  %vm765 = vcmask 1040384
  %v766 = vsel %vm765, %v751, %v764
  %vm767 = vcmask 1041408
  %v768 = vsel %vm767, %v766, 0.0
  %769 = vrot.lane.b32.xlu0 %v768, 8
  %v770 = vpop.permute.xlu0 %769
  %v771 = vadd.f32 %v768, %v770
  %772 = vrot.lane.b32.xlu0 %v771, 16
  %v773 = vpop.permute.xlu0 %772
  %v774 = vadd.f32 %v771, %v773
  %775 = vrot.lane.b32.xlu0 %v774, 32
  %v776 = vpop.permute.xlu0 %775
  %v777 = vadd.f32 %v774, %v776
  %778 = vrot.lane.b32.xlu0 %v777, 64
  %v779 = vpop.permute.xlu0 %778
  %v780 = vadd.f32 %v777, %v779
  %v781 = vmul.f32 %v780, 0.001953125
  %v782 = vmul.f32 %v781, %v781
  %v784 = vrot.slane %v782, 7
  %v786 = vsub.f32 %v781, %v784
  %v787 = vadd.f32 %v786, 1e-05
  %v788 = vrsqrt.pop %v787
  %v789 = vmul.f32 %v365, %v788
  %v791 = vrot.slane %v789, 1
  %v793 = vmul.f32 %v781, %v791
  %v795 = vrot.slane %v793, 6
  %v797 = vsub.f32 %v365, %v795
  %v798 = vlaneseq
  %v799 = vshrl.u32 %v798, 7
  %v800 = vsub.s32 1, %v799
  %v801 = vrot.slane %v789, %v800
  %v802 = vmul.f32 %v739, %v801
  %v803 = vmul.f32 %v740, %v801
  %v804 = vmul.f32 %v741, %v801
  %v805 = vmul.f32 %v742, %v801
  %v806 = vlaneseq
  %v807 = vshrl.u32 %v806, 7
  %v808 = vsub.s32 2, %v807
  %v809 = vrot.slane %v797, %v808
  %v810 = vadd.f32 %v802, %v809
  %v811 = vadd.f32 %v803, %v809
  %v812 = vadd.f32 %v804, %v809
  %v813 = vadd.f32 %v805, %v809
  %v814 = vpack.c.bf16 %v811, %v810
  %v815 = vpack.c.bf16 %v813, %v812
  %818 = vrot.lane.b32.xlu0 %v814, 8
  %v819 = vpop.permute.xlu0 %818
  %820 = vrot.lane.b32.xlu0 %v815, 8
  %v821 = vpop.permute.xlu0 %820
  %vm822 = vcmask 64512
  %v824 = vsel %vm822, 0, %v819
  %v827 = vsel %vm822, 0, %v821
  %v829 = vshrl.u32 %v824, 16
  %v831 = vrot.slane %v829, 7
  %v832 = vshll.u32 %v824, 16
  %v834 = vor.u32 %v831, %v832
  %v835 = vshrl.u32 %v827, 16
  %v837 = vrot.slane %v835, 7
  %v838 = vshll.u32 %v827, 16
  %v840 = vor.u32 %v837, %v838
  %v841 = vsel %vm105, %v831, %v840
  %v844 = vsel %vm122, 0, %v834
  %v845 = vsel %vm138, %v844, 0
  %v846 = vsel %vm139, %v841, 0
  %v848 = vshrl.u32 %v814, 16
  %v850 = vrot.slane %v848, 7
  %v851 = vshll.u32 %v814, 16
  %v853 = vor.u32 %v850, %v851
  %v855 = vshrl.u32 %v815, 16
  %v857 = vrot.slane %v855, 7
  %v858 = vshll.u32 %v815, 16
  %v860 = vor.u32 %v857, %v858
  %v861 = vsel %vm105, %v850, %v860
  %v864 = vsel %vm122, 0, %v853
  %v865 = vsel %vm138, %v864, 0
  %v866 = vsel %vm139, %v861, 0
  %867 = vrot.lane.b32.xlu0 %v814, 120
  %v868 = vpop.permute.xlu0 %867
  %869 = vrot.lane.b32.xlu0 %v815, 120
  %v870 = vpop.permute.xlu0 %869
  %vm871 = vcmask 982016
  %v873 = vsel %vm871, %v868, 0
  %v876 = vsel %vm871, %v870, 0
  %v878 = vshrl.u32 %v873, 16
  %v880 = vrot.slane %v878, 7
  %v881 = vshll.u32 %v873, 16
  %v883 = vor.u32 %v880, %v881
  %v884 = vshrl.u32 %v876, 16
  %v886 = vrot.slane %v884, 7
  %v887 = vshll.u32 %v876, 16
  %v889 = vor.u32 %v886, %v887
  %v890 = vsel %vm105, %v880, %v889
  %v893 = vsel %vm122, 0, %v883
  %v894 = vsel %vm138, %v893, 0
  %v895 = vsel %vm139, %v890, 0
  %v896 = vrot.slane %v832, 1
  %v897 = vor.u32 %v829, %v896
  %v898 = vrot.slane %v838, 1
  %v899 = vsel %vm189, %v897, %v898
  %v900 = vor.u32 %v835, %v898
  %v903 = vsel %vm198, %v900, 0
  %v904 = vsel %vm214, %v899, 0
  %v905 = vsel %vm215, %v903, 0
  %v906 = vrot.slane %v851, 1
  %v907 = vor.u32 %v848, %v906
  %v908 = vrot.slane %v858, 1
  %v909 = vsel %vm189, %v907, %v908
  %v910 = vor.u32 %v855, %v908
  %v913 = vsel %vm198, %v910, 0
  %v914 = vsel %vm214, %v909, 0
  %v915 = vsel %vm215, %v913, 0
  %v916 = vrot.slane %v881, 1
  %v917 = vor.u32 %v878, %v916
  %v918 = vrot.slane %v887, 1
  %v919 = vsel %vm189, %v917, %v918
  %v920 = vor.u32 %v884, %v918
  %v923 = vsel %vm198, %v920, 0
  %v924 = vsel %vm214, %v919, 0
  %v925 = vsel %vm215, %v923, 0
  %v926 = vld [vmem:[%s2] sm:$0xf]
  %v927 = vld [vmem:[%s2 + $0x4] sm:$0xf]
  %v928 = vld [vmem:[%s2 + $0x8] sm:$0xf]
  %v929 = vld [vmem:[%s2 + $0xc] sm:$0xf]
  %v930 = vld [vmem:[%s2 + $0x10] sm:$0xf]
  %v931 = vld [vmem:[%s2 + $0x14] sm:$0xf]
  %v932 = vld [vmem:[%s2 + $0x18] sm:$0xf]
  %v933 = vld [vmem:[%s2 + $0x1c] sm:$0xf]
  %v934 = vld [vmem:[%s2 + $0x20] sm:$0xf]
  %v935 = vld [vmem:[%s2 + $0x24] sm:$0xf]
  %v936 = vld [vmem:[%s2 + $0x28] sm:$0xf]
  %v937 = vld [vmem:[%s2 + $0x2c] sm:$0xf]
  %v938 = vld [vmem:[%s2 + $0x30] sm:$0xf]
  %v939 = vld [vmem:[%s2 + $0x34] sm:$0xf]
  %v940 = vld [vmem:[%s2 + $0x38] sm:$0xf]
  %v941 = vld [vmem:[%s2 + $0x3c] sm:$0xf]
  %v942 = vld [vmem:[%s2 + $0x40] sm:$0xf]
  %v943 = vld [vmem:[%s2 + $0x44] sm:$0xf]
  %v944 = vld [vmem:[%s2 + $0x48] sm:$0xf]
  %v945 = vld [vmem:[%s2 + $0x4c] sm:$0xf]
  %v946 = vld [vmem:[%s2 + $0x50] sm:$0xf]
  %v947 = vld [vmem:[%s2 + $0x54] sm:$0xf]
  %v948 = vld [vmem:[%s2 + $0x58] sm:$0xf]
  %v949 = vld [vmem:[%s2 + $0x5c] sm:$0xf]
  %v950 = vld [vmem:[%s2 + $0x60] sm:$0xf]
  %v951 = vld [vmem:[%s2 + $0x64] sm:$0xf]
  %v952 = vld [vmem:[%s2 + $0x68] sm:$0xf]
  %v953 = vld [vmem:[%s2 + $0x6c] sm:$0xf]
  %v954 = vld [vmem:[%s2 + $0x70] sm:$0xf]
  %v955 = vld [vmem:[%s2 + $0x74] sm:$0xf]
  %v956 = vld [vmem:[%s2 + $0x78] sm:$0xf]
  %v957 = vld [vmem:[%s2 + $0x7c] sm:$0xf]
  %v958 = vld [vmem:[%s2 + $0x80] sm:$0xf]
  %v959 = vld [vmem:[%s2 + $0x84] sm:$0xf]
  %v960 = vld [vmem:[%s2 + $0x88] sm:$0xf]
  %v961 = vld [vmem:[%s2 + $0x8c] sm:$0xf]
  %v962 = vld [vmem:[%s2 + $0x90] sm:$0xf]
  %v963 = vld [vmem:[%s2 + $0x94] sm:$0xf]
  %v964 = vld [vmem:[%s2 + $0x98] sm:$0xf]
  %v965 = vld [vmem:[%s2 + $0x9c] sm:$0xf]
  %v966 = vld [vmem:[%s2 + $0xa0] sm:$0xf]
  %v967 = vld [vmem:[%s2 + $0xa4] sm:$0xf]
  %v968 = vld [vmem:[%s2 + $0xa8] sm:$0xf]
  %v969 = vld [vmem:[%s2 + $0xac] sm:$0xf]
  %v970 = vld [vmem:[%s2 + $0xb0] sm:$0xf]
  %v971 = vld [vmem:[%s2 + $0xb4] sm:$0xf]
  %v972 = vld [vmem:[%s2 + $0xb8] sm:$0xf]
  %v973 = vld [vmem:[%s2 + $0xbc] sm:$0xf]
  %v974 = vld [vmem:[%s2 + $0xc0] sm:$0xf]
  %v975 = vld [vmem:[%s2 + $0xc4] sm:$0xf]
  %v976 = vld [vmem:[%s2 + $0xc8] sm:$0xf]
  %v977 = vld [vmem:[%s2 + $0xcc] sm:$0xf]
  %v978 = vld [vmem:[%s2 + $0xd0] sm:$0xf]
  %v979 = vld [vmem:[%s2 + $0xd4] sm:$0xf]
  %v980 = vld [vmem:[%s2 + $0xd8] sm:$0xf]
  %v981 = vld [vmem:[%s2 + $0xdc] sm:$0xf]
  %v982 = vld [vmem:[%s2 + $0xe0] sm:$0xf]
  %v983 = vld [vmem:[%s2 + $0xe4] sm:$0xf]
  %v984 = vld [vmem:[%s2 + $0xe8] sm:$0xf]
  %v985 = vld [vmem:[%s2 + $0xec] sm:$0xf]
  %v986 = vld [vmem:[%s2 + $0xf0] sm:$0xf]
  %v987 = vld [vmem:[%s2 + $0xf4] sm:$0xf]
  %v988 = vld [vmem:[%s2 + $0xf8] sm:$0xf]
  %v989 = vld [vmem:[%s2 + $0xfc] sm:$0xf]
  %v990 = vld [vmem:[%s2 + $0x100] sm:$0xf]
  %v991 = vld [vmem:[%s2 + $0x104] sm:$0xf]
  %v992 = vld [vmem:[%s2 + $0x108] sm:$0xf]
  %v993 = vld [vmem:[%s2 + $0x10c] sm:$0xf]
  %v994 = vld [vmem:[%s2 + $0x110] sm:$0xf]
  %v995 = vld [vmem:[%s2 + $0x114] sm:$0xf]
  %v996 = vld [vmem:[%s2 + $0x118] sm:$0xf]
  %v997 = vld [vmem:[%s2 + $0x11c] sm:$0xf]
  %v998 = vld [vmem:[%s2 + $0x120] sm:$0xf]
  %v999 = vld [vmem:[%s2 + $0x124] sm:$0xf]
  %v1000 = vld [vmem:[%s2 + $0x128] sm:$0xf]
  %v1001 = vld [vmem:[%s2 + $0x12c] sm:$0xf]
  %v1002 = vld [vmem:[%s2 + $0x130] sm:$0xf]
  %v1003 = vld [vmem:[%s2 + $0x134] sm:$0xf]
  %v1004 = vld [vmem:[%s2 + $0x138] sm:$0xf]
  %v1005 = vld [vmem:[%s2 + $0x13c] sm:$0xf]
  %v1006 = vld [vmem:[%s2 + $0x140] sm:$0xf]
  %v1007 = vld [vmem:[%s2 + $0x144] sm:$0xf]
  %v1008 = vld [vmem:[%s2 + $0x148] sm:$0xf]
  %v1009 = vld [vmem:[%s2 + $0x14c] sm:$0xf]
  %v1010 = vld [vmem:[%s2 + $0x150] sm:$0xf]
  %v1011 = vld [vmem:[%s2 + $0x154] sm:$0xf]
  %v1012 = vld [vmem:[%s2 + $0x158] sm:$0xf]
  %v1013 = vld [vmem:[%s2 + $0x15c] sm:$0xf]
  %v1014 = vld [vmem:[%s2 + $0x160] sm:$0xf]
  %v1015 = vld [vmem:[%s2 + $0x164] sm:$0xf]
  %v1016 = vld [vmem:[%s2 + $0x168] sm:$0xf]
  %v1017 = vld [vmem:[%s2 + $0x16c] sm:$0xf]
  %v1018 = vld [vmem:[%s2 + $0x170] sm:$0xf]
  %v1019 = vld [vmem:[%s2 + $0x174] sm:$0xf]
  %v1020 = vld [vmem:[%s2 + $0x178] sm:$0xf]
  %v1021 = vld [vmem:[%s2 + $0x17c] sm:$0xf]
  %v1022 = vld [vmem:[%s2 + $0x180] sm:$0xf]
  %v1023 = vld [vmem:[%s2 + $0x184] sm:$0xf]
  %v1024 = vld [vmem:[%s2 + $0x188] sm:$0xf]
  %v1025 = vld [vmem:[%s2 + $0x18c] sm:$0xf]
  %v1026 = vld [vmem:[%s2 + $0x190] sm:$0xf]
  %v1027 = vld [vmem:[%s2 + $0x194] sm:$0xf]
  %v1028 = vld [vmem:[%s2 + $0x198] sm:$0xf]
  %v1029 = vld [vmem:[%s2 + $0x19c] sm:$0xf]
  %v1030 = vld [vmem:[%s2 + $0x1a0] sm:$0xf]
  %v1031 = vld [vmem:[%s2 + $0x1a4] sm:$0xf]
  %v1032 = vld [vmem:[%s2 + $0x1a8] sm:$0xf]
  %v1033 = vld [vmem:[%s2 + $0x1ac] sm:$0xf]
  %v1034 = vld [vmem:[%s2 + $0x1b0] sm:$0xf]
  %v1035 = vld [vmem:[%s2 + $0x1b4] sm:$0xf]
  %v1036 = vld [vmem:[%s2 + $0x1b8] sm:$0xf]
  %v1037 = vld [vmem:[%s2 + $0x1bc] sm:$0xf]
  %v1038 = vld [vmem:[%s2 + $0x1c0] sm:$0xf]
  %v1039 = vld [vmem:[%s2 + $0x1c4] sm:$0xf]
  %v1040 = vld [vmem:[%s2 + $0x1c8] sm:$0xf]
  %v1041 = vld [vmem:[%s2 + $0x1cc] sm:$0xf]
  %v1042 = vld [vmem:[%s2 + $0x1d0] sm:$0xf]
  %v1043 = vld [vmem:[%s2 + $0x1d4] sm:$0xf]
  %v1044 = vld [vmem:[%s2 + $0x1d8] sm:$0xf]
  %v1045 = vld [vmem:[%s2 + $0x1dc] sm:$0xf]
  %v1046 = vld [vmem:[%s2 + $0x1e0] sm:$0xf]
  %v1047 = vld [vmem:[%s2 + $0x1e4] sm:$0xf]
  %v1048 = vld [vmem:[%s2 + $0x1e8] sm:$0xf]
  %v1049 = vld [vmem:[%s2 + $0x1ec] sm:$0xf]
  %v1050 = vld [vmem:[%s2 + $0x1f0] sm:$0xf]
  %v1051 = vld [vmem:[%s2 + $0x1f4] sm:$0xf]
  %v1052 = vld [vmem:[%s2 + $0x1f8] sm:$0xf]
  %v1053 = vld [vmem:[%s2 + $0x1fc] sm:$0xf]
  %v1054 = vld [vmem:[%s2 + $0x200] sm:$0xf]
  %v1055 = vld [vmem:[%s2 + $0x204] sm:$0xf]
  %v1056 = vld [vmem:[%s2 + $0x208] sm:$0xf]
  %v1057 = vld [vmem:[%s2 + $0x20c] sm:$0xf]
  %v1058 = vld [vmem:[%s2 + $0x210] sm:$0xf]
  %v1059 = vld [vmem:[%s2 + $0x214] sm:$0xf]
  %v1060 = vld [vmem:[%s2 + $0x218] sm:$0xf]
  %v1061 = vld [vmem:[%s2 + $0x21c] sm:$0xf]
  %v1062 = vld [vmem:[%s2 + $0x220] sm:$0xf]
  %v1063 = vld [vmem:[%s2 + $0x224] sm:$0xf]
  %v1064 = vld [vmem:[%s2 + $0x228] sm:$0xf]
  %v1065 = vld [vmem:[%s2 + $0x22c] sm:$0xf]
  %v1066 = vld [vmem:[%s2 + $0x230] sm:$0xf]
  %v1067 = vld [vmem:[%s2 + $0x234] sm:$0xf]
  %v1068 = vld [vmem:[%s2 + $0x238] sm:$0xf]
  %v1069 = vld [vmem:[%s2 + $0x23c] sm:$0xf]
  %s1070 = scalar_lea.vmem %s5, 4
  %v1071 = vld [vmem:[%s1070] sm:$0x7]
  %v1072 = vlaneseq
  %v1073 = vshrl.u32 %v1072, 7
  %v1074 = vsub.s32 0, %v1073
  %v1075 = vrot.slane %v1071, %v1074
  %v1220 = vunpack.c.l.b16 %v926
  %v1221 = vunpack.c.l.b16 %v927
  %v1222 = vunpack.c.l.b16 %v928
  %v1223 = vunpack.c.l.b16 %v929
  %v1224 = vunpack.c.l.b16 %v930
  %v1225 = vunpack.c.l.b16 %v931
  %v1226 = vunpack.c.l.b16 %v932
  %v1227 = vunpack.c.l.b16 %v933
  %v1228 = vunpack.c.l.b16 %v934
  %v1229 = vunpack.c.l.b16 %v935
  %v1230 = vunpack.c.l.b16 %v936
  %v1231 = vunpack.c.l.b16 %v937
  %v1232 = vunpack.c.l.b16 %v938
  %v1233 = vunpack.c.l.b16 %v939
  %v1234 = vunpack.c.l.b16 %v940
  %v1235 = vunpack.c.l.b16 %v941
  %v1236 = vunpack.c.l.b16 %v942
  %v1237 = vunpack.c.l.b16 %v943
  %v1238 = vunpack.c.l.b16 %v944
  %v1239 = vunpack.c.l.b16 %v945
  %v1240 = vunpack.c.l.b16 %v946
  %v1241 = vunpack.c.l.b16 %v947
  %v1242 = vunpack.c.l.b16 %v948
  %v1243 = vunpack.c.l.b16 %v949
  %v1244 = vunpack.c.l.b16 %v950
  %v1245 = vunpack.c.l.b16 %v951
  %v1246 = vunpack.c.l.b16 %v952
  %v1247 = vunpack.c.l.b16 %v953
  %v1248 = vunpack.c.l.b16 %v954
  %v1249 = vunpack.c.l.b16 %v955
  %v1250 = vunpack.c.l.b16 %v956
  %v1251 = vunpack.c.l.b16 %v957
  %v1252 = vunpack.c.l.b16 %v958
  %v1253 = vunpack.c.l.b16 %v959
  %v1254 = vunpack.c.l.b16 %v960
  %v1255 = vunpack.c.l.b16 %v961
  %v1256 = vunpack.c.l.b16 %v962
  %v1257 = vunpack.c.l.b16 %v963
  %v1258 = vunpack.c.l.b16 %v964
  %v1259 = vunpack.c.l.b16 %v965
  %v1260 = vunpack.c.l.b16 %v966
  %v1261 = vunpack.c.l.b16 %v967
  %v1262 = vunpack.c.l.b16 %v968
  %v1263 = vunpack.c.l.b16 %v969
  %v1264 = vunpack.c.l.b16 %v970
  %v1265 = vunpack.c.l.b16 %v971
  %v1266 = vunpack.c.l.b16 %v972
  %v1267 = vunpack.c.l.b16 %v973
  %v1268 = vunpack.c.l.b16 %v974
  %v1269 = vunpack.c.l.b16 %v975
  %v1270 = vunpack.c.l.b16 %v976
  %v1271 = vunpack.c.l.b16 %v977
  %v1272 = vunpack.c.l.b16 %v978
  %v1273 = vunpack.c.l.b16 %v979
  %v1274 = vunpack.c.l.b16 %v980
  %v1275 = vunpack.c.l.b16 %v981
  %v1276 = vunpack.c.l.b16 %v982
  %v1277 = vunpack.c.l.b16 %v983
  %v1278 = vunpack.c.l.b16 %v984
  %v1279 = vunpack.c.l.b16 %v985
  %v1280 = vunpack.c.l.b16 %v986
  %v1281 = vunpack.c.l.b16 %v987
  %v1282 = vunpack.c.l.b16 %v988
  %v1283 = vunpack.c.l.b16 %v989
  %v1284 = vunpack.c.l.b16 %v990
  %v1285 = vunpack.c.l.b16 %v991
  %v1286 = vunpack.c.l.b16 %v992
  %v1287 = vunpack.c.l.b16 %v993
  %v1288 = vunpack.c.l.b16 %v994
  %v1289 = vunpack.c.l.b16 %v995
  %v1290 = vunpack.c.l.b16 %v996
  %v1291 = vunpack.c.l.b16 %v997
  %v1292 = vunpack.c.l.b16 %v998
  %v1293 = vunpack.c.l.b16 %v999
  %v1294 = vunpack.c.l.b16 %v1000
  %v1295 = vunpack.c.l.b16 %v1001
  %v1296 = vunpack.c.l.b16 %v1002
  %v1297 = vunpack.c.l.b16 %v1003
  %v1298 = vunpack.c.l.b16 %v1004
  %v1299 = vunpack.c.l.b16 %v1005
  %v1300 = vunpack.c.l.b16 %v1006
  %v1301 = vunpack.c.l.b16 %v1007
  %v1302 = vunpack.c.l.b16 %v1008
  %v1303 = vunpack.c.l.b16 %v1009
  %v1304 = vunpack.c.l.b16 %v1010
  %v1305 = vunpack.c.l.b16 %v1011
  %v1306 = vunpack.c.l.b16 %v1012
  %v1307 = vunpack.c.l.b16 %v1013
  %v1308 = vunpack.c.l.b16 %v1014
  %v1309 = vunpack.c.l.b16 %v1015
  %v1310 = vunpack.c.l.b16 %v1016
  %v1311 = vunpack.c.l.b16 %v1017
  %v1312 = vunpack.c.l.b16 %v1018
  %v1313 = vunpack.c.l.b16 %v1019
  %v1314 = vunpack.c.l.b16 %v1020
  %v1315 = vunpack.c.l.b16 %v1021
  %v1316 = vunpack.c.l.b16 %v1022
  %v1317 = vunpack.c.l.b16 %v1023
  %v1318 = vunpack.c.l.b16 %v1024
  %v1319 = vunpack.c.l.b16 %v1025
  %v1320 = vunpack.c.l.b16 %v1026
  %v1321 = vunpack.c.l.b16 %v1027
  %v1322 = vunpack.c.l.b16 %v1028
  %v1323 = vunpack.c.l.b16 %v1029
  %v1324 = vunpack.c.l.b16 %v1030
  %v1325 = vunpack.c.l.b16 %v1031
  %v1326 = vunpack.c.l.b16 %v1032
  %v1327 = vunpack.c.l.b16 %v1033
  %v1328 = vunpack.c.l.b16 %v1034
  %v1329 = vunpack.c.l.b16 %v1035
  %v1330 = vunpack.c.l.b16 %v1036
  %v1331 = vunpack.c.l.b16 %v1037
  %v1332 = vunpack.c.l.b16 %v1038
  %v1333 = vunpack.c.l.b16 %v1039
  %v1334 = vunpack.c.l.b16 %v1040
  %v1335 = vunpack.c.l.b16 %v1041
  %v1336 = vunpack.c.l.b16 %v1042
  %v1337 = vunpack.c.l.b16 %v1043
  %v1338 = vunpack.c.l.b16 %v1044
  %v1339 = vunpack.c.l.b16 %v1045
  %v1340 = vunpack.c.l.b16 %v1046
  %v1341 = vunpack.c.l.b16 %v1047
  %v1342 = vunpack.c.l.b16 %v1048
  %v1343 = vunpack.c.l.b16 %v1049
  %v1344 = vunpack.c.l.b16 %v1050
  %v1345 = vunpack.c.l.b16 %v1051
  %v1346 = vunpack.c.l.b16 %v1052
  %v1347 = vunpack.c.l.b16 %v1053
  %v1348 = vunpack.c.l.b16 %v1054
  %v1349 = vunpack.c.l.b16 %v1055
  %v1350 = vunpack.c.l.b16 %v1056
  %v1351 = vunpack.c.l.b16 %v1057
  %v1352 = vunpack.c.l.b16 %v1058
  %v1353 = vunpack.c.l.b16 %v1059
  %v1354 = vunpack.c.l.b16 %v1060
  %v1355 = vunpack.c.l.b16 %v1061
  %v1356 = vunpack.c.l.b16 %v1062
  %v1357 = vunpack.c.l.b16 %v1063
  %v1358 = vunpack.c.l.b16 %v1064
  %v1359 = vunpack.c.l.b16 %v1065
  %v1360 = vunpack.c.l.b16 %v1066
  %v1361 = vunpack.c.l.b16 %v1067
  %v1362 = vunpack.c.l.b16 %v1068
  %v1363 = vunpack.c.l.b16 %v1069
  %v1364 = vpack.c.b16 %v1221, %v1220
  %v1365 = vpack.c.b16 %v1223, %v1222
  %v1366 = vpack.c.b16 %v1225, %v1224
  %v1367 = vpack.c.b16 %v1227, %v1226
  %v1368 = vpack.c.b16 %v1229, %v1228
  %v1369 = vpack.c.b16 %v1231, %v1230
  %v1370 = vpack.c.b16 %v1233, %v1232
  %v1371 = vpack.c.b16 %v1235, %v1234
  %v1372 = vpack.c.b16 %v1237, %v1236
  %v1373 = vpack.c.b16 %v1239, %v1238
  %v1374 = vpack.c.b16 %v1241, %v1240
  %v1375 = vpack.c.b16 %v1243, %v1242
  %v1376 = vpack.c.b16 %v1245, %v1244
  %v1377 = vpack.c.b16 %v1247, %v1246
  %v1378 = vpack.c.b16 %v1249, %v1248
  %v1379 = vpack.c.b16 %v1251, %v1250
  %v1380 = vpack.c.b16 %v1253, %v1252
  %v1381 = vpack.c.b16 %v1255, %v1254
  %v1382 = vpack.c.b16 %v1257, %v1256
  %v1383 = vpack.c.b16 %v1259, %v1258
  %v1384 = vpack.c.b16 %v1261, %v1260
  %v1385 = vpack.c.b16 %v1263, %v1262
  %v1386 = vpack.c.b16 %v1265, %v1264
  %v1387 = vpack.c.b16 %v1267, %v1266
  %v1388 = vpack.c.b16 %v1269, %v1268
  %v1389 = vpack.c.b16 %v1271, %v1270
  %v1390 = vpack.c.b16 %v1273, %v1272
  %v1391 = vpack.c.b16 %v1275, %v1274
  %v1392 = vpack.c.b16 %v1277, %v1276
  %v1393 = vpack.c.b16 %v1279, %v1278
  %v1394 = vpack.c.b16 %v1281, %v1280
  %v1395 = vpack.c.b16 %v1283, %v1282
  %v1396 = vpack.c.b16 %v1285, %v1284
  %v1397 = vpack.c.b16 %v1287, %v1286
  %v1398 = vpack.c.b16 %v1289, %v1288
  %v1399 = vpack.c.b16 %v1291, %v1290
  %v1400 = vpack.c.b16 %v1293, %v1292
  %v1401 = vpack.c.b16 %v1295, %v1294
  %v1402 = vpack.c.b16 %v1297, %v1296
  %v1403 = vpack.c.b16 %v1299, %v1298
  %v1404 = vpack.c.b16 %v1301, %v1300
  %v1405 = vpack.c.b16 %v1303, %v1302
  %v1406 = vpack.c.b16 %v1305, %v1304
  %v1407 = vpack.c.b16 %v1307, %v1306
  %v1408 = vpack.c.b16 %v1309, %v1308
  %v1409 = vpack.c.b16 %v1311, %v1310
  %v1410 = vpack.c.b16 %v1313, %v1312
  %v1411 = vpack.c.b16 %v1315, %v1314
  %v1412 = vpack.c.b16 %v1317, %v1316
  %v1413 = vpack.c.b16 %v1319, %v1318
  %v1414 = vpack.c.b16 %v1321, %v1320
  %v1415 = vpack.c.b16 %v1323, %v1322
  %v1416 = vpack.c.b16 %v1325, %v1324
  %v1417 = vpack.c.b16 %v1327, %v1326
  %v1418 = vpack.c.b16 %v1329, %v1328
  %v1419 = vpack.c.b16 %v1331, %v1330
  %v1420 = vpack.c.b16 %v1333, %v1332
  %v1421 = vpack.c.b16 %v1335, %v1334
  %v1422 = vpack.c.b16 %v1337, %v1336
  %v1423 = vpack.c.b16 %v1339, %v1338
  %v1424 = vpack.c.b16 %v1341, %v1340
  %v1425 = vpack.c.b16 %v1343, %v1342
  %v1426 = vpack.c.b16 %v1345, %v1344
  %v1427 = vpack.c.b16 %v1347, %v1346
  %v1428 = vpack.c.b16 %v1349, %v1348
  %v1429 = vpack.c.b16 %v1351, %v1350
  %v1430 = vpack.c.b16 %v1353, %v1352
  %v1431 = vpack.c.b16 %v1355, %v1354
  %v1432 = vpack.c.b16 %v1357, %v1356
  %v1433 = vpack.c.b16 %v1359, %v1358
  %v1434 = vpack.c.b16 %v1361, %v1360
  %v1435 = vpack.c.b16 %v1363, %v1362
  %1508 = vmatprep.subr.bf16.mxu0 0
  %1509 = vmatpush1.bf16.msra.mxu0 %v1364
  %1510 = vmatprep.subr.bf16.mxu0 0
  %1511 = vmatpush1.bf16.msra.mxu0 %v1365
  %1512 = vmatprep.subr.bf16.mxu0 0
  %1513 = vmatpush1.bf16.msra.mxu0 %v1366
  %1514 = vmatprep.subr.bf16.mxu0 0
  %1515 = vmatpush1.bf16.msra.mxu0 %v1367
  %1516 = vmatprep.subr.bf16.mxu0 0
  %1517 = vmatpush1.bf16.msra.mxu0 %v1368
  %1518 = vmatprep.subr.bf16.mxu0 0
  %1519 = vmatpush1.bf16.msra.mxu0 %v1369
  %1520 = vmatprep.subr.bf16.mxu0 0
  %1521 = vmatpush1.bf16.msra.mxu0 %v1370
  %1522 = vmatprep.subr.bf16.mxu0 0
  %1523 = vmatpush1.bf16.msra.mxu0 %v1371
  %1524 = vmatprep.subr.bf16.mxu0 0
  %1525 = vmatpush1.bf16.msra.mxu0 %v1372
  %1526 = vmatprep.subr.bf16.mxu0 0
  %1527 = vmatpush1.bf16.msra.mxu0 %v1373
  %1528 = vmatprep.subr.bf16.mxu0 0
  %1529 = vmatpush1.bf16.msra.mxu0 %v1374
  %1530 = vmatprep.subr.bf16.mxu0 0
  %1531 = vmatpush1.bf16.msra.mxu0 %v1375
  %1532 = vmatprep.subr.bf16.mxu0 0
  %1533 = vmatpush1.bf16.msra.mxu0 %v1376
  %1534 = vmatprep.subr.bf16.mxu0 0
  %1535 = vmatpush1.bf16.msra.mxu0 %v1377
  %1536 = vmatprep.subr.bf16.mxu0 0
  %1537 = vmatpush1.bf16.msra.mxu0 %v1378
  %1538 = vmatprep.subr.bf16.mxu0 0
  %1539 = vmatpush1.bf16.msra.mxu0 %v1379
  %1540 = vmatprep.mubr.bf16.mxu0 %v865
  %1541 = vmatmul.mubr.bf16.gmra.mrb[0].mxu0 %v845
  %v1542 = vpop.f32.mrb[0].mxu0
  %v1543 = vadd.f32 %v1075, %v1542
  %v1544 = vpop.f32.mrb[0].mxu0
  %v1545 = vpop.f32.mrb[0].mxu0
  %v1546 = vadd.f32 %v1075, %v1545
  %v1547 = vpop.f32.mrb[0].mxu0
  %1548 = vmatprep.mubr.bf16.mxu0 %v866
  %1549 = vmatmul.mubr.bf16.gmra.mrb[0].mxu0 %v846
  %v1550 = vpop.f32.mrb[0].mxu0
  %v1551 = vadd.f32 %v1075, %v1550
  %v1552 = vpop.f32.mrb[0].mxu0
  %v1553 = vpop.f32.mrb[0].mxu0
  %v1554 = vadd.f32 %v1075, %v1553
  %v1555 = vpop.f32.mrb[0].mxu0
  %1556 = vdwg.mxu0
  %1557 = vmatprep.subr.bf16.mxu0 0
  %1558 = vmatpush1.bf16.msra.mxu0 %v1380
  %1559 = vmatprep.subr.bf16.mxu0 0
  %1560 = vmatpush1.bf16.msra.mxu0 %v1381
  %1561 = vmatprep.subr.bf16.mxu0 0
  %1562 = vmatpush1.bf16.msra.mxu0 %v1382
  %1563 = vmatprep.subr.bf16.mxu0 0
  %1564 = vmatpush1.bf16.msra.mxu0 %v1383
  %1565 = vmatprep.subr.bf16.mxu0 0
  %1566 = vmatpush1.bf16.msra.mxu0 %v1384
  %1567 = vmatprep.subr.bf16.mxu0 0
  %1568 = vmatpush1.bf16.msra.mxu0 %v1385
  %1569 = vmatprep.subr.bf16.mxu0 0
  %1570 = vmatpush1.bf16.msra.mxu0 %v1386
  %1571 = vmatprep.subr.bf16.mxu0 0
  %1572 = vmatpush1.bf16.msra.mxu0 %v1387
  %1573 = vmatprep.subr.bf16.mxu0 0
  %1574 = vmatpush1.bf16.msra.mxu0 %v1388
  %1575 = vmatprep.subr.bf16.mxu0 0
  %1576 = vmatpush1.bf16.msra.mxu0 %v1389
  %1577 = vmatprep.subr.bf16.mxu0 0
  %1578 = vmatpush1.bf16.msra.mxu0 %v1390
  %1579 = vmatprep.subr.bf16.mxu0 0
  %1580 = vmatpush1.bf16.msra.mxu0 %v1391
  %1581 = vmatprep.subr.bf16.mxu0 0
  %1582 = vmatpush1.bf16.msra.mxu0 %v1392
  %1583 = vmatprep.subr.bf16.mxu0 0
  %1584 = vmatpush1.bf16.msra.mxu0 %v1393
  %1585 = vmatprep.subr.bf16.mxu0 0
  %1586 = vmatpush1.bf16.msra.mxu0 %v1394
  %1587 = vmatprep.subr.bf16.mxu0 0
  %1588 = vmatpush1.bf16.msra.mxu0 %v1395
  %1589 = vmatprep.mubr.bf16.mxu0 %v824
  %1590 = vmatmul.mubr.bf16.gmra.mrb[0].mxu0 %v894
  %v1591 = vpop.f32.mrb[0].mxu0
  %v1592 = vadd.f32 %v1543, %v1591
  %v1593 = vpop.f32.mrb[0].mxu0
  %v1594 = vpop.f32.mrb[0].mxu0
  %v1595 = vadd.f32 %v1546, %v1594
  %v1596 = vpop.f32.mrb[0].mxu0
  %1597 = vmatprep.mubr.bf16.mxu0 %v827
  %1598 = vmatmul.mubr.bf16.gmra.mrb[0].mxu0 %v895
  %v1599 = vpop.f32.mrb[0].mxu0
  %v1600 = vadd.f32 %v1551, %v1599
  %v1601 = vpop.f32.mrb[0].mxu0
  %v1602 = vpop.f32.mrb[0].mxu0
  %v1603 = vadd.f32 %v1554, %v1602
  %v1604 = vpop.f32.mrb[0].mxu0
  %1605 = vdwg.mxu0
  %1606 = vmatprep.subr.bf16.mxu0 0
  %1607 = vmatpush1.bf16.msra.mxu0 %v1396
  %1608 = vmatprep.subr.bf16.mxu0 0
  %1609 = vmatpush1.bf16.msra.mxu0 %v1397
  %1610 = vmatprep.subr.bf16.mxu0 0
  %1611 = vmatpush1.bf16.msra.mxu0 %v1398
  %1612 = vmatprep.subr.bf16.mxu0 0
  %1613 = vmatpush1.bf16.msra.mxu0 %v1399
  %1614 = vmatprep.subr.bf16.mxu0 0
  %1615 = vmatpush1.bf16.msra.mxu0 %v1400
  %1616 = vmatprep.subr.bf16.mxu0 0
  %1617 = vmatpush1.bf16.msra.mxu0 %v1401
  %1618 = vmatprep.subr.bf16.mxu0 0
  %1619 = vmatpush1.bf16.msra.mxu0 %v1402
  %1620 = vmatprep.subr.bf16.mxu0 0
  %1621 = vmatpush1.bf16.msra.mxu0 %v1403
  %1622 = vmatprep.subr.bf16.mxu0 0
  %1623 = vmatpush1.bf16.msra.mxu0 %v1404
  %1624 = vmatprep.subr.bf16.mxu0 0
  %1625 = vmatpush1.bf16.msra.mxu0 %v1405
  %1626 = vmatprep.subr.bf16.mxu0 0
  %1627 = vmatpush1.bf16.msra.mxu0 %v1406
  %1628 = vmatprep.subr.bf16.mxu0 0
  %1629 = vmatpush1.bf16.msra.mxu0 %v1407
  %1630 = vmatprep.subr.bf16.mxu0 0
  %1631 = vmatpush1.bf16.msra.mxu0 %v1408
  %1632 = vmatprep.subr.bf16.mxu0 0
  %1633 = vmatpush1.bf16.msra.mxu0 %v1409
  %1634 = vmatprep.subr.bf16.mxu0 0
  %1635 = vmatpush1.bf16.msra.mxu0 %v1410
  %1636 = vmatprep.subr.bf16.mxu0 0
  %1637 = vmatpush1.bf16.msra.mxu0 %v1411
  %1638 = vmatprep.mubr.bf16.mxu0 %v873
  %1639 = vmatmul.mubr.bf16.gmra.mrb[0].mxu0 %v814
  %v1640 = vpop.f32.mrb[0].mxu0
  %v1641 = vadd.f32 %v1592, %v1640
  %v1642 = vpop.f32.mrb[0].mxu0
  %v1643 = vpop.f32.mrb[0].mxu0
  %v1644 = vadd.f32 %v1595, %v1643
  %v1645 = vpop.f32.mrb[0].mxu0
  %1646 = vmatprep.mubr.bf16.mxu0 %v876
  %1647 = vmatmul.mubr.bf16.gmra.mrb[0].mxu0 %v815
  %v1648 = vpop.f32.mrb[0].mxu0
  %v1649 = vadd.f32 %v1600, %v1648
  %v1650 = vpop.f32.mrb[0].mxu0
  %v1651 = vpop.f32.mrb[0].mxu0
  %v1652 = vadd.f32 %v1603, %v1651
  %v1653 = vpop.f32.mrb[0].mxu0
  %1654 = vdwg.mxu0
  %1655 = vmatprep.subr.bf16.mxu0 0
  %1656 = vmatpush1.bf16.msra.mxu0 %v1412
  %1657 = vmatprep.subr.bf16.mxu0 0
  %1658 = vmatpush1.bf16.msra.mxu0 %v1413
  %1659 = vmatprep.subr.bf16.mxu0 0
  %1660 = vmatpush1.bf16.msra.mxu0 %v1414
  %1661 = vmatprep.subr.bf16.mxu0 0
  %1662 = vmatpush1.bf16.msra.mxu0 %v1415
  %1663 = vmatprep.subr.bf16.mxu0 0
  %1664 = vmatpush1.bf16.msra.mxu0 %v1416
  %1665 = vmatprep.subr.bf16.mxu0 0
  %1666 = vmatpush1.bf16.msra.mxu0 %v1417
  %1667 = vmatprep.subr.bf16.mxu0 0
  %1668 = vmatpush1.bf16.msra.mxu0 %v1418
  %1669 = vmatprep.subr.bf16.mxu0 0
  %1670 = vmatpush1.bf16.msra.mxu0 %v1419
  %1671 = vmatprep.subr.bf16.mxu0 0
  %1672 = vmatpush1.bf16.msra.mxu0 %v1420
  %1673 = vmatprep.subr.bf16.mxu0 0
  %1674 = vmatpush1.bf16.msra.mxu0 %v1421
  %1675 = vmatprep.subr.bf16.mxu0 0
  %1676 = vmatpush1.bf16.msra.mxu0 %v1422
  %1677 = vmatprep.subr.bf16.mxu0 0
  %1678 = vmatpush1.bf16.msra.mxu0 %v1423
  %1679 = vmatprep.subr.bf16.mxu0 0
  %1680 = vmatpush1.bf16.msra.mxu0 %v1424
  %1681 = vmatprep.subr.bf16.mxu0 0
  %1682 = vmatpush1.bf16.msra.mxu0 %v1425
  %1683 = vmatprep.subr.bf16.mxu0 0
  %1684 = vmatpush1.bf16.msra.mxu0 %v1426
  %1685 = vmatprep.subr.bf16.mxu0 0
  %1686 = vmatpush1.bf16.msra.mxu0 %v1427
  %1687 = vmatprep.mubr.bf16.mxu0 %v914
  %1688 = vmatmul.mubr.bf16.gmra.mrb[0].mxu0 %v904
  %v1689 = vpop.f32.mrb[0].mxu0
  %v1690 = vadd.f32 %v1641, %v1689
  %v1691 = vpop.f32.mrb[0].mxu0
  %v1692 = vpop.f32.mrb[0].mxu0
  %v1693 = vadd.f32 %v1644, %v1692
  %v1694 = vpop.f32.mrb[0].mxu0
  %1695 = vmatprep.mubr.bf16.mxu0 %v915
  %1696 = vmatmul.mubr.bf16.gmra.mrb[0].mxu0 %v905
  %v1697 = vpop.f32.mrb[0].mxu0
  %v1698 = vadd.f32 %v1649, %v1697
  %v1699 = vpop.f32.mrb[0].mxu0
  %v1700 = vpop.f32.mrb[0].mxu0
  %v1701 = vadd.f32 %v1652, %v1700
  %v1702 = vpop.f32.mrb[0].mxu0
  %1703 = vdwg.mxu0
  %1704 = vmatprep.subr.bf16.mxu0 0
  %1705 = vmatpush1.bf16.msra.mxu0 %v1428
  %1706 = vmatprep.subr.bf16.mxu0 0
  %1707 = vmatpush1.bf16.msra.mxu0 %v1429
  %1708 = vmatprep.subr.bf16.mxu0 0
  %1709 = vmatpush1.bf16.msra.mxu0 %v1430
  %1710 = vmatprep.subr.bf16.mxu0 0
  %1711 = vmatpush1.bf16.msra.mxu0 %v1431
  %1712 = vmatprep.subr.bf16.mxu0 0
  %1713 = vmatpush1.bf16.msra.mxu0 %v1432
  %1714 = vmatprep.subr.bf16.mxu0 0
  %1715 = vmatpush1.bf16.msra.mxu0 %v1433
  %1716 = vmatprep.subr.bf16.mxu0 0
  %1717 = vmatpush1.bf16.msra.mxu0 %v1434
  %1718 = vmatprep.subr.bf16.mxu0 0
  %1719 = vmatpush1.bf16.msra.mxu0 %v1435
  %1720 = vmatprep.subr.bf16.mxu0 0
  %1721 = vmatpush1.bf16.msra.mxu0 0
  %1722 = vmatprep.subr.bf16.mxu0 0
  %1723 = vmatpush1.bf16.msra.mxu0 0
  %1724 = vmatprep.subr.bf16.mxu0 0
  %1725 = vmatpush1.bf16.msra.mxu0 0
  %1726 = vmatprep.subr.bf16.mxu0 0
  %1727 = vmatpush1.bf16.msra.mxu0 0
  %1728 = vmatprep.subr.bf16.mxu0 0
  %1729 = vmatpush1.bf16.msra.mxu0 0
  %1730 = vmatprep.subr.bf16.mxu0 0
  %1731 = vmatpush1.bf16.msra.mxu0 0
  %1732 = vmatprep.subr.bf16.mxu0 0
  %1733 = vmatpush1.bf16.msra.mxu0 0
  %1734 = vmatprep.subr.bf16.mxu0 0
  %1735 = vmatpush1.bf16.msra.mxu0 0
  %1736 = vmatprep.mubr.bf16.mxu0 0
  %1737 = vmatmul.mubr.bf16.gmra.mrb[0].mxu0 %v924
  %v1738 = vpop.f32.mrb[0].mxu0
  %v1739 = vadd.f32 %v1690, %v1738
  %v1740 = vpop.f32.mrb[0].mxu0
  %v1741 = vpop.f32.mrb[0].mxu0
  %v1742 = vadd.f32 %v1693, %v1741
  %v1743 = vpop.f32.mrb[0].mxu0
  %1744 = vmatprep.mubr.bf16.mxu0 0
  %1745 = vmatmul.mubr.bf16.gmra.mrb[0].mxu0 %v925
  %v1746 = vpop.f32.mrb[0].mxu0
  %v1747 = vadd.f32 %v1698, %v1746
  %v1748 = vpop.f32.mrb[0].mxu0
  %v1749 = vpop.f32.mrb[0].mxu0
  %v1750 = vadd.f32 %v1701, %v1749
  %v1751 = vpop.f32.mrb[0].mxu0
  %1752 = vdwg.mxu0
  %v1753 = vmax.f32 %v1739, 0.0
  %v1754 = vmax.f32 %v1742, 0.0
  %v1755 = vmax.f32 %v1747, 0.0
  %v1756 = vmax.f32 %v1750, 0.0
  %v1757 = vadd.f32 %v1753, %v1754
  %v1758 = vadd.f32 %v1757, %v1755
  %v1759 = vadd.f32 %v1758, %v1756
  %v1760 = vrot.slane %v1759, 4
  %v1761 = vadd.f32 %v1759, %v1760
  %v1762 = vrot.slane %v1761, 2
  %v1763 = vadd.f32 %v1761, %v1762
  %v1764 = vrot.slane %v1763, 1
  %v1765 = vadd.f32 %v1763, %v1764
  %v1766 = vmul.f32 %v1753, %v1753
  %v1767 = vmul.f32 %v1754, %v1754
  %v1768 = vmul.f32 %v1755, %v1755
  %v1769 = vmul.f32 %v1756, %v1756
  %v1770 = vadd.f32 %v1766, %v1767
  %v1771 = vadd.f32 %v1770, %v1768
  %v1772 = vadd.f32 %v1771, %v1769
  %v1773 = vrot.slane %v1772, 4
  %v1774 = vadd.f32 %v1772, %v1773
  %v1775 = vrot.slane %v1774, 2
  %v1776 = vadd.f32 %v1774, %v1775
  %v1777 = vrot.slane %v1776, 1
  %v1778 = vadd.f32 %v1776, %v1777
  %v1779 = vsel %vm765, %v1765, %v1778
  %v1780 = vsel %vm767, %v1779, 0.0
  %1781 = vrot.lane.b32.xlu0 %v1780, 8
  %v1782 = vpop.permute.xlu0 %1781
  %v1783 = vadd.f32 %v1780, %v1782
  %1784 = vrot.lane.b32.xlu0 %v1783, 16
  %v1785 = vpop.permute.xlu0 %1784
  %v1786 = vadd.f32 %v1783, %v1785
  %1787 = vrot.lane.b32.xlu0 %v1786, 32
  %v1788 = vpop.permute.xlu0 %1787
  %v1789 = vadd.f32 %v1786, %v1788
  %1790 = vrot.lane.b32.xlu0 %v1789, 64
  %v1791 = vpop.permute.xlu0 %1790
  %v1792 = vadd.f32 %v1789, %v1791
  %v1793 = vmul.f32 %v1792, 0.001953125
  %v1794 = vmul.f32 %v1793, %v1793
  %v1796 = vrot.slane %v1794, 7
  %v1798 = vsub.f32 %v1793, %v1796
  %v1799 = vadd.f32 %v1798, 1e-05
  %v1800 = vrsqrt.pop %v1799
  %v1801 = vmul.f32 %v1071, %v1800
  %v1803 = vrot.slane %v1801, 1
  %v1805 = vmul.f32 %v1793, %v1803
  %v1807 = vrot.slane %v1805, 6
  %v1809 = vsub.f32 %v1071, %v1807
  %v1810 = vlaneseq
  %v1811 = vshrl.u32 %v1810, 7
  %v1812 = vsub.s32 1, %v1811
  %v1813 = vrot.slane %v1801, %v1812
  %v1814 = vmul.f32 %v1753, %v1813
  %v1815 = vmul.f32 %v1754, %v1813
  %v1816 = vmul.f32 %v1755, %v1813
  %v1817 = vmul.f32 %v1756, %v1813
  %v1818 = vlaneseq
  %v1819 = vshrl.u32 %v1818, 7
  %v1820 = vsub.s32 2, %v1819
  %v1821 = vrot.slane %v1809, %v1820
  %v1822 = vadd.f32 %v1814, %v1821
  %v1823 = vadd.f32 %v1815, %v1821
  %v1824 = vadd.f32 %v1816, %v1821
  %v1825 = vadd.f32 %v1817, %v1821
  %v1826 = vpack.c.bf16 %v1823, %v1822
  %v1827 = vpack.c.bf16 %v1825, %v1824
  %1830 = vrot.lane.b32.xlu0 %v1826, 8
  %v1831 = vpop.permute.xlu0 %1830
  %1832 = vrot.lane.b32.xlu0 %v1827, 8
  %v1833 = vpop.permute.xlu0 %1832
  %v1835 = vsel %vm822, 0, %v1831
  %v1838 = vsel %vm822, 0, %v1833
  %v1840 = vshrl.u32 %v1835, 16
  %v1842 = vrot.slane %v1840, 7
  %v1843 = vshll.u32 %v1835, 16
  %v1845 = vor.u32 %v1842, %v1843
  %v1846 = vshrl.u32 %v1838, 16
  %v1848 = vrot.slane %v1846, 7
  %v1849 = vshll.u32 %v1838, 16
  %v1851 = vor.u32 %v1848, %v1849
  %v1852 = vsel %vm105, %v1842, %v1851
  %v1855 = vsel %vm122, 0, %v1845
  %v1856 = vsel %vm138, %v1855, 0
  %v1857 = vsel %vm139, %v1852, 0
  %v1859 = vshrl.u32 %v1826, 16
  %v1861 = vrot.slane %v1859, 7
  %v1862 = vshll.u32 %v1826, 16
  %v1864 = vor.u32 %v1861, %v1862
  %v1866 = vshrl.u32 %v1827, 16
  %v1868 = vrot.slane %v1866, 7
  %v1869 = vshll.u32 %v1827, 16
  %v1871 = vor.u32 %v1868, %v1869
  %v1872 = vsel %vm105, %v1861, %v1871
  %v1875 = vsel %vm122, 0, %v1864
  %v1876 = vsel %vm138, %v1875, 0
  %v1877 = vsel %vm139, %v1872, 0
  %1878 = vrot.lane.b32.xlu0 %v1826, 120
  %v1879 = vpop.permute.xlu0 %1878
  %1880 = vrot.lane.b32.xlu0 %v1827, 120
  %v1881 = vpop.permute.xlu0 %1880
  %v1883 = vsel %vm871, %v1879, 0
  %v1886 = vsel %vm871, %v1881, 0
  %v1888 = vshrl.u32 %v1883, 16
  %v1890 = vrot.slane %v1888, 7
  %v1891 = vshll.u32 %v1883, 16
  %v1893 = vor.u32 %v1890, %v1891
  %v1894 = vshrl.u32 %v1886, 16
  %v1896 = vrot.slane %v1894, 7
  %v1897 = vshll.u32 %v1886, 16
  %v1899 = vor.u32 %v1896, %v1897
  %v1900 = vsel %vm105, %v1890, %v1899
  %v1903 = vsel %vm122, 0, %v1893
  %v1904 = vsel %vm138, %v1903, 0
  %v1905 = vsel %vm139, %v1900, 0
  %v1906 = vrot.slane %v1843, 1
  %v1907 = vor.u32 %v1840, %v1906
  %v1908 = vrot.slane %v1849, 1
  %v1909 = vsel %vm189, %v1907, %v1908
  %v1910 = vor.u32 %v1846, %v1908
  %v1913 = vsel %vm198, %v1910, 0
  %v1914 = vsel %vm214, %v1909, 0
  %v1915 = vsel %vm215, %v1913, 0
  %v1916 = vrot.slane %v1862, 1
  %v1917 = vor.u32 %v1859, %v1916
  %v1918 = vrot.slane %v1869, 1
  %v1919 = vsel %vm189, %v1917, %v1918
  %v1920 = vor.u32 %v1866, %v1918
  %v1923 = vsel %vm198, %v1920, 0
  %v1924 = vsel %vm214, %v1919, 0
  %v1925 = vsel %vm215, %v1923, 0
  %v1926 = vrot.slane %v1891, 1
  %v1927 = vor.u32 %v1888, %v1926
  %v1928 = vrot.slane %v1897, 1
  %v1929 = vsel %vm189, %v1927, %v1928
  %v1930 = vor.u32 %v1894, %v1928
  %v1933 = vsel %vm198, %v1930, 0
  %v1934 = vsel %vm214, %v1929, 0
  %v1935 = vsel %vm215, %v1933, 0
  %v1936 = vld [vmem:[%s3] sm:$0xf]
  %v1937 = vld [vmem:[%s3 + $0x4] sm:$0xf]
  %v1938 = vld [vmem:[%s3 + $0x8] sm:$0xf]
  %v1939 = vld [vmem:[%s3 + $0xc] sm:$0xf]
  %v1940 = vld [vmem:[%s3 + $0x10] sm:$0xf]
  %v1941 = vld [vmem:[%s3 + $0x14] sm:$0xf]
  %v1942 = vld [vmem:[%s3 + $0x18] sm:$0xf]
  %v1943 = vld [vmem:[%s3 + $0x1c] sm:$0xf]
  %v1944 = vld [vmem:[%s3 + $0x20] sm:$0xf]
  %v1945 = vld [vmem:[%s3 + $0x24] sm:$0xf]
  %v1946 = vld [vmem:[%s3 + $0x28] sm:$0xf]
  %v1947 = vld [vmem:[%s3 + $0x2c] sm:$0xf]
  %v1948 = vld [vmem:[%s3 + $0x30] sm:$0xf]
  %v1949 = vld [vmem:[%s3 + $0x34] sm:$0xf]
  %v1950 = vld [vmem:[%s3 + $0x38] sm:$0xf]
  %v1951 = vld [vmem:[%s3 + $0x3c] sm:$0xf]
  %v1952 = vld [vmem:[%s3 + $0x40] sm:$0xf]
  %v1953 = vld [vmem:[%s3 + $0x44] sm:$0xf]
  %v1954 = vld [vmem:[%s3 + $0x48] sm:$0xf]
  %v1955 = vld [vmem:[%s3 + $0x4c] sm:$0xf]
  %v1956 = vld [vmem:[%s3 + $0x50] sm:$0xf]
  %v1957 = vld [vmem:[%s3 + $0x54] sm:$0xf]
  %v1958 = vld [vmem:[%s3 + $0x58] sm:$0xf]
  %v1959 = vld [vmem:[%s3 + $0x5c] sm:$0xf]
  %v1960 = vld [vmem:[%s3 + $0x60] sm:$0xf]
  %v1961 = vld [vmem:[%s3 + $0x64] sm:$0xf]
  %v1962 = vld [vmem:[%s3 + $0x68] sm:$0xf]
  %v1963 = vld [vmem:[%s3 + $0x6c] sm:$0xf]
  %v1964 = vld [vmem:[%s3 + $0x70] sm:$0xf]
  %v1965 = vld [vmem:[%s3 + $0x74] sm:$0xf]
  %v1966 = vld [vmem:[%s3 + $0x78] sm:$0xf]
  %v1967 = vld [vmem:[%s3 + $0x7c] sm:$0xf]
  %v1968 = vld [vmem:[%s3 + $0x80] sm:$0xf]
  %v1969 = vld [vmem:[%s3 + $0x84] sm:$0xf]
  %v1970 = vld [vmem:[%s3 + $0x88] sm:$0xf]
  %v1971 = vld [vmem:[%s3 + $0x8c] sm:$0xf]
  %v1972 = vld [vmem:[%s3 + $0x90] sm:$0xf]
  %v1973 = vld [vmem:[%s3 + $0x94] sm:$0xf]
  %v1974 = vld [vmem:[%s3 + $0x98] sm:$0xf]
  %v1975 = vld [vmem:[%s3 + $0x9c] sm:$0xf]
  %v1976 = vld [vmem:[%s3 + $0xa0] sm:$0xf]
  %v1977 = vld [vmem:[%s3 + $0xa4] sm:$0xf]
  %v1978 = vld [vmem:[%s3 + $0xa8] sm:$0xf]
  %v1979 = vld [vmem:[%s3 + $0xac] sm:$0xf]
  %v1980 = vld [vmem:[%s3 + $0xb0] sm:$0xf]
  %v1981 = vld [vmem:[%s3 + $0xb4] sm:$0xf]
  %v1982 = vld [vmem:[%s3 + $0xb8] sm:$0xf]
  %v1983 = vld [vmem:[%s3 + $0xbc] sm:$0xf]
  %v1984 = vld [vmem:[%s3 + $0xc0] sm:$0xf]
  %v1985 = vld [vmem:[%s3 + $0xc4] sm:$0xf]
  %v1986 = vld [vmem:[%s3 + $0xc8] sm:$0xf]
  %v1987 = vld [vmem:[%s3 + $0xcc] sm:$0xf]
  %v1988 = vld [vmem:[%s3 + $0xd0] sm:$0xf]
  %v1989 = vld [vmem:[%s3 + $0xd4] sm:$0xf]
  %v1990 = vld [vmem:[%s3 + $0xd8] sm:$0xf]
  %v1991 = vld [vmem:[%s3 + $0xdc] sm:$0xf]
  %v1992 = vld [vmem:[%s3 + $0xe0] sm:$0xf]
  %v1993 = vld [vmem:[%s3 + $0xe4] sm:$0xf]
  %v1994 = vld [vmem:[%s3 + $0xe8] sm:$0xf]
  %v1995 = vld [vmem:[%s3 + $0xec] sm:$0xf]
  %v1996 = vld [vmem:[%s3 + $0xf0] sm:$0xf]
  %v1997 = vld [vmem:[%s3 + $0xf4] sm:$0xf]
  %v1998 = vld [vmem:[%s3 + $0xf8] sm:$0xf]
  %v1999 = vld [vmem:[%s3 + $0xfc] sm:$0xf]
  %v2000 = vld [vmem:[%s3 + $0x100] sm:$0xf]
  %v2001 = vld [vmem:[%s3 + $0x104] sm:$0xf]
  %v2002 = vld [vmem:[%s3 + $0x108] sm:$0xf]
  %v2003 = vld [vmem:[%s3 + $0x10c] sm:$0xf]
  %v2004 = vld [vmem:[%s3 + $0x110] sm:$0xf]
  %v2005 = vld [vmem:[%s3 + $0x114] sm:$0xf]
  %v2006 = vld [vmem:[%s3 + $0x118] sm:$0xf]
  %v2007 = vld [vmem:[%s3 + $0x11c] sm:$0xf]
  %v2008 = vld [vmem:[%s3 + $0x120] sm:$0xf]
  %v2009 = vld [vmem:[%s3 + $0x124] sm:$0xf]
  %v2010 = vld [vmem:[%s3 + $0x128] sm:$0xf]
  %v2011 = vld [vmem:[%s3 + $0x12c] sm:$0xf]
  %v2012 = vld [vmem:[%s3 + $0x130] sm:$0xf]
  %v2013 = vld [vmem:[%s3 + $0x134] sm:$0xf]
  %v2014 = vld [vmem:[%s3 + $0x138] sm:$0xf]
  %v2015 = vld [vmem:[%s3 + $0x13c] sm:$0xf]
  %v2016 = vld [vmem:[%s3 + $0x140] sm:$0xf]
  %v2017 = vld [vmem:[%s3 + $0x144] sm:$0xf]
  %v2018 = vld [vmem:[%s3 + $0x148] sm:$0xf]
  %v2019 = vld [vmem:[%s3 + $0x14c] sm:$0xf]
  %v2020 = vld [vmem:[%s3 + $0x150] sm:$0xf]
  %v2021 = vld [vmem:[%s3 + $0x154] sm:$0xf]
  %v2022 = vld [vmem:[%s3 + $0x158] sm:$0xf]
  %v2023 = vld [vmem:[%s3 + $0x15c] sm:$0xf]
  %v2024 = vld [vmem:[%s3 + $0x160] sm:$0xf]
  %v2025 = vld [vmem:[%s3 + $0x164] sm:$0xf]
  %v2026 = vld [vmem:[%s3 + $0x168] sm:$0xf]
  %v2027 = vld [vmem:[%s3 + $0x16c] sm:$0xf]
  %v2028 = vld [vmem:[%s3 + $0x170] sm:$0xf]
  %v2029 = vld [vmem:[%s3 + $0x174] sm:$0xf]
  %v2030 = vld [vmem:[%s3 + $0x178] sm:$0xf]
  %v2031 = vld [vmem:[%s3 + $0x17c] sm:$0xf]
  %v2032 = vld [vmem:[%s3 + $0x180] sm:$0xf]
  %v2033 = vld [vmem:[%s3 + $0x184] sm:$0xf]
  %v2034 = vld [vmem:[%s3 + $0x188] sm:$0xf]
  %v2035 = vld [vmem:[%s3 + $0x18c] sm:$0xf]
  %v2036 = vld [vmem:[%s3 + $0x190] sm:$0xf]
  %v2037 = vld [vmem:[%s3 + $0x194] sm:$0xf]
  %v2038 = vld [vmem:[%s3 + $0x198] sm:$0xf]
  %v2039 = vld [vmem:[%s3 + $0x19c] sm:$0xf]
  %v2040 = vld [vmem:[%s3 + $0x1a0] sm:$0xf]
  %v2041 = vld [vmem:[%s3 + $0x1a4] sm:$0xf]
  %v2042 = vld [vmem:[%s3 + $0x1a8] sm:$0xf]
  %v2043 = vld [vmem:[%s3 + $0x1ac] sm:$0xf]
  %v2044 = vld [vmem:[%s3 + $0x1b0] sm:$0xf]
  %v2045 = vld [vmem:[%s3 + $0x1b4] sm:$0xf]
  %v2046 = vld [vmem:[%s3 + $0x1b8] sm:$0xf]
  %v2047 = vld [vmem:[%s3 + $0x1bc] sm:$0xf]
  %v2048 = vld [vmem:[%s3 + $0x1c0] sm:$0xf]
  %v2049 = vld [vmem:[%s3 + $0x1c4] sm:$0xf]
  %v2050 = vld [vmem:[%s3 + $0x1c8] sm:$0xf]
  %v2051 = vld [vmem:[%s3 + $0x1cc] sm:$0xf]
  %v2052 = vld [vmem:[%s3 + $0x1d0] sm:$0xf]
  %v2053 = vld [vmem:[%s3 + $0x1d4] sm:$0xf]
  %v2054 = vld [vmem:[%s3 + $0x1d8] sm:$0xf]
  %v2055 = vld [vmem:[%s3 + $0x1dc] sm:$0xf]
  %v2056 = vld [vmem:[%s3 + $0x1e0] sm:$0xf]
  %v2057 = vld [vmem:[%s3 + $0x1e4] sm:$0xf]
  %v2058 = vld [vmem:[%s3 + $0x1e8] sm:$0xf]
  %v2059 = vld [vmem:[%s3 + $0x1ec] sm:$0xf]
  %v2060 = vld [vmem:[%s3 + $0x1f0] sm:$0xf]
  %v2061 = vld [vmem:[%s3 + $0x1f4] sm:$0xf]
  %v2062 = vld [vmem:[%s3 + $0x1f8] sm:$0xf]
  %v2063 = vld [vmem:[%s3 + $0x1fc] sm:$0xf]
  %v2064 = vld [vmem:[%s3 + $0x200] sm:$0xf]
  %v2065 = vld [vmem:[%s3 + $0x204] sm:$0xf]
  %v2066 = vld [vmem:[%s3 + $0x208] sm:$0xf]
  %v2067 = vld [vmem:[%s3 + $0x20c] sm:$0xf]
  %v2068 = vld [vmem:[%s3 + $0x210] sm:$0xf]
  %v2069 = vld [vmem:[%s3 + $0x214] sm:$0xf]
  %v2070 = vld [vmem:[%s3 + $0x218] sm:$0xf]
  %v2071 = vld [vmem:[%s3 + $0x21c] sm:$0xf]
  %v2072 = vld [vmem:[%s3 + $0x220] sm:$0xf]
  %v2073 = vld [vmem:[%s3 + $0x224] sm:$0xf]
  %v2074 = vld [vmem:[%s3 + $0x228] sm:$0xf]
  %v2075 = vld [vmem:[%s3 + $0x22c] sm:$0xf]
  %v2076 = vld [vmem:[%s3 + $0x230] sm:$0xf]
  %v2077 = vld [vmem:[%s3 + $0x234] sm:$0xf]
  %v2078 = vld [vmem:[%s3 + $0x238] sm:$0xf]
  %v2079 = vld [vmem:[%s3 + $0x23c] sm:$0xf]
  %s2080 = scalar_lea.vmem %s5, 8
  %v2081 = vld [vmem:[%s2080] sm:$0x7]
  %v2082 = vlaneseq
  %v2083 = vshrl.u32 %v2082, 7
  %v2084 = vsub.s32 0, %v2083
  %v2085 = vrot.slane %v2081, %v2084
  %v2230 = vunpack.c.l.b16 %v1936
  %v2231 = vunpack.c.l.b16 %v1937
  %v2232 = vunpack.c.l.b16 %v1938
  %v2233 = vunpack.c.l.b16 %v1939
  %v2234 = vunpack.c.l.b16 %v1940
  %v2235 = vunpack.c.l.b16 %v1941
  %v2236 = vunpack.c.l.b16 %v1942
  %v2237 = vunpack.c.l.b16 %v1943
  %v2238 = vunpack.c.l.b16 %v1944
  %v2239 = vunpack.c.l.b16 %v1945
  %v2240 = vunpack.c.l.b16 %v1946
  %v2241 = vunpack.c.l.b16 %v1947
  %v2242 = vunpack.c.l.b16 %v1948
  %v2243 = vunpack.c.l.b16 %v1949
  %v2244 = vunpack.c.l.b16 %v1950
  %v2245 = vunpack.c.l.b16 %v1951
  %v2246 = vunpack.c.l.b16 %v1952
  %v2247 = vunpack.c.l.b16 %v1953
  %v2248 = vunpack.c.l.b16 %v1954
  %v2249 = vunpack.c.l.b16 %v1955
  %v2250 = vunpack.c.l.b16 %v1956
  %v2251 = vunpack.c.l.b16 %v1957
  %v2252 = vunpack.c.l.b16 %v1958
  %v2253 = vunpack.c.l.b16 %v1959
  %v2254 = vunpack.c.l.b16 %v1960
  %v2255 = vunpack.c.l.b16 %v1961
  %v2256 = vunpack.c.l.b16 %v1962
  %v2257 = vunpack.c.l.b16 %v1963
  %v2258 = vunpack.c.l.b16 %v1964
  %v2259 = vunpack.c.l.b16 %v1965
  %v2260 = vunpack.c.l.b16 %v1966
  %v2261 = vunpack.c.l.b16 %v1967
  %v2262 = vunpack.c.l.b16 %v1968
  %v2263 = vunpack.c.l.b16 %v1969
  %v2264 = vunpack.c.l.b16 %v1970
  %v2265 = vunpack.c.l.b16 %v1971
  %v2266 = vunpack.c.l.b16 %v1972
  %v2267 = vunpack.c.l.b16 %v1973
  %v2268 = vunpack.c.l.b16 %v1974
  %v2269 = vunpack.c.l.b16 %v1975
  %v2270 = vunpack.c.l.b16 %v1976
  %v2271 = vunpack.c.l.b16 %v1977
  %v2272 = vunpack.c.l.b16 %v1978
  %v2273 = vunpack.c.l.b16 %v1979
  %v2274 = vunpack.c.l.b16 %v1980
  %v2275 = vunpack.c.l.b16 %v1981
  %v2276 = vunpack.c.l.b16 %v1982
  %v2277 = vunpack.c.l.b16 %v1983
  %v2278 = vunpack.c.l.b16 %v1984
  %v2279 = vunpack.c.l.b16 %v1985
  %v2280 = vunpack.c.l.b16 %v1986
  %v2281 = vunpack.c.l.b16 %v1987
  %v2282 = vunpack.c.l.b16 %v1988
  %v2283 = vunpack.c.l.b16 %v1989
  %v2284 = vunpack.c.l.b16 %v1990
  %v2285 = vunpack.c.l.b16 %v1991
  %v2286 = vunpack.c.l.b16 %v1992
  %v2287 = vunpack.c.l.b16 %v1993
  %v2288 = vunpack.c.l.b16 %v1994
  %v2289 = vunpack.c.l.b16 %v1995
  %v2290 = vunpack.c.l.b16 %v1996
  %v2291 = vunpack.c.l.b16 %v1997
  %v2292 = vunpack.c.l.b16 %v1998
  %v2293 = vunpack.c.l.b16 %v1999
  %v2294 = vunpack.c.l.b16 %v2000
  %v2295 = vunpack.c.l.b16 %v2001
  %v2296 = vunpack.c.l.b16 %v2002
  %v2297 = vunpack.c.l.b16 %v2003
  %v2298 = vunpack.c.l.b16 %v2004
  %v2299 = vunpack.c.l.b16 %v2005
  %v2300 = vunpack.c.l.b16 %v2006
  %v2301 = vunpack.c.l.b16 %v2007
  %v2302 = vunpack.c.l.b16 %v2008
  %v2303 = vunpack.c.l.b16 %v2009
  %v2304 = vunpack.c.l.b16 %v2010
  %v2305 = vunpack.c.l.b16 %v2011
  %v2306 = vunpack.c.l.b16 %v2012
  %v2307 = vunpack.c.l.b16 %v2013
  %v2308 = vunpack.c.l.b16 %v2014
  %v2309 = vunpack.c.l.b16 %v2015
  %v2310 = vunpack.c.l.b16 %v2016
  %v2311 = vunpack.c.l.b16 %v2017
  %v2312 = vunpack.c.l.b16 %v2018
  %v2313 = vunpack.c.l.b16 %v2019
  %v2314 = vunpack.c.l.b16 %v2020
  %v2315 = vunpack.c.l.b16 %v2021
  %v2316 = vunpack.c.l.b16 %v2022
  %v2317 = vunpack.c.l.b16 %v2023
  %v2318 = vunpack.c.l.b16 %v2024
  %v2319 = vunpack.c.l.b16 %v2025
  %v2320 = vunpack.c.l.b16 %v2026
  %v2321 = vunpack.c.l.b16 %v2027
  %v2322 = vunpack.c.l.b16 %v2028
  %v2323 = vunpack.c.l.b16 %v2029
  %v2324 = vunpack.c.l.b16 %v2030
  %v2325 = vunpack.c.l.b16 %v2031
  %v2326 = vunpack.c.l.b16 %v2032
  %v2327 = vunpack.c.l.b16 %v2033
  %v2328 = vunpack.c.l.b16 %v2034
  %v2329 = vunpack.c.l.b16 %v2035
  %v2330 = vunpack.c.l.b16 %v2036
  %v2331 = vunpack.c.l.b16 %v2037
  %v2332 = vunpack.c.l.b16 %v2038
  %v2333 = vunpack.c.l.b16 %v2039
  %v2334 = vunpack.c.l.b16 %v2040
  %v2335 = vunpack.c.l.b16 %v2041
  %v2336 = vunpack.c.l.b16 %v2042
  %v2337 = vunpack.c.l.b16 %v2043
  %v2338 = vunpack.c.l.b16 %v2044
  %v2339 = vunpack.c.l.b16 %v2045
  %v2340 = vunpack.c.l.b16 %v2046
  %v2341 = vunpack.c.l.b16 %v2047
  %v2342 = vunpack.c.l.b16 %v2048
  %v2343 = vunpack.c.l.b16 %v2049
  %v2344 = vunpack.c.l.b16 %v2050
  %v2345 = vunpack.c.l.b16 %v2051
  %v2346 = vunpack.c.l.b16 %v2052
  %v2347 = vunpack.c.l.b16 %v2053
  %v2348 = vunpack.c.l.b16 %v2054
  %v2349 = vunpack.c.l.b16 %v2055
  %v2350 = vunpack.c.l.b16 %v2056
  %v2351 = vunpack.c.l.b16 %v2057
  %v2352 = vunpack.c.l.b16 %v2058
  %v2353 = vunpack.c.l.b16 %v2059
  %v2354 = vunpack.c.l.b16 %v2060
  %v2355 = vunpack.c.l.b16 %v2061
  %v2356 = vunpack.c.l.b16 %v2062
  %v2357 = vunpack.c.l.b16 %v2063
  %v2358 = vunpack.c.l.b16 %v2064
  %v2359 = vunpack.c.l.b16 %v2065
  %v2360 = vunpack.c.l.b16 %v2066
  %v2361 = vunpack.c.l.b16 %v2067
  %v2362 = vunpack.c.l.b16 %v2068
  %v2363 = vunpack.c.l.b16 %v2069
  %v2364 = vunpack.c.l.b16 %v2070
  %v2365 = vunpack.c.l.b16 %v2071
  %v2366 = vunpack.c.l.b16 %v2072
  %v2367 = vunpack.c.l.b16 %v2073
  %v2368 = vunpack.c.l.b16 %v2074
  %v2369 = vunpack.c.l.b16 %v2075
  %v2370 = vunpack.c.l.b16 %v2076
  %v2371 = vunpack.c.l.b16 %v2077
  %v2372 = vunpack.c.l.b16 %v2078
  %v2373 = vunpack.c.l.b16 %v2079
  %v2374 = vpack.c.b16 %v2231, %v2230
  %v2375 = vpack.c.b16 %v2233, %v2232
  %v2376 = vpack.c.b16 %v2235, %v2234
  %v2377 = vpack.c.b16 %v2237, %v2236
  %v2378 = vpack.c.b16 %v2239, %v2238
  %v2379 = vpack.c.b16 %v2241, %v2240
  %v2380 = vpack.c.b16 %v2243, %v2242
  %v2381 = vpack.c.b16 %v2245, %v2244
  %v2382 = vpack.c.b16 %v2247, %v2246
  %v2383 = vpack.c.b16 %v2249, %v2248
  %v2384 = vpack.c.b16 %v2251, %v2250
  %v2385 = vpack.c.b16 %v2253, %v2252
  %v2386 = vpack.c.b16 %v2255, %v2254
  %v2387 = vpack.c.b16 %v2257, %v2256
  %v2388 = vpack.c.b16 %v2259, %v2258
  %v2389 = vpack.c.b16 %v2261, %v2260
  %v2390 = vpack.c.b16 %v2263, %v2262
  %v2391 = vpack.c.b16 %v2265, %v2264
  %v2392 = vpack.c.b16 %v2267, %v2266
  %v2393 = vpack.c.b16 %v2269, %v2268
  %v2394 = vpack.c.b16 %v2271, %v2270
  %v2395 = vpack.c.b16 %v2273, %v2272
  %v2396 = vpack.c.b16 %v2275, %v2274
  %v2397 = vpack.c.b16 %v2277, %v2276
  %v2398 = vpack.c.b16 %v2279, %v2278
  %v2399 = vpack.c.b16 %v2281, %v2280
  %v2400 = vpack.c.b16 %v2283, %v2282
  %v2401 = vpack.c.b16 %v2285, %v2284
  %v2402 = vpack.c.b16 %v2287, %v2286
  %v2403 = vpack.c.b16 %v2289, %v2288
  %v2404 = vpack.c.b16 %v2291, %v2290
  %v2405 = vpack.c.b16 %v2293, %v2292
  %v2406 = vpack.c.b16 %v2295, %v2294
  %v2407 = vpack.c.b16 %v2297, %v2296
  %v2408 = vpack.c.b16 %v2299, %v2298
  %v2409 = vpack.c.b16 %v2301, %v2300
  %v2410 = vpack.c.b16 %v2303, %v2302
  %v2411 = vpack.c.b16 %v2305, %v2304
  %v2412 = vpack.c.b16 %v2307, %v2306
  %v2413 = vpack.c.b16 %v2309, %v2308
  %v2414 = vpack.c.b16 %v2311, %v2310
  %v2415 = vpack.c.b16 %v2313, %v2312
  %v2416 = vpack.c.b16 %v2315, %v2314
  %v2417 = vpack.c.b16 %v2317, %v2316
  %v2418 = vpack.c.b16 %v2319, %v2318
  %v2419 = vpack.c.b16 %v2321, %v2320
  %v2420 = vpack.c.b16 %v2323, %v2322
  %v2421 = vpack.c.b16 %v2325, %v2324
  %v2422 = vpack.c.b16 %v2327, %v2326
  %v2423 = vpack.c.b16 %v2329, %v2328
  %v2424 = vpack.c.b16 %v2331, %v2330
  %v2425 = vpack.c.b16 %v2333, %v2332
  %v2426 = vpack.c.b16 %v2335, %v2334
  %v2427 = vpack.c.b16 %v2337, %v2336
  %v2428 = vpack.c.b16 %v2339, %v2338
  %v2429 = vpack.c.b16 %v2341, %v2340
  %v2430 = vpack.c.b16 %v2343, %v2342
  %v2431 = vpack.c.b16 %v2345, %v2344
  %v2432 = vpack.c.b16 %v2347, %v2346
  %v2433 = vpack.c.b16 %v2349, %v2348
  %v2434 = vpack.c.b16 %v2351, %v2350
  %v2435 = vpack.c.b16 %v2353, %v2352
  %v2436 = vpack.c.b16 %v2355, %v2354
  %v2437 = vpack.c.b16 %v2357, %v2356
  %v2438 = vpack.c.b16 %v2359, %v2358
  %v2439 = vpack.c.b16 %v2361, %v2360
  %v2440 = vpack.c.b16 %v2363, %v2362
  %v2441 = vpack.c.b16 %v2365, %v2364
  %v2442 = vpack.c.b16 %v2367, %v2366
  %v2443 = vpack.c.b16 %v2369, %v2368
  %v2444 = vpack.c.b16 %v2371, %v2370
  %v2445 = vpack.c.b16 %v2373, %v2372
  %2518 = vmatprep.subr.bf16.mxu0 0
  %2519 = vmatpush1.bf16.msra.mxu0 %v2374
  %2520 = vmatprep.subr.bf16.mxu0 0
  %2521 = vmatpush1.bf16.msra.mxu0 %v2375
  %2522 = vmatprep.subr.bf16.mxu0 0
  %2523 = vmatpush1.bf16.msra.mxu0 %v2376
  %2524 = vmatprep.subr.bf16.mxu0 0
  %2525 = vmatpush1.bf16.msra.mxu0 %v2377
  %2526 = vmatprep.subr.bf16.mxu0 0
  %2527 = vmatpush1.bf16.msra.mxu0 %v2378
  %2528 = vmatprep.subr.bf16.mxu0 0
  %2529 = vmatpush1.bf16.msra.mxu0 %v2379
  %2530 = vmatprep.subr.bf16.mxu0 0
  %2531 = vmatpush1.bf16.msra.mxu0 %v2380
  %2532 = vmatprep.subr.bf16.mxu0 0
  %2533 = vmatpush1.bf16.msra.mxu0 %v2381
  %2534 = vmatprep.subr.bf16.mxu0 0
  %2535 = vmatpush1.bf16.msra.mxu0 %v2382
  %2536 = vmatprep.subr.bf16.mxu0 0
  %2537 = vmatpush1.bf16.msra.mxu0 %v2383
  %2538 = vmatprep.subr.bf16.mxu0 0
  %2539 = vmatpush1.bf16.msra.mxu0 %v2384
  %2540 = vmatprep.subr.bf16.mxu0 0
  %2541 = vmatpush1.bf16.msra.mxu0 %v2385
  %2542 = vmatprep.subr.bf16.mxu0 0
  %2543 = vmatpush1.bf16.msra.mxu0 %v2386
  %2544 = vmatprep.subr.bf16.mxu0 0
  %2545 = vmatpush1.bf16.msra.mxu0 %v2387
  %2546 = vmatprep.subr.bf16.mxu0 0
  %2547 = vmatpush1.bf16.msra.mxu0 %v2388
  %2548 = vmatprep.subr.bf16.mxu0 0
  %2549 = vmatpush1.bf16.msra.mxu0 %v2389
  %2550 = vmatprep.mubr.bf16.mxu0 %v1876
  %2551 = vmatmul.mubr.bf16.gmra.mrb[0].mxu0 %v1856
  %v2552 = vpop.f32.mrb[0].mxu0
  %v2553 = vadd.f32 %v2085, %v2552
  %v2554 = vpop.f32.mrb[0].mxu0
  %v2555 = vpop.f32.mrb[0].mxu0
  %v2556 = vadd.f32 %v2085, %v2555
  %v2557 = vpop.f32.mrb[0].mxu0
  %2558 = vmatprep.mubr.bf16.mxu0 %v1877
  %2559 = vmatmul.mubr.bf16.gmra.mrb[0].mxu0 %v1857
  %v2560 = vpop.f32.mrb[0].mxu0
  %v2561 = vadd.f32 %v2085, %v2560
  %v2562 = vpop.f32.mrb[0].mxu0
  %v2563 = vpop.f32.mrb[0].mxu0
  %v2564 = vadd.f32 %v2085, %v2563
  %v2565 = vpop.f32.mrb[0].mxu0
  %2566 = vdwg.mxu0
  %2567 = vmatprep.subr.bf16.mxu0 0
  %2568 = vmatpush1.bf16.msra.mxu0 %v2390
  %2569 = vmatprep.subr.bf16.mxu0 0
  %2570 = vmatpush1.bf16.msra.mxu0 %v2391
  %2571 = vmatprep.subr.bf16.mxu0 0
  %2572 = vmatpush1.bf16.msra.mxu0 %v2392
  %2573 = vmatprep.subr.bf16.mxu0 0
  %2574 = vmatpush1.bf16.msra.mxu0 %v2393
  %2575 = vmatprep.subr.bf16.mxu0 0
  %2576 = vmatpush1.bf16.msra.mxu0 %v2394
  %2577 = vmatprep.subr.bf16.mxu0 0
  %2578 = vmatpush1.bf16.msra.mxu0 %v2395
  %2579 = vmatprep.subr.bf16.mxu0 0
  %2580 = vmatpush1.bf16.msra.mxu0 %v2396
  %2581 = vmatprep.subr.bf16.mxu0 0
  %2582 = vmatpush1.bf16.msra.mxu0 %v2397
  %2583 = vmatprep.subr.bf16.mxu0 0
  %2584 = vmatpush1.bf16.msra.mxu0 %v2398
  %2585 = vmatprep.subr.bf16.mxu0 0
  %2586 = vmatpush1.bf16.msra.mxu0 %v2399
  %2587 = vmatprep.subr.bf16.mxu0 0
  %2588 = vmatpush1.bf16.msra.mxu0 %v2400
  %2589 = vmatprep.subr.bf16.mxu0 0
  %2590 = vmatpush1.bf16.msra.mxu0 %v2401
  %2591 = vmatprep.subr.bf16.mxu0 0
  %2592 = vmatpush1.bf16.msra.mxu0 %v2402
  %2593 = vmatprep.subr.bf16.mxu0 0
  %2594 = vmatpush1.bf16.msra.mxu0 %v2403
  %2595 = vmatprep.subr.bf16.mxu0 0
  %2596 = vmatpush1.bf16.msra.mxu0 %v2404
  %2597 = vmatprep.subr.bf16.mxu0 0
  %2598 = vmatpush1.bf16.msra.mxu0 %v2405
  %2599 = vmatprep.mubr.bf16.mxu0 %v1835
  %2600 = vmatmul.mubr.bf16.gmra.mrb[0].mxu0 %v1904
  %v2601 = vpop.f32.mrb[0].mxu0
  %v2602 = vadd.f32 %v2553, %v2601
  %v2603 = vpop.f32.mrb[0].mxu0
  %v2604 = vpop.f32.mrb[0].mxu0
  %v2605 = vadd.f32 %v2556, %v2604
  %v2606 = vpop.f32.mrb[0].mxu0
  %2607 = vmatprep.mubr.bf16.mxu0 %v1838
  %2608 = vmatmul.mubr.bf16.gmra.mrb[0].mxu0 %v1905
  %v2609 = vpop.f32.mrb[0].mxu0
  %v2610 = vadd.f32 %v2561, %v2609
  %v2611 = vpop.f32.mrb[0].mxu0
  %v2612 = vpop.f32.mrb[0].mxu0
  %v2613 = vadd.f32 %v2564, %v2612
  %v2614 = vpop.f32.mrb[0].mxu0
  %2615 = vdwg.mxu0
  %2616 = vmatprep.subr.bf16.mxu0 0
  %2617 = vmatpush1.bf16.msra.mxu0 %v2406
  %2618 = vmatprep.subr.bf16.mxu0 0
  %2619 = vmatpush1.bf16.msra.mxu0 %v2407
  %2620 = vmatprep.subr.bf16.mxu0 0
  %2621 = vmatpush1.bf16.msra.mxu0 %v2408
  %2622 = vmatprep.subr.bf16.mxu0 0
  %2623 = vmatpush1.bf16.msra.mxu0 %v2409
  %2624 = vmatprep.subr.bf16.mxu0 0
  %2625 = vmatpush1.bf16.msra.mxu0 %v2410
  %2626 = vmatprep.subr.bf16.mxu0 0
  %2627 = vmatpush1.bf16.msra.mxu0 %v2411
  %2628 = vmatprep.subr.bf16.mxu0 0
  %2629 = vmatpush1.bf16.msra.mxu0 %v2412
  %2630 = vmatprep.subr.bf16.mxu0 0
  %2631 = vmatpush1.bf16.msra.mxu0 %v2413
  %2632 = vmatprep.subr.bf16.mxu0 0
  %2633 = vmatpush1.bf16.msra.mxu0 %v2414
  %2634 = vmatprep.subr.bf16.mxu0 0
  %2635 = vmatpush1.bf16.msra.mxu0 %v2415
  %2636 = vmatprep.subr.bf16.mxu0 0
  %2637 = vmatpush1.bf16.msra.mxu0 %v2416
  %2638 = vmatprep.subr.bf16.mxu0 0
  %2639 = vmatpush1.bf16.msra.mxu0 %v2417
  %2640 = vmatprep.subr.bf16.mxu0 0
  %2641 = vmatpush1.bf16.msra.mxu0 %v2418
  %2642 = vmatprep.subr.bf16.mxu0 0
  %2643 = vmatpush1.bf16.msra.mxu0 %v2419
  %2644 = vmatprep.subr.bf16.mxu0 0
  %2645 = vmatpush1.bf16.msra.mxu0 %v2420
  %2646 = vmatprep.subr.bf16.mxu0 0
  %2647 = vmatpush1.bf16.msra.mxu0 %v2421
  %2648 = vmatprep.mubr.bf16.mxu0 %v1883
  %2649 = vmatmul.mubr.bf16.gmra.mrb[0].mxu0 %v1826
  %v2650 = vpop.f32.mrb[0].mxu0
  %v2651 = vadd.f32 %v2602, %v2650
  %v2652 = vpop.f32.mrb[0].mxu0
  %v2653 = vpop.f32.mrb[0].mxu0
  %v2654 = vadd.f32 %v2605, %v2653
  %v2655 = vpop.f32.mrb[0].mxu0
  %2656 = vmatprep.mubr.bf16.mxu0 %v1886
  %2657 = vmatmul.mubr.bf16.gmra.mrb[0].mxu0 %v1827
  %v2658 = vpop.f32.mrb[0].mxu0
  %v2659 = vadd.f32 %v2610, %v2658
  %v2660 = vpop.f32.mrb[0].mxu0
  %v2661 = vpop.f32.mrb[0].mxu0
  %v2662 = vadd.f32 %v2613, %v2661
  %v2663 = vpop.f32.mrb[0].mxu0
  %2664 = vdwg.mxu0
  %2665 = vmatprep.subr.bf16.mxu0 0
  %2666 = vmatpush1.bf16.msra.mxu0 %v2422
  %2667 = vmatprep.subr.bf16.mxu0 0
  %2668 = vmatpush1.bf16.msra.mxu0 %v2423
  %2669 = vmatprep.subr.bf16.mxu0 0
  %2670 = vmatpush1.bf16.msra.mxu0 %v2424
  %2671 = vmatprep.subr.bf16.mxu0 0
  %2672 = vmatpush1.bf16.msra.mxu0 %v2425
  %2673 = vmatprep.subr.bf16.mxu0 0
  %2674 = vmatpush1.bf16.msra.mxu0 %v2426
  %2675 = vmatprep.subr.bf16.mxu0 0
  %2676 = vmatpush1.bf16.msra.mxu0 %v2427
  %2677 = vmatprep.subr.bf16.mxu0 0
  %2678 = vmatpush1.bf16.msra.mxu0 %v2428
  %2679 = vmatprep.subr.bf16.mxu0 0
  %2680 = vmatpush1.bf16.msra.mxu0 %v2429
  %2681 = vmatprep.subr.bf16.mxu0 0
  %2682 = vmatpush1.bf16.msra.mxu0 %v2430
  %2683 = vmatprep.subr.bf16.mxu0 0
  %2684 = vmatpush1.bf16.msra.mxu0 %v2431
  %2685 = vmatprep.subr.bf16.mxu0 0
  %2686 = vmatpush1.bf16.msra.mxu0 %v2432
  %2687 = vmatprep.subr.bf16.mxu0 0
  %2688 = vmatpush1.bf16.msra.mxu0 %v2433
  %2689 = vmatprep.subr.bf16.mxu0 0
  %2690 = vmatpush1.bf16.msra.mxu0 %v2434
  %2691 = vmatprep.subr.bf16.mxu0 0
  %2692 = vmatpush1.bf16.msra.mxu0 %v2435
  %2693 = vmatprep.subr.bf16.mxu0 0
  %2694 = vmatpush1.bf16.msra.mxu0 %v2436
  %2695 = vmatprep.subr.bf16.mxu0 0
  %2696 = vmatpush1.bf16.msra.mxu0 %v2437
  %2697 = vmatprep.mubr.bf16.mxu0 %v1924
  %2698 = vmatmul.mubr.bf16.gmra.mrb[0].mxu0 %v1914
  %v2699 = vpop.f32.mrb[0].mxu0
  %v2700 = vadd.f32 %v2651, %v2699
  %v2701 = vpop.f32.mrb[0].mxu0
  %v2702 = vpop.f32.mrb[0].mxu0
  %v2703 = vadd.f32 %v2654, %v2702
  %v2704 = vpop.f32.mrb[0].mxu0
  %2705 = vmatprep.mubr.bf16.mxu0 %v1925
  %2706 = vmatmul.mubr.bf16.gmra.mrb[0].mxu0 %v1915
  %v2707 = vpop.f32.mrb[0].mxu0
  %v2708 = vadd.f32 %v2659, %v2707
  %v2709 = vpop.f32.mrb[0].mxu0
  %v2710 = vpop.f32.mrb[0].mxu0
  %v2711 = vadd.f32 %v2662, %v2710
  %v2712 = vpop.f32.mrb[0].mxu0
  %2713 = vdwg.mxu0
  %2714 = vmatprep.subr.bf16.mxu0 0
  %2715 = vmatpush1.bf16.msra.mxu0 %v2438
  %2716 = vmatprep.subr.bf16.mxu0 0
  %2717 = vmatpush1.bf16.msra.mxu0 %v2439
  %2718 = vmatprep.subr.bf16.mxu0 0
  %2719 = vmatpush1.bf16.msra.mxu0 %v2440
  %2720 = vmatprep.subr.bf16.mxu0 0
  %2721 = vmatpush1.bf16.msra.mxu0 %v2441
  %2722 = vmatprep.subr.bf16.mxu0 0
  %2723 = vmatpush1.bf16.msra.mxu0 %v2442
  %2724 = vmatprep.subr.bf16.mxu0 0
  %2725 = vmatpush1.bf16.msra.mxu0 %v2443
  %2726 = vmatprep.subr.bf16.mxu0 0
  %2727 = vmatpush1.bf16.msra.mxu0 %v2444
  %2728 = vmatprep.subr.bf16.mxu0 0
  %2729 = vmatpush1.bf16.msra.mxu0 %v2445
  %2730 = vmatprep.subr.bf16.mxu0 0
  %2731 = vmatpush1.bf16.msra.mxu0 0
  %2732 = vmatprep.subr.bf16.mxu0 0
  %2733 = vmatpush1.bf16.msra.mxu0 0
  %2734 = vmatprep.subr.bf16.mxu0 0
  %2735 = vmatpush1.bf16.msra.mxu0 0
  %2736 = vmatprep.subr.bf16.mxu0 0
  %2737 = vmatpush1.bf16.msra.mxu0 0
  %2738 = vmatprep.subr.bf16.mxu0 0
  %2739 = vmatpush1.bf16.msra.mxu0 0
  %2740 = vmatprep.subr.bf16.mxu0 0
  %2741 = vmatpush1.bf16.msra.mxu0 0
  %2742 = vmatprep.subr.bf16.mxu0 0
  %2743 = vmatpush1.bf16.msra.mxu0 0
  %2744 = vmatprep.subr.bf16.mxu0 0
  %2745 = vmatpush1.bf16.msra.mxu0 0
  %2746 = vmatprep.mubr.bf16.mxu0 0
  %2747 = vmatmul.mubr.bf16.gmra.mrb[0].mxu0 %v1934
  %v2748 = vpop.f32.mrb[0].mxu0
  %v2749 = vadd.f32 %v2700, %v2748
  %v2750 = vpop.f32.mrb[0].mxu0
  %v2751 = vpop.f32.mrb[0].mxu0
  %v2752 = vadd.f32 %v2703, %v2751
  %v2753 = vpop.f32.mrb[0].mxu0
  %2754 = vmatprep.mubr.bf16.mxu0 0
  %2755 = vmatmul.mubr.bf16.gmra.mrb[0].mxu0 %v1935
  %v2756 = vpop.f32.mrb[0].mxu0
  %v2757 = vadd.f32 %v2708, %v2756
  %v2758 = vpop.f32.mrb[0].mxu0
  %v2759 = vpop.f32.mrb[0].mxu0
  %v2760 = vadd.f32 %v2711, %v2759
  %v2761 = vpop.f32.mrb[0].mxu0
  %2762 = vdwg.mxu0
  %v2763 = vmax.f32 %v2749, 0.0
  %v2764 = vmax.f32 %v2752, 0.0
  %v2765 = vmax.f32 %v2757, 0.0
  %v2766 = vmax.f32 %v2760, 0.0
  %v2767 = vadd.f32 %v2763, %v2764
  %v2768 = vadd.f32 %v2767, %v2765
  %v2769 = vadd.f32 %v2768, %v2766
  %v2770 = vrot.slane %v2769, 4
  %v2771 = vadd.f32 %v2769, %v2770
  %v2772 = vrot.slane %v2771, 2
  %v2773 = vadd.f32 %v2771, %v2772
  %v2774 = vrot.slane %v2773, 1
  %v2775 = vadd.f32 %v2773, %v2774
  %v2776 = vmul.f32 %v2763, %v2763
  %v2777 = vmul.f32 %v2764, %v2764
  %v2778 = vmul.f32 %v2765, %v2765
  %v2779 = vmul.f32 %v2766, %v2766
  %v2780 = vadd.f32 %v2776, %v2777
  %v2781 = vadd.f32 %v2780, %v2778
  %v2782 = vadd.f32 %v2781, %v2779
  %v2783 = vrot.slane %v2782, 4
  %v2784 = vadd.f32 %v2782, %v2783
  %v2785 = vrot.slane %v2784, 2
  %v2786 = vadd.f32 %v2784, %v2785
  %v2787 = vrot.slane %v2786, 1
  %v2788 = vadd.f32 %v2786, %v2787
  %v2789 = vsel %vm765, %v2775, %v2788
  %v2790 = vsel %vm767, %v2789, 0.0
  %2791 = vrot.lane.b32.xlu0 %v2790, 8
  %v2792 = vpop.permute.xlu0 %2791
  %v2793 = vadd.f32 %v2790, %v2792
  %2794 = vrot.lane.b32.xlu0 %v2793, 16
  %v2795 = vpop.permute.xlu0 %2794
  %v2796 = vadd.f32 %v2793, %v2795
  %2797 = vrot.lane.b32.xlu0 %v2796, 32
  %v2798 = vpop.permute.xlu0 %2797
  %v2799 = vadd.f32 %v2796, %v2798
  %2800 = vrot.lane.b32.xlu0 %v2799, 64
  %v2801 = vpop.permute.xlu0 %2800
  %v2802 = vadd.f32 %v2799, %v2801
  %v2803 = vmul.f32 %v2802, 0.001953125
  %v2804 = vmul.f32 %v2803, %v2803
  %v2806 = vrot.slane %v2804, 7
  %v2808 = vsub.f32 %v2803, %v2806
  %v2809 = vadd.f32 %v2808, 1e-05
  %v2810 = vrsqrt.pop %v2809
  %v2811 = vmul.f32 %v2081, %v2810
  %v2813 = vrot.slane %v2811, 1
  %v2815 = vmul.f32 %v2803, %v2813
  %v2817 = vrot.slane %v2815, 6
  %v2819 = vsub.f32 %v2081, %v2817
  %v2820 = vlaneseq
  %v2821 = vshrl.u32 %v2820, 7
  %v2822 = vsub.s32 1, %v2821
  %v2823 = vrot.slane %v2811, %v2822
  %v2824 = vmul.f32 %v2763, %v2823
  %v2825 = vmul.f32 %v2764, %v2823
  %v2826 = vmul.f32 %v2765, %v2823
  %v2827 = vmul.f32 %v2766, %v2823
  %v2828 = vlaneseq
  %v2829 = vshrl.u32 %v2828, 7
  %v2830 = vsub.s32 2, %v2829
  %v2831 = vrot.slane %v2819, %v2830
  %v2832 = vadd.f32 %v2824, %v2831
  %v2833 = vadd.f32 %v2825, %v2831
  %v2834 = vadd.f32 %v2826, %v2831
  %v2835 = vadd.f32 %v2827, %v2831
  %v2836 = vpack.c.bf16 %v2833, %v2832
  %v2837 = vpack.c.bf16 %v2835, %v2834
  %v2838 = vld [vmem:[%s4] sm:$0xf]
  %v2839 = vld [vmem:[%s4 + $0x4] sm:$0xf]
  %v2840 = vld [vmem:[%s4 + $0x8] sm:$0xf]
  %v2841 = vld [vmem:[%s4 + $0xc] sm:$0xf]
  %v2842 = vld [vmem:[%s4 + $0x10] sm:$0xf]
  %v2843 = vld [vmem:[%s4 + $0x14] sm:$0xf]
  %v2844 = vld [vmem:[%s4 + $0x18] sm:$0xf]
  %v2845 = vld [vmem:[%s4 + $0x1c] sm:$0xf]
  %v2846 = vld [vmem:[%s4 + $0x20] sm:$0xf]
  %v2847 = vld [vmem:[%s4 + $0x24] sm:$0xf]
  %v2848 = vld [vmem:[%s4 + $0x28] sm:$0xf]
  %v2849 = vld [vmem:[%s4 + $0x2c] sm:$0xf]
  %v2850 = vld [vmem:[%s4 + $0x30] sm:$0xf]
  %v2851 = vld [vmem:[%s4 + $0x34] sm:$0xf]
  %v2852 = vld [vmem:[%s4 + $0x38] sm:$0xf]
  %v2853 = vld [vmem:[%s4 + $0x3c] sm:$0xf]
  %v2870 = vunpack.c.l.b16 %v2838
  %v2871 = vunpack.c.l.b16 %v2839
  %v2872 = vunpack.c.l.b16 %v2840
  %v2873 = vunpack.c.l.b16 %v2841
  %v2874 = vunpack.c.l.b16 %v2842
  %v2875 = vunpack.c.l.b16 %v2843
  %v2876 = vunpack.c.l.b16 %v2844
  %v2877 = vunpack.c.l.b16 %v2845
  %v2878 = vunpack.c.l.b16 %v2846
  %v2879 = vunpack.c.l.b16 %v2847
  %v2880 = vunpack.c.l.b16 %v2848
  %v2881 = vunpack.c.l.b16 %v2849
  %v2882 = vunpack.c.l.b16 %v2850
  %v2883 = vunpack.c.l.b16 %v2851
  %v2884 = vunpack.c.l.b16 %v2852
  %v2885 = vunpack.c.l.b16 %v2853
  %v2886 = vpack.c.b16 %v2871, %v2870
  %v2887 = vpack.c.b16 %v2873, %v2872
  %v2888 = vpack.c.b16 %v2875, %v2874
  %v2889 = vpack.c.b16 %v2877, %v2876
  %v2890 = vpack.c.b16 %v2879, %v2878
  %v2891 = vpack.c.b16 %v2881, %v2880
  %v2892 = vpack.c.b16 %v2883, %v2882
  %v2893 = vpack.c.b16 %v2885, %v2884
  %2902 = vmatprep.subr.bf16.mxu0 0
  %2903 = vmatpush1.bf16.msra.mxu0 %v2886
  %2904 = vmatprep.subr.bf16.mxu0 0
  %2905 = vmatpush1.bf16.msra.mxu0 %v2887
  %2906 = vmatprep.subr.bf16.mxu0 0
  %2907 = vmatpush1.bf16.msra.mxu0 %v2888
  %2908 = vmatprep.subr.bf16.mxu0 0
  %2909 = vmatpush1.bf16.msra.mxu0 %v2889
  %2910 = vmatprep.subr.bf16.mxu0 0
  %2911 = vmatpush1.bf16.msra.mxu0 %v2890
  %2912 = vmatprep.subr.bf16.mxu0 0
  %2913 = vmatpush1.bf16.msra.mxu0 %v2891
  %2914 = vmatprep.subr.bf16.mxu0 0
  %2915 = vmatpush1.bf16.msra.mxu0 %v2892
  %2916 = vmatprep.subr.bf16.mxu0 0
  %2917 = vmatpush1.bf16.msra.mxu0 %v2893
  %2918 = vmatprep.subr.bf16.mxu0 0
  %2919 = vmatpush1.bf16.msra.mxu0 0
  %2920 = vmatprep.subr.bf16.mxu0 0
  %2921 = vmatpush1.bf16.msra.mxu0 0
  %2922 = vmatprep.subr.bf16.mxu0 0
  %2923 = vmatpush1.bf16.msra.mxu0 0
  %2924 = vmatprep.subr.bf16.mxu0 0
  %2925 = vmatpush1.bf16.msra.mxu0 0
  %2926 = vmatprep.subr.bf16.mxu0 0
  %2927 = vmatpush1.bf16.msra.mxu0 0
  %2928 = vmatprep.subr.bf16.mxu0 0
  %2929 = vmatpush1.bf16.msra.mxu0 0
  %2930 = vmatprep.subr.bf16.mxu0 0
  %2931 = vmatpush1.bf16.msra.mxu0 0
  %2932 = vmatprep.subr.bf16.mxu0 0
  %2933 = vmatpush1.bf16.msra.mxu0 0
  %2934 = vmatprep.mubr.bf16.mxu0 0
  %2935 = vmatmul.mubr.bf16.gmra.mrb[0].mxu0 %v2836
  %v2936 = vpop.f32.mrb[0].mxu0
  %v2937 = vadd.f32 0.0, %v2936
  %v2938 = vpop.f32.mrb[0].mxu0
  %v2939 = vpop.f32.mrb[0].mxu0
  %v2940 = vadd.f32 0.0, %v2939
  %v2941 = vpop.f32.mrb[0].mxu0
  %2942 = vmatprep.mubr.bf16.mxu0 0
  %2943 = vmatmul.mubr.bf16.gmra.mrb[0].mxu0 %v2837
  %v2944 = vpop.f32.mrb[0].mxu0
  %v2945 = vadd.f32 0.0, %v2944
  %v2946 = vpop.f32.mrb[0].mxu0
  %v2947 = vpop.f32.mrb[0].mxu0
  %v2948 = vadd.f32 0.0, %v2947
  %v2949 = vpop.f32.mrb[0].mxu0
  %2950 = vdwg.mxu0
  %s2951 = scalar_lea.vmem %s5, 12
  %v2952 = vld [vmem:[%s2951] sm:$0x7]
  %v2953 = vadd.f32 %v2937, %v2940
  %v2954 = vadd.f32 %v2953, %v2945
  %v2955 = vadd.f32 %v2954, %v2948
  %v2956 = vrot.slane %v2955, 4
  %v2957 = vadd.f32 %v2955, %v2956
  %v2958 = vrot.slane %v2957, 2
  %v2959 = vadd.f32 %v2957, %v2958
  %v2960 = vrot.slane %v2959, 1
  %v2961 = vadd.f32 %v2959, %v2960
  %v2962 = vmul.f32 %v2937, %v2937
  %v2963 = vmul.f32 %v2940, %v2940
  %v2964 = vmul.f32 %v2945, %v2945
  %v2965 = vmul.f32 %v2948, %v2948
  %v2966 = vadd.f32 %v2962, %v2963
  %v2967 = vadd.f32 %v2966, %v2964
  %v2968 = vadd.f32 %v2967, %v2965
  %v2969 = vrot.slane %v2968, 4
  %v2970 = vadd.f32 %v2968, %v2969
  %v2971 = vrot.slane %v2970, 2
  %v2972 = vadd.f32 %v2970, %v2971
  %v2973 = vrot.slane %v2972, 1
  %v2974 = vadd.f32 %v2972, %v2973
  %v2975 = vsel %vm765, %v2961, %v2974
  %v2976 = vsel %vm767, %v2975, 0.0
  %2977 = vrot.lane.b32.xlu0 %v2976, 8
  %v2978 = vpop.permute.xlu0 %2977
  %v2979 = vadd.f32 %v2976, %v2978
  %2980 = vrot.lane.b32.xlu0 %v2979, 16
  %v2981 = vpop.permute.xlu0 %2980
  %v2982 = vadd.f32 %v2979, %v2981
  %2983 = vrot.lane.b32.xlu0 %v2982, 32
  %v2984 = vpop.permute.xlu0 %2983
  %v2985 = vadd.f32 %v2982, %v2984
  %2986 = vrot.lane.b32.xlu0 %v2985, 64
  %v2987 = vpop.permute.xlu0 %2986
  %v2988 = vadd.f32 %v2985, %v2987
  %v2989 = vmul.f32 %v2988, 0.001953125
  %v2990 = vmul.f32 %v2989, %v2989
  %v2992 = vrot.slane %v2990, 7
  %v2994 = vsub.f32 %v2989, %v2992
  %v2995 = vadd.f32 %v2994, 1e-05
  %v2996 = vrsqrt.pop %v2995
  %v2997 = vmul.f32 %v2952, %v2996
  %v2999 = vrot.slane %v2997, 1
  %v3001 = vmul.f32 %v2989, %v2999
  %v3003 = vrot.slane %v3001, 6
  %v3005 = vsub.f32 %v2952, %v3003
  %v3006 = vlaneseq
  %v3007 = vshrl.u32 %v3006, 7
  %v3008 = vsub.s32 1, %v3007
  %v3009 = vrot.slane %v2997, %v3008
  %v3010 = vmul.f32 %v2937, %v3009
  %v3011 = vmul.f32 %v2940, %v3009
  %v3012 = vmul.f32 %v2945, %v3009
  %v3013 = vmul.f32 %v2948, %v3009
  %v3014 = vlaneseq
  %v3015 = vshrl.u32 %v3014, 7
  %v3016 = vsub.s32 2, %v3015
  %v3017 = vrot.slane %v3005, %v3016
  %v3018 = vadd.f32 %v3010, %v3017
  %v3019 = vadd.f32 %v3011, %v3017
  %v3020 = vadd.f32 %v3012, %v3017
  %v3021 = vadd.f32 %v3013, %v3017
  %3022 = vst [vmem:[%s6] sm:$0xff] %v3018
  %3023 = vst [vmem:[%s6 + $0x8] sm:$0xff] %v3019
  %3024 = vst [vmem:[%s6 + $0x10] sm:$0xff] %v3020
  %3025 = vst [vmem:[%s6 + $0x18] sm:$0xff] %v3021
  // Predicated region
  $region26: #{mynet_forward.1} parent=0 // pred_check
    _
  $region27: #{mynet_forward.1} parent=0 // pred_check_branch
    %3027 = sbr.rel (0) target = $region29
  $region28: #{mynet_forward.1} parent=0 // pred_region
    _
  $region29: #{mynet_forward.1} parent=0 // pred_fallthru
    _
  // Predicated region
  $region30: #{mynet_forward.1} parent=0 // pred_check
    _
  $region31: #{mynet_forward.1} parent=0 // pred_check_branch
    %3029 = sbr.rel (0) target = $region33
  $region32: #{mynet_forward.1} parent=0 // pred_region
    _
  $region33: #{mynet_forward.1} parent=0 // pred_fallthru
    _

</llo_original>
